<compile_context>
chip_gen: v7x
topology: tpu7x:2x2x1
jax: 0.10.0
libtpu: 0.0.40
codegen_flags: <defaults>
</compile_context>

<pallas_src>
import jax
import jax.numpy as jnp
import numpy as np
from jax.experimental import pallas as pl
from jax.experimental.pallas import tpu as pltpu


def _mish(v):
    # mish(v) = v * tanh(softplus(v)) = v * (u^2 + 2u) / (u^2 + 2u + 2),  u = exp(v)
    # -> one EUP exp + approx reciprocal (+1 Newton step) instead of exp/log1p/tanh.
    u = jnp.exp(jnp.minimum(v, 20.0))        # clamp: tanh(softplus(20)) == 1 in f32
    num = u * (u + 2.0)
    den = num + 2.0
    r = pl.reciprocal(den, approx=True)
    r = r * (2.0 - den * r)                  # one Newton step -> ~f32 accuracy
    return v * (num * r)


def _sc_pff_high_kernel(x_ref, w1bd_ref, b1_ref, w2bd_ref, b2_ref,
                        dwn_ref, db_ref, pwbd_ref, pb_ref, o_ref):
    bb, T, d_in = x_ref.shape
    K = dwn_ref.shape[1]
    p = (K - 1) // 2

    # ---- assemble channels-first x2 (bb*d_in, T): per-sample 2D XLU transposes
    # (XLU is otherwise idle; avoids the wrapper-transpose HBM round trip).
    x2 = jnp.concatenate(
        [x_ref[b].astype(jnp.float32).T for b in range(bb)], axis=0)   # (bb*d_in, T)

    # ---- w_1 (1x1 conv): ONE block-diagonal MXU matmul, K = bb*d_in, N = T (lane-dense)
    h2 = jnp.dot(w1bd_ref[...], x2,
                 preferred_element_type=jnp.float32)                   # (bb*C, T)
    h2 = _mish(h2 + b1_ref[...])                                       # bias lane-bcast

    # ---- per-sample depthwise conv along T: K lane-rolls + edge masks, f32 acc
    dwn2 = dwn_ref[...]                                                # (bb*C, K)
    t_idx = jax.lax.broadcasted_iota(jnp.int32, (1, T), 1)
    acc2 = jnp.zeros(h2.shape, jnp.float32)
    for k in range(K):                                                 # K = 9, static unroll
        s = p - k
        wk = dwn2[:, k:k + 1]                                          # (bb*C, 1), lane-bcast
        if s == 0:
            tap = h2
        else:
            # NOTE: 's % T' relies on s, T being Python ints at trace time (so the
            # modulo of a negative shift is already non-negative); revisit if T ever
            # becomes dynamic.
            rolled = pltpu.roll(h2, shift=s % T, axis=1)               # XLU lane rotate
            valid = (t_idx >= s) & (t_idx < T + s)                     # zero the wrap-around
            tap = jnp.where(valid, rolled, 0.0)
        acc2 = acc2 + tap * wk
    acc2 = acc2 + db_ref[...]                                          # (bb*C, T)

    # ---- per-sample pointwise mix: ONE block-diagonal MXU matmul (per batch block)
    z2 = jnp.dot(pwbd_ref[0], acc2,
                 preferred_element_type=jnp.float32)                   # (bb*O, T)
    z2 = _mish(z2 + pb_ref[...])

    # ---- w_2 (1x1 conv) back to d_in: ONE block-diagonal MXU matmul
    out2 = jnp.dot(w2bd_ref[...], z2,
                   preferred_element_type=jnp.float32)                 # (bb*d_in, T)
    out2 = out2 + b2_ref[...]

    # ---- per-sample transpose back to (T, d_in), residual add, store in natural layout.
    # x is re-read here (rather than reusing a top-of-body load) to keep vreg pressure low.
    for b in range(bb):
        res = x_ref[b].astype(jnp.float32)                             # (T, d_in)
        o_ref[b] = (out2[b * d_in:(b + 1) * d_in, :].T + res).astype(o_ref.dtype)


def sc_positionwise_ff_high(x, w1, b1, w2, b2, d_w, d_g, d_b, p_w, p_g, p_b,
                            *, block_b=None):
    """x: (B, T, d_in); w1: (d_hid1, d_in); b1: (d_hid1,);
       w2: (d_in, d_hid2); b2: (d_in,);
       d_w: (B, in_ch, 1, K); d_g, d_b: (B, in_ch);
       p_w: (B, out_ch, in_ch, 1); p_g, p_b: (B, out_ch)."""
    B, T, d_in = x.shape
    d_hid1 = w1.shape[0]
    d_hid2 = w2.shape[1]
    K = d_w.shape[-1]
    in_ch = d_w.shape[1]
    out_ch = p_w.shape[1]
    # The torch module's einsums only make sense when these agree.
    assert p_w.shape[2] == in_ch and d_hid1 == in_ch and d_hid2 == in_ch
    assert in_ch == out_ch
    assert T >= K

    # per-generation batch block: dual-TC (v7x) -> split the batch across the two
    # TensorCores via the "parallel" grid axis; single-TC (v5e/v6e) -> one grid step.
    if block_b is None:
        try:
            kind = jax.devices()[0].device_kind.lower()
        except Exception:
            kind = ""
        block_b = max(1, B // 2) if "v7" in kind else B
    bb = 1
    for cand in range(min(block_b, B), 0, -1):
        if B % cand == 0:
            bb = cand
            break
    n_blk = B // bb
    C, O = in_ch, out_ch
    f32 = jnp.float32

    # hoisted weight-normalization of the sample-conditioned kernels (once, in XLA)
    dw = d_w[:, :, 0, :].astype(f32)                                   # (B, C, K)
    dwn = dw / jnp.maximum(
        jnp.sqrt(jnp.sum(dw * dw, axis=1, keepdims=True)), 1e-12) * d_g[:, :, None]
    pw = p_w[..., 0].astype(f32)                                       # (B, out_ch, in_ch)
    pwn = pw / jnp.maximum(
        jnp.sqrt(jnp.sum(pw * pw, axis=1, keepdims=True)), 1e-12) * p_g[:, :, None]
    pwt = jnp.transpose(pwn, (0, 2, 1))                                # per-sample mixing (o, c)

    # block-diagonal weight folding (batched tiny einsums -> single 2D MXU matmuls).
    eye = jnp.eye(bb, dtype=f32)
    w1bd = jnp.kron(eye, w1.astype(f32))                               # (bb*d_hid1, bb*d_in)
    w2bd = jnp.kron(eye, w2.astype(f32))                               # (bb*d_in, bb*d_hid2)
    pwt_blocks = pwt.reshape(n_blk, bb, O, C)
    pwbd = (pwt_blocks[:, :, :, None, :]
            * eye[None, :, None, :, None]).reshape(n_blk, bb * O, bb * C)

    # biases in flat channels-first form matching the kernel's working arrays
    b1bd = jnp.tile(b1.astype(f32), bb)[:, None]                       # (bb*d_hid1, 1)
    b2bd = jnp.tile(b2.astype(f32), bb)[:, None]                       # (bb*d_in, 1)
    dwn_flat = dwn.reshape(B * C, K)
    db_flat = d_b.astype(f32).reshape(B * C, 1)
    pb_flat = p_b.astype(f32).reshape(B * O, 1)

    return pl.pallas_call(
        _sc_pff_high_kernel,
        out_shape=jax.ShapeDtypeStruct((B, T, d_in), x.dtype),
        grid=(n_blk,),
        in_specs=[
            pl.BlockSpec((bb, T, d_in), lambda g: (g, 0, 0)),          # x (natural layout)
            pl.BlockSpec((bb * d_hid1, bb * d_in), lambda g: (0, 0)),  # W1 block-diag (grid-inv)
            pl.BlockSpec((bb * d_hid1, 1), lambda g: (0, 0)),          # b1
            pl.BlockSpec((bb * d_in, bb * d_hid2), lambda g: (0, 0)),  # W2 block-diag (grid-inv)
            pl.BlockSpec((bb * d_in, 1), lambda g: (0, 0)),            # b2
            pl.BlockSpec((bb * C, K), lambda g: (g, 0)),               # normalized depthwise w
            pl.BlockSpec((bb * C, 1), lambda g: (g, 0)),               # d_b
            pl.BlockSpec((1, bb * O, bb * C), lambda g: (g, 0, 0)),    # pointwise block-diag
            pl.BlockSpec((bb * O, 1), lambda g: (g, 0)),               # p_b
        ],
        out_specs=pl.BlockSpec((bb, T, d_in), lambda g: (g, 0, 0)),
        compiler_params=pltpu.CompilerParams(
            dimension_semantics=("parallel",)),                        # batch across TCs on v7x
    )(x, w1bd, b1bd, w2bd, b2bd, dwn_flat, db_flat, pwbd, pb_flat)


def _reference(x, w1, b1, w2, b2, d_w, d_g, d_b, p_w, p_g, p_b):
    """Pure-JAX mirror of the PyTorch forward (dropout = identity)."""
    hi = jax.lax.Precision.HIGHEST
    out = jnp.einsum('btc,hc->bht', x, w1, precision=hi) + b1[None, :, None]
    out = out * jnp.tanh(jax.nn.softplus(out))                         # Mish, (B, C, T)
    K = d_w.shape[-1]
    p = (K - 1) // 2
    dwn = d_w / jnp.maximum(jnp.linalg.norm(d_w, axis=1, keepdims=True), 1e-12)
    dwn = dwn * d_g[:, :, None, None]
    pwn = p_w / jnp.maximum(jnp.linalg.norm(p_w, axis=1, keepdims=True), 1e-12)
    pwn = pwn * p_g[:, :, None, None]
    xp = jnp.pad(out, ((0, 0), (0, 0), (p, p)))
    T = out.shape[-1]
    windows = jnp.stack([xp[:, :, k:k + T] for k in range(K)], axis=-1)  # (B,C,T,K)
    y = jnp.einsum('bctk,bcwk->bct', windows, dwn, precision=hi)
    y = y + d_b[:, :, None]
    y = jnp.einsum('bct,bco->bot', y, pwn[..., 0], precision=hi)
    y = y + p_b[:, :, None]
    y = y * jnp.tanh(jax.nn.softplus(y))
    y = jnp.einsum('bot,do->bdt', y, w2, precision=hi) + b2[None, :, None]
    return jnp.transpose(y, (0, 2, 1)) + x


if __name__ == "__main__":
    B, T, d_model = 8, 128, 32
    in_ch = out_ch = 8            # module default: in_ch = out_ch = 8
    d_hid1 = in_ch                # channels fed into the sample-conditioned convs
    d_hid2 = out_ch               # channels fed into w_2
    K = 9                         # module default: ker = 9

    key = jax.random.PRNGKey(0)
    keys = jax.random.split(key, 11)
    x = jax.random.normal(keys[0], (B, T, d_model), jnp.float32)
    w1 = jax.random.normal(keys[1], (d_hid1, d_model), jnp.float32) * 0.3
    b1 = jax.random.normal(keys[2], (d_hid1,), jnp.float32) * 0.1
    w2 = jax.random.normal(keys[3], (d_model, d_hid2), jnp.float32) * 0.3
    b2 = jax.random.normal(keys[4], (d_model,), jnp.float32) * 0.1
    d_w = jax.random.normal(keys[5], (B, in_ch, 1, K), jnp.float32)
    d_g = jax.random.normal(keys[6], (B, in_ch), jnp.float32)
    d_b = jax.random.normal(keys[7], (B, in_ch), jnp.float32) * 0.1
    p_w = jax.random.normal(keys[8], (B, out_ch, in_ch, 1), jnp.float32)
    p_g = jax.random.normal(keys[9], (B, out_ch), jnp.float32)
    p_b = jax.random.normal(keys[10], (B, out_ch), jnp.float32) * 0.1

    y = sc_positionwise_ff_high(x, w1, b1, w2, b2, d_w, d_g, d_b, p_w, p_g, p_b)
    y = jax.block_until_ready(y)

    y_ref = _reference(x, w1, b1, w2, b2, d_w, d_g, d_b, p_w, p_g, p_b)
    np.testing.assert_allclose(np.asarray(y), np.asarray(y_ref), rtol=2e-3, atol=2e-3)
    print("KERNEL_OK")
</pallas_src>

<mosaic_0001>
module attributes {stable_mosaic.version = 11 : i64} {
  func.func @_sc_pff_high_kernel(%arg0: i32, %arg1: memref<8x128x32xf32, #tpu.memory_space<vmem>>, %arg2: memref<64x256xf32, #tpu.memory_space<vmem>>, %arg3: memref<64x1xf32, #tpu.memory_space<vmem>>, %arg4: memref<256x64xf32, #tpu.memory_space<vmem>>, %arg5: memref<256x1xf32, #tpu.memory_space<vmem>>, %arg6: memref<64x9xf32, #tpu.memory_space<vmem>>, %arg7: memref<64x1xf32, #tpu.memory_space<vmem>>, %arg8: memref<1x64x64xf32, #tpu.memory_space<vmem>>, %arg9: memref<64x1xf32, #tpu.memory_space<vmem>>, %arg10: memref<8x128x32xf32, #tpu.memory_space<vmem>>) attributes {dimension_semantics = [#tpu.dimension_semantics<parallel>], iteration_bounds = array<i64: 1>, scalar_prefetch = 0 : i64, scratch_operands = 0 : i64, tpu.core_type = #tpu.core_type<tc>, window_params = [{transform_indices = @transform_0, window_bounds = array<i64: 8, 128, 32>}, {pipeline_mode = #tpu.pipeline_mode<synchronous>, transform_indices = @transform_1, window_bounds = array<i64: 64, 256>}, {pipeline_mode = #tpu.pipeline_mode<synchronous>, transform_indices = @transform_2, window_bounds = array<i64: 64, 1>}, {pipeline_mode = #tpu.pipeline_mode<synchronous>, transform_indices = @transform_3, window_bounds = array<i64: 256, 64>}, {pipeline_mode = #tpu.pipeline_mode<synchronous>, transform_indices = @transform_4, window_bounds = array<i64: 256, 1>}, {transform_indices = @transform_5, window_bounds = array<i64: 64, 9>}, {transform_indices = @transform_6, window_bounds = array<i64: 64, 1>}, {transform_indices = @transform_7, window_bounds = array<i64: 1, 64, 64>}, {transform_indices = @transform_8, window_bounds = array<i64: 64, 1>}, {transform_indices = @transform_9, window_bounds = array<i64: 8, 128, 32>}]} {
    %c0 = arith.constant 0 : index
    %c0_0 = arith.constant 0 : index
    %c0_1 = arith.constant 0 : index
    %0 = vector.load %arg1[%c0, %c0_0, %c0_1] : memref<8x128x32xf32, #tpu.memory_space<vmem>>, vector<1x128x32xf32>
    %1 = vector.shape_cast %0 : vector<1x128x32xf32> to vector<128x32xf32>
    %2 = tpu.transpose %1, [1, 0] : vector<128x32xf32> -> vector<32x128xf32>
    %c1 = arith.constant 1 : index
    %c0_2 = arith.constant 0 : index
    %c0_3 = arith.constant 0 : index
    %3 = vector.load %arg1[%c1, %c0_2, %c0_3] : memref<8x128x32xf32, #tpu.memory_space<vmem>>, vector<1x128x32xf32>
    %4 = vector.shape_cast %3 : vector<1x128x32xf32> to vector<128x32xf32>
    %5 = tpu.transpose %4, [1, 0] : vector<128x32xf32> -> vector<32x128xf32>
    %c2 = arith.constant 2 : index
    %c0_4 = arith.constant 0 : index
    %c0_5 = arith.constant 0 : index
    %6 = vector.load %arg1[%c2, %c0_4, %c0_5] : memref<8x128x32xf32, #tpu.memory_space<vmem>>, vector<1x128x32xf32>
    %7 = vector.shape_cast %6 : vector<1x128x32xf32> to vector<128x32xf32>
    %8 = tpu.transpose %7, [1, 0] : vector<128x32xf32> -> vector<32x128xf32>
    %c3 = arith.constant 3 : index
    %c0_6 = arith.constant 0 : index
    %c0_7 = arith.constant 0 : index
    %9 = vector.load %arg1[%c3, %c0_6, %c0_7] : memref<8x128x32xf32, #tpu.memory_space<vmem>>, vector<1x128x32xf32>
    %10 = vector.shape_cast %9 : vector<1x128x32xf32> to vector<128x32xf32>
    %11 = tpu.transpose %10, [1, 0] : vector<128x32xf32> -> vector<32x128xf32>
    %c4 = arith.constant 4 : index
    %c0_8 = arith.constant 0 : index
    %c0_9 = arith.constant 0 : index
    %12 = vector.load %arg1[%c4, %c0_8, %c0_9] : memref<8x128x32xf32, #tpu.memory_space<vmem>>, vector<1x128x32xf32>
    %13 = vector.shape_cast %12 : vector<1x128x32xf32> to vector<128x32xf32>
    %14 = tpu.transpose %13, [1, 0] : vector<128x32xf32> -> vector<32x128xf32>
    %c5 = arith.constant 5 : index
    %c0_10 = arith.constant 0 : index
    %c0_11 = arith.constant 0 : index
    %15 = vector.load %arg1[%c5, %c0_10, %c0_11] : memref<8x128x32xf32, #tpu.memory_space<vmem>>, vector<1x128x32xf32>
    %16 = vector.shape_cast %15 : vector<1x128x32xf32> to vector<128x32xf32>
    %17 = tpu.transpose %16, [1, 0] : vector<128x32xf32> -> vector<32x128xf32>
    %c6 = arith.constant 6 : index
    %c0_12 = arith.constant 0 : index
    %c0_13 = arith.constant 0 : index
    %18 = vector.load %arg1[%c6, %c0_12, %c0_13] : memref<8x128x32xf32, #tpu.memory_space<vmem>>, vector<1x128x32xf32>
    %19 = vector.shape_cast %18 : vector<1x128x32xf32> to vector<128x32xf32>
    %20 = tpu.transpose %19, [1, 0] : vector<128x32xf32> -> vector<32x128xf32>
    %c7 = arith.constant 7 : index
    %c0_14 = arith.constant 0 : index
    %c0_15 = arith.constant 0 : index
    %21 = vector.load %arg1[%c7, %c0_14, %c0_15] : memref<8x128x32xf32, #tpu.memory_space<vmem>>, vector<1x128x32xf32>
    %22 = vector.shape_cast %21 : vector<1x128x32xf32> to vector<128x32xf32>
    %23 = tpu.transpose %22, [1, 0] : vector<128x32xf32> -> vector<32x128xf32>
    %24 = tpu.concatenate %2, %5, %8, %11, %14, %17, %20, %23 in 0 : vector<32x128xf32>, vector<32x128xf32>, vector<32x128xf32>, vector<32x128xf32>, vector<32x128xf32>, vector<32x128xf32>, vector<32x128xf32>, vector<32x128xf32> -> vector<256x128xf32>
    %c0_16 = arith.constant 0 : index
    %c0_17 = arith.constant 0 : index
    %25 = vector.load %arg2[%c0_16, %c0_17] : memref<64x256xf32, #tpu.memory_space<vmem>>, vector<64x256xf32>
    %cst = arith.constant dense<0.000000e+00> : vector<64x128xf32>
    %26 = tpu.matmul %25, %24, %cst {dimension_numbers = #tpu.dot_dimension_numbers<[1], [0], [0], [1], [0, 0, 1, 1], [], []>} : vector<64x256xf32>, vector<256x128xf32>, vector<64x128xf32> -> vector<64x128xf32>
    %c0_18 = arith.constant 0 : index
    %c0_19 = arith.constant 0 : index
    %27 = vector.load %arg3[%c0_18, %c0_19] : memref<64x1xf32, #tpu.memory_space<vmem>>, vector<64x1xf32>
    %28 = vector.broadcast %27 : vector<64x1xf32> to vector<64x128xf32>
    %29 = arith.addf %26, %28 : vector<64x128xf32>
    %cst_20 = arith.constant 2.000000e+01 : f32
    %30 = vector.broadcast %cst_20 : f32 to vector<64x128xf32>
    %31 = arith.minimumf %29, %30 : vector<64x128xf32>
    %32 = math.exp %31 : vector<64x128xf32>
    %cst_21 = arith.constant 2.000000e+00 : f32
    %33 = vector.broadcast %cst_21 : f32 to vector<64x128xf32>
    %34 = arith.addf %32, %33 : vector<64x128xf32>
    %35 = arith.mulf %32, %34 : vector<64x128xf32>
    %cst_22 = arith.constant 2.000000e+00 : f32
    %36 = vector.broadcast %cst_22 : f32 to vector<64x128xf32>
    %37 = arith.addf %35, %36 : vector<64x128xf32>
    %38 = tpu.reciprocal %37 {approx = true} : vector<64x128xf32> -> vector<64x128xf32>
    %39 = arith.mulf %37, %38 : vector<64x128xf32>
    %cst_23 = arith.constant 2.000000e+00 : f32
    %40 = vector.broadcast %cst_23 : f32 to vector<64x128xf32>
    %41 = arith.subf %40, %39 : vector<64x128xf32>
    %42 = arith.mulf %38, %41 : vector<64x128xf32>
    %43 = arith.mulf %35, %42 : vector<64x128xf32>
    %44 = arith.mulf %29, %43 : vector<64x128xf32>
    %c0_24 = arith.constant 0 : index
    %c0_25 = arith.constant 0 : index
    %45 = vector.load %arg6[%c0_24, %c0_25] : memref<64x9xf32, #tpu.memory_space<vmem>>, vector<64x9xf32>
    %46 = tpu.iota {dimensions = array<i32: 1>} : vector<1x128xi32>
    %cst_26 = arith.constant 0.000000e+00 : f32
    %47 = vector.broadcast %cst_26 : f32 to vector<64x128xf32>
    %48 = vector.extract_strided_slice %45 {offsets = [0, 0], sizes = [64, 1], strides = [1, 1]} : vector<64x9xf32> to vector<64x1xf32>
    %c4_i32 = arith.constant 4 : i32
    %49 = tpu.dynamic_rotate %44 by %c4_i32 dim 1 : vector<64x128xf32>, i32 -> vector<64x128xf32>
    %c4_i32_27 = arith.constant 4 : i32
    %50 = vector.broadcast %c4_i32_27 : i32 to vector<1x128xi32>
    %51 = arith.cmpi sge, %46, %50 : vector<1x128xi32>
    %c132_i32 = arith.constant 132 : i32
    %52 = vector.broadcast %c132_i32 : i32 to vector<1x128xi32>
    %53 = arith.cmpi slt, %46, %52 : vector<1x128xi32>
    %54 = arith.andi %51, %53 : vector<1x128xi1>
    %cst_28 = arith.constant 0.000000e+00 : f32
    %55 = vector.shape_cast %54 : vector<1x128xi1> to vector<1x128xi1>
    %56 = vector.broadcast %55 : vector<1x128xi1> to vector<64x128xi1>
    %57 = vector.broadcast %cst_28 : f32 to vector<64x128xf32>
    %58 = arith.select %56, %49, %57 : vector<64x128xi1>, vector<64x128xf32>
    %59 = vector.broadcast %48 : vector<64x1xf32> to vector<64x128xf32>
    %60 = arith.mulf %58, %59 : vector<64x128xf32>
    %61 = arith.addf %47, %60 : vector<64x128xf32>
    %62 = vector.extract_strided_slice %45 {offsets = [0, 1], sizes = [64, 1], strides = [1, 1]} : vector<64x9xf32> to vector<64x1xf32>
    %c3_i32 = arith.constant 3 : i32
    %63 = tpu.dynamic_rotate %44 by %c3_i32 dim 1 : vector<64x128xf32>, i32 -> vector<64x128xf32>
    %c3_i32_29 = arith.constant 3 : i32
    %64 = vector.broadcast %c3_i32_29 : i32 to vector<1x128xi32>
    %65 = arith.cmpi sge, %46, %64 : vector<1x128xi32>
    %c131_i32 = arith.constant 131 : i32
    %66 = vector.broadcast %c131_i32 : i32 to vector<1x128xi32>
    %67 = arith.cmpi slt, %46, %66 : vector<1x128xi32>
    %68 = arith.andi %65, %67 : vector<1x128xi1>
    %cst_30 = arith.constant 0.000000e+00 : f32
    %69 = vector.shape_cast %68 : vector<1x128xi1> to vector<1x128xi1>
    %70 = vector.broadcast %69 : vector<1x128xi1> to vector<64x128xi1>
    %71 = vector.broadcast %cst_30 : f32 to vector<64x128xf32>
    %72 = arith.select %70, %63, %71 : vector<64x128xi1>, vector<64x128xf32>
    %73 = vector.broadcast %62 : vector<64x1xf32> to vector<64x128xf32>
    %74 = arith.mulf %72, %73 : vector<64x128xf32>
    %75 = arith.addf %61, %74 : vector<64x128xf32>
    %76 = vector.extract_strided_slice %45 {offsets = [0, 2], sizes = [64, 1], strides = [1, 1]} : vector<64x9xf32> to vector<64x1xf32>
    %c2_i32 = arith.constant 2 : i32
    %77 = tpu.dynamic_rotate %44 by %c2_i32 dim 1 : vector<64x128xf32>, i32 -> vector<64x128xf32>
    %c2_i32_31 = arith.constant 2 : i32
    %78 = vector.broadcast %c2_i32_31 : i32 to vector<1x128xi32>
    %79 = arith.cmpi sge, %46, %78 : vector<1x128xi32>
    %c130_i32 = arith.constant 130 : i32
    %80 = vector.broadcast %c130_i32 : i32 to vector<1x128xi32>
    %81 = arith.cmpi slt, %46, %80 : vector<1x128xi32>
    %82 = arith.andi %79, %81 : vector<1x128xi1>
    %cst_32 = arith.constant 0.000000e+00 : f32
    %83 = vector.shape_cast %82 : vector<1x128xi1> to vector<1x128xi1>
    %84 = vector.broadcast %83 : vector<1x128xi1> to vector<64x128xi1>
    %85 = vector.broadcast %cst_32 : f32 to vector<64x128xf32>
    %86 = arith.select %84, %77, %85 : vector<64x128xi1>, vector<64x128xf32>
    %87 = vector.broadcast %76 : vector<64x1xf32> to vector<64x128xf32>
    %88 = arith.mulf %86, %87 : vector<64x128xf32>
    %89 = arith.addf %75, %88 : vector<64x128xf32>
    %90 = vector.extract_strided_slice %45 {offsets = [0, 3], sizes = [64, 1], strides = [1, 1]} : vector<64x9xf32> to vector<64x1xf32>
    %c1_i32 = arith.constant 1 : i32
    %91 = tpu.dynamic_rotate %44 by %c1_i32 dim 1 : vector<64x128xf32>, i32 -> vector<64x128xf32>
    %c1_i32_33 = arith.constant 1 : i32
    %92 = vector.broadcast %c1_i32_33 : i32 to vector<1x128xi32>
    %93 = arith.cmpi sge, %46, %92 : vector<1x128xi32>
    %c129_i32 = arith.constant 129 : i32
    %94 = vector.broadcast %c129_i32 : i32 to vector<1x128xi32>
    %95 = arith.cmpi slt, %46, %94 : vector<1x128xi32>
    %96 = arith.andi %93, %95 : vector<1x128xi1>
    %cst_34 = arith.constant 0.000000e+00 : f32
    %97 = vector.shape_cast %96 : vector<1x128xi1> to vector<1x128xi1>
    %98 = vector.broadcast %97 : vector<1x128xi1> to vector<64x128xi1>
    %99 = vector.broadcast %cst_34 : f32 to vector<64x128xf32>
    %100 = arith.select %98, %91, %99 : vector<64x128xi1>, vector<64x128xf32>
    %101 = vector.broadcast %90 : vector<64x1xf32> to vector<64x128xf32>
    %102 = arith.mulf %100, %101 : vector<64x128xf32>
    %103 = arith.addf %89, %102 : vector<64x128xf32>
    %104 = vector.extract_strided_slice %45 {offsets = [0, 4], sizes = [64, 1], strides = [1, 1]} : vector<64x9xf32> to vector<64x1xf32>
    %105 = vector.broadcast %104 : vector<64x1xf32> to vector<64x128xf32>
    %106 = arith.mulf %44, %105 : vector<64x128xf32>
    %107 = arith.addf %103, %106 : vector<64x128xf32>
    %108 = vector.extract_strided_slice %45 {offsets = [0, 5], sizes = [64, 1], strides = [1, 1]} : vector<64x9xf32> to vector<64x1xf32>
    %c127_i32 = arith.constant 127 : i32
    %109 = tpu.dynamic_rotate %44 by %c127_i32 dim 1 : vector<64x128xf32>, i32 -> vector<64x128xf32>
    %c-1_i32 = arith.constant -1 : i32
    %110 = vector.broadcast %c-1_i32 : i32 to vector<1x128xi32>
    %111 = arith.cmpi sge, %46, %110 : vector<1x128xi32>
    %c127_i32_35 = arith.constant 127 : i32
    %112 = vector.broadcast %c127_i32_35 : i32 to vector<1x128xi32>
    %113 = arith.cmpi slt, %46, %112 : vector<1x128xi32>
    %114 = arith.andi %111, %113 : vector<1x128xi1>
    %cst_36 = arith.constant 0.000000e+00 : f32
    %115 = vector.shape_cast %114 : vector<1x128xi1> to vector<1x128xi1>
    %116 = vector.broadcast %115 : vector<1x128xi1> to vector<64x128xi1>
    %117 = vector.broadcast %cst_36 : f32 to vector<64x128xf32>
    %118 = arith.select %116, %109, %117 : vector<64x128xi1>, vector<64x128xf32>
    %119 = vector.broadcast %108 : vector<64x1xf32> to vector<64x128xf32>
    %120 = arith.mulf %118, %119 : vector<64x128xf32>
    %121 = arith.addf %107, %120 : vector<64x128xf32>
    %122 = vector.extract_strided_slice %45 {offsets = [0, 6], sizes = [64, 1], strides = [1, 1]} : vector<64x9xf32> to vector<64x1xf32>
    %c126_i32 = arith.constant 126 : i32
    %123 = tpu.dynamic_rotate %44 by %c126_i32 dim 1 : vector<64x128xf32>, i32 -> vector<64x128xf32>
    %c-2_i32 = arith.constant -2 : i32
    %124 = vector.broadcast %c-2_i32 : i32 to vector<1x128xi32>
    %125 = arith.cmpi sge, %46, %124 : vector<1x128xi32>
    %c126_i32_37 = arith.constant 126 : i32
    %126 = vector.broadcast %c126_i32_37 : i32 to vector<1x128xi32>
    %127 = arith.cmpi slt, %46, %126 : vector<1x128xi32>
    %128 = arith.andi %125, %127 : vector<1x128xi1>
    %cst_38 = arith.constant 0.000000e+00 : f32
    %129 = vector.shape_cast %128 : vector<1x128xi1> to vector<1x128xi1>
    %130 = vector.broadcast %129 : vector<1x128xi1> to vector<64x128xi1>
    %131 = vector.broadcast %cst_38 : f32 to vector<64x128xf32>
    %132 = arith.select %130, %123, %131 : vector<64x128xi1>, vector<64x128xf32>
    %133 = vector.broadcast %122 : vector<64x1xf32> to vector<64x128xf32>
    %134 = arith.mulf %132, %133 : vector<64x128xf32>
    %135 = arith.addf %121, %134 : vector<64x128xf32>
    %136 = vector.extract_strided_slice %45 {offsets = [0, 7], sizes = [64, 1], strides = [1, 1]} : vector<64x9xf32> to vector<64x1xf32>
    %c125_i32 = arith.constant 125 : i32
    %137 = tpu.dynamic_rotate %44 by %c125_i32 dim 1 : vector<64x128xf32>, i32 -> vector<64x128xf32>
    %c-3_i32 = arith.constant -3 : i32
    %138 = vector.broadcast %c-3_i32 : i32 to vector<1x128xi32>
    %139 = arith.cmpi sge, %46, %138 : vector<1x128xi32>
    %c125_i32_39 = arith.constant 125 : i32
    %140 = vector.broadcast %c125_i32_39 : i32 to vector<1x128xi32>
    %141 = arith.cmpi slt, %46, %140 : vector<1x128xi32>
    %142 = arith.andi %139, %141 : vector<1x128xi1>
    %cst_40 = arith.constant 0.000000e+00 : f32
    %143 = vector.shape_cast %142 : vector<1x128xi1> to vector<1x128xi1>
    %144 = vector.broadcast %143 : vector<1x128xi1> to vector<64x128xi1>
    %145 = vector.broadcast %cst_40 : f32 to vector<64x128xf32>
    %146 = arith.select %144, %137, %145 : vector<64x128xi1>, vector<64x128xf32>
    %147 = vector.broadcast %136 : vector<64x1xf32> to vector<64x128xf32>
    %148 = arith.mulf %146, %147 : vector<64x128xf32>
    %149 = arith.addf %135, %148 : vector<64x128xf32>
    %150 = vector.extract_strided_slice %45 {offsets = [0, 8], sizes = [64, 1], strides = [1, 1]} : vector<64x9xf32> to vector<64x1xf32>
    %c124_i32 = arith.constant 124 : i32
    %151 = tpu.dynamic_rotate %44 by %c124_i32 dim 1 : vector<64x128xf32>, i32 -> vector<64x128xf32>
    %c-4_i32 = arith.constant -4 : i32
    %152 = vector.broadcast %c-4_i32 : i32 to vector<1x128xi32>
    %153 = arith.cmpi sge, %46, %152 : vector<1x128xi32>
    %c124_i32_41 = arith.constant 124 : i32
    %154 = vector.broadcast %c124_i32_41 : i32 to vector<1x128xi32>
    %155 = arith.cmpi slt, %46, %154 : vector<1x128xi32>
    %156 = arith.andi %153, %155 : vector<1x128xi1>
    %cst_42 = arith.constant 0.000000e+00 : f32
    %157 = vector.shape_cast %156 : vector<1x128xi1> to vector<1x128xi1>
    %158 = vector.broadcast %157 : vector<1x128xi1> to vector<64x128xi1>
    %159 = vector.broadcast %cst_42 : f32 to vector<64x128xf32>
    %160 = arith.select %158, %151, %159 : vector<64x128xi1>, vector<64x128xf32>
    %161 = vector.broadcast %150 : vector<64x1xf32> to vector<64x128xf32>
    %162 = arith.mulf %160, %161 : vector<64x128xf32>
    %163 = arith.addf %149, %162 : vector<64x128xf32>
    %c0_43 = arith.constant 0 : index
    %c0_44 = arith.constant 0 : index
    %164 = vector.load %arg7[%c0_43, %c0_44] : memref<64x1xf32, #tpu.memory_space<vmem>>, vector<64x1xf32>
    %165 = vector.broadcast %164 : vector<64x1xf32> to vector<64x128xf32>
    %166 = arith.addf %163, %165 : vector<64x128xf32>
    %c0_45 = arith.constant 0 : index
    %c0_46 = arith.constant 0 : index
    %c0_47 = arith.constant 0 : index
    %167 = vector.load %arg8[%c0_45, %c0_46, %c0_47] : memref<1x64x64xf32, #tpu.memory_space<vmem>>, vector<1x64x64xf32>
    %168 = vector.shape_cast %167 : vector<1x64x64xf32> to vector<64x64xf32>
    %cst_48 = arith.constant dense<0.000000e+00> : vector<64x128xf32>
    %169 = tpu.matmul %168, %166, %cst_48 {dimension_numbers = #tpu.dot_dimension_numbers<[1], [0], [0], [1], [0, 0, 1, 1], [], []>} : vector<64x64xf32>, vector<64x128xf32>, vector<64x128xf32> -> vector<64x128xf32>
    %c0_49 = arith.constant 0 : index
    %c0_50 = arith.constant 0 : index
    %170 = vector.load %arg9[%c0_49, %c0_50] : memref<64x1xf32, #tpu.memory_space<vmem>>, vector<64x1xf32>
    %171 = vector.broadcast %170 : vector<64x1xf32> to vector<64x128xf32>
    %172 = arith.addf %169, %171 : vector<64x128xf32>
    %cst_51 = arith.constant 2.000000e+01 : f32
    %173 = vector.broadcast %cst_51 : f32 to vector<64x128xf32>
    %174 = arith.minimumf %172, %173 : vector<64x128xf32>
    %175 = math.exp %174 : vector<64x128xf32>
    %cst_52 = arith.constant 2.000000e+00 : f32
    %176 = vector.broadcast %cst_52 : f32 to vector<64x128xf32>
    %177 = arith.addf %175, %176 : vector<64x128xf32>
    %178 = arith.mulf %175, %177 : vector<64x128xf32>
    %cst_53 = arith.constant 2.000000e+00 : f32
    %179 = vector.broadcast %cst_53 : f32 to vector<64x128xf32>
    %180 = arith.addf %178, %179 : vector<64x128xf32>
    %181 = tpu.reciprocal %180 {approx = true} : vector<64x128xf32> -> vector<64x128xf32>
    %182 = arith.mulf %180, %181 : vector<64x128xf32>
    %cst_54 = arith.constant 2.000000e+00 : f32
    %183 = vector.broadcast %cst_54 : f32 to vector<64x128xf32>
    %184 = arith.subf %183, %182 : vector<64x128xf32>
    %185 = arith.mulf %181, %184 : vector<64x128xf32>
    %186 = arith.mulf %178, %185 : vector<64x128xf32>
    %187 = arith.mulf %172, %186 : vector<64x128xf32>
    %c0_55 = arith.constant 0 : index
    %c0_56 = arith.constant 0 : index
    %188 = vector.load %arg4[%c0_55, %c0_56] : memref<256x64xf32, #tpu.memory_space<vmem>>, vector<256x64xf32>
    %cst_57 = arith.constant dense<0.000000e+00> : vector<256x128xf32>
    %189 = tpu.matmul %188, %187, %cst_57 {dimension_numbers = #tpu.dot_dimension_numbers<[1], [0], [0], [1], [0, 0, 1, 1], [], []>} : vector<256x64xf32>, vector<64x128xf32>, vector<256x128xf32> -> vector<256x128xf32>
    %c0_58 = arith.constant 0 : index
    %c0_59 = arith.constant 0 : index
    %190 = vector.load %arg5[%c0_58, %c0_59] : memref<256x1xf32, #tpu.memory_space<vmem>>, vector<256x1xf32>
    %191 = vector.broadcast %190 : vector<256x1xf32> to vector<256x128xf32>
    %192 = arith.addf %189, %191 : vector<256x128xf32>
    %c0_60 = arith.constant 0 : index
    %c0_61 = arith.constant 0 : index
    %c0_62 = arith.constant 0 : index
    %193 = vector.load %arg1[%c0_60, %c0_61, %c0_62] : memref<8x128x32xf32, #tpu.memory_space<vmem>>, vector<1x128x32xf32>
    %194 = vector.shape_cast %193 : vector<1x128x32xf32> to vector<128x32xf32>
    %195 = vector.extract_strided_slice %192 {offsets = [0, 0], sizes = [32, 128], strides = [1, 1]} : vector<256x128xf32> to vector<32x128xf32>
    %196 = tpu.transpose %195, [1, 0] : vector<32x128xf32> -> vector<128x32xf32>
    %197 = arith.addf %196, %194 : vector<128x32xf32>
    %c0_63 = arith.constant 0 : index
    %c0_64 = arith.constant 0 : index
    %c0_65 = arith.constant 0 : index
    %198 = vector.load %arg10[%c0_63, %c0_64, %c0_65] : memref<8x128x32xf32, #tpu.memory_space<vmem>>, vector<1x128x32xf32>
    %199 = vector.shape_cast %198 : vector<1x128x32xf32> to vector<128x32xf32>
    %200 = vector.shape_cast %197 : vector<128x32xf32> to vector<1x128x32xf32>
    tpu.vector_store %arg10[%c0_63, %c0_64, %c0_65], %200 {strides = array<i32>} : memref<8x128x32xf32, #tpu.memory_space<vmem>>, vector<1x128x32xf32>,
    %c1_66 = arith.constant 1 : index
    %c0_67 = arith.constant 0 : index
    %c0_68 = arith.constant 0 : index
    %201 = vector.load %arg1[%c1_66, %c0_67, %c0_68] : memref<8x128x32xf32, #tpu.memory_space<vmem>>, vector<1x128x32xf32>
    %202 = vector.shape_cast %201 : vector<1x128x32xf32> to vector<128x32xf32>
    %203 = vector.extract_strided_slice %192 {offsets = [32, 0], sizes = [32, 128], strides = [1, 1]} : vector<256x128xf32> to vector<32x128xf32>
    %204 = tpu.transpose %203, [1, 0] : vector<32x128xf32> -> vector<128x32xf32>
    %205 = arith.addf %204, %202 : vector<128x32xf32>
    %c1_69 = arith.constant 1 : index
    %c0_70 = arith.constant 0 : index
    %c0_71 = arith.constant 0 : index
    %206 = vector.load %arg10[%c1_69, %c0_70, %c0_71] : memref<8x128x32xf32, #tpu.memory_space<vmem>>, vector<1x128x32xf32>
    %207 = vector.shape_cast %206 : vector<1x128x32xf32> to vector<128x32xf32>
    %208 = vector.shape_cast %205 : vector<128x32xf32> to vector<1x128x32xf32>
    tpu.vector_store %arg10[%c1_69, %c0_70, %c0_71], %208 {strides = array<i32>} : memref<8x128x32xf32, #tpu.memory_space<vmem>>, vector<1x128x32xf32>,
    %c2_72 = arith.constant 2 : index
    %c0_73 = arith.constant 0 : index
    %c0_74 = arith.constant 0 : index
    %209 = vector.load %arg1[%c2_72, %c0_73, %c0_74] : memref<8x128x32xf32, #tpu.memory_space<vmem>>, vector<1x128x32xf32>
    %210 = vector.shape_cast %209 : vector<1x128x32xf32> to vector<128x32xf32>
    %211 = vector.extract_strided_slice %192 {offsets = [64, 0], sizes = [32, 128], strides = [1, 1]} : vector<256x128xf32> to vector<32x128xf32>
    %212 = tpu.transpose %211, [1, 0] : vector<32x128xf32> -> vector<128x32xf32>
    %213 = arith.addf %212, %210 : vector<128x32xf32>
    %c2_75 = arith.constant 2 : index
    %c0_76 = arith.constant 0 : index
    %c0_77 = arith.constant 0 : index
    %214 = vector.load %arg10[%c2_75, %c0_76, %c0_77] : memref<8x128x32xf32, #tpu.memory_space<vmem>>, vector<1x128x32xf32>
    %215 = vector.shape_cast %214 : vector<1x128x32xf32> to vector<128x32xf32>
    %216 = vector.shape_cast %213 : vector<128x32xf32> to vector<1x128x32xf32>
    tpu.vector_store %arg10[%c2_75, %c0_76, %c0_77], %216 {strides = array<i32>} : memref<8x128x32xf32, #tpu.memory_space<vmem>>, vector<1x128x32xf32>,
    %c3_78 = arith.constant 3 : index
    %c0_79 = arith.constant 0 : index
    %c0_80 = arith.constant 0 : index
    %217 = vector.load %arg1[%c3_78, %c0_79, %c0_80] : memref<8x128x32xf32, #tpu.memory_space<vmem>>, vector<1x128x32xf32>
    %218 = vector.shape_cast %217 : vector<1x128x32xf32> to vector<128x32xf32>
    %219 = vector.extract_strided_slice %192 {offsets = [96, 0], sizes = [32, 128], strides = [1, 1]} : vector<256x128xf32> to vector<32x128xf32>
    %220 = tpu.transpose %219, [1, 0] : vector<32x128xf32> -> vector<128x32xf32>
    %221 = arith.addf %220, %218 : vector<128x32xf32>
    %c3_81 = arith.constant 3 : index
    %c0_82 = arith.constant 0 : index
    %c0_83 = arith.constant 0 : index
    %222 = vector.load %arg10[%c3_81, %c0_82, %c0_83] : memref<8x128x32xf32, #tpu.memory_space<vmem>>, vector<1x128x32xf32>
    %223 = vector.shape_cast %222 : vector<1x128x32xf32> to vector<128x32xf32>
    %224 = vector.shape_cast %221 : vector<128x32xf32> to vector<1x128x32xf32>
    tpu.vector_store %arg10[%c3_81, %c0_82, %c0_83], %224 {strides = array<i32>} : memref<8x128x32xf32, #tpu.memory_space<vmem>>, vector<1x128x32xf32>,
    %c4_84 = arith.constant 4 : index
    %c0_85 = arith.constant 0 : index
    %c0_86 = arith.constant 0 : index
    %225 = vector.load %arg1[%c4_84, %c0_85, %c0_86] : memref<8x128x32xf32, #tpu.memory_space<vmem>>, vector<1x128x32xf32>
    %226 = vector.shape_cast %225 : vector<1x128x32xf32> to vector<128x32xf32>
    %227 = vector.extract_strided_slice %192 {offsets = [128, 0], sizes = [32, 128], strides = [1, 1]} : vector<256x128xf32> to vector<32x128xf32>
    %228 = tpu.transpose %227, [1, 0] : vector<32x128xf32> -> vector<128x32xf32>
    %229 = arith.addf %228, %226 : vector<128x32xf32>
    %c4_87 = arith.constant 4 : index
    %c0_88 = arith.constant 0 : index
    %c0_89 = arith.constant 0 : index
    %230 = vector.load %arg10[%c4_87, %c0_88, %c0_89] : memref<8x128x32xf32, #tpu.memory_space<vmem>>, vector<1x128x32xf32>
    %231 = vector.shape_cast %230 : vector<1x128x32xf32> to vector<128x32xf32>
    %232 = vector.shape_cast %229 : vector<128x32xf32> to vector<1x128x32xf32>
    tpu.vector_store %arg10[%c4_87, %c0_88, %c0_89], %232 {strides = array<i32>} : memref<8x128x32xf32, #tpu.memory_space<vmem>>, vector<1x128x32xf32>,
    %c5_90 = arith.constant 5 : index
    %c0_91 = arith.constant 0 : index
    %c0_92 = arith.constant 0 : index
    %233 = vector.load %arg1[%c5_90, %c0_91, %c0_92] : memref<8x128x32xf32, #tpu.memory_space<vmem>>, vector<1x128x32xf32>
    %234 = vector.shape_cast %233 : vector<1x128x32xf32> to vector<128x32xf32>
    %235 = vector.extract_strided_slice %192 {offsets = [160, 0], sizes = [32, 128], strides = [1, 1]} : vector<256x128xf32> to vector<32x128xf32>
    %236 = tpu.transpose %235, [1, 0] : vector<32x128xf32> -> vector<128x32xf32>
    %237 = arith.addf %236, %234 : vector<128x32xf32>
    %c5_93 = arith.constant 5 : index
    %c0_94 = arith.constant 0 : index
    %c0_95 = arith.constant 0 : index
    %238 = vector.load %arg10[%c5_93, %c0_94, %c0_95] : memref<8x128x32xf32, #tpu.memory_space<vmem>>, vector<1x128x32xf32>
    %239 = vector.shape_cast %238 : vector<1x128x32xf32> to vector<128x32xf32>
    %240 = vector.shape_cast %237 : vector<128x32xf32> to vector<1x128x32xf32>
    tpu.vector_store %arg10[%c5_93, %c0_94, %c0_95], %240 {strides = array<i32>} : memref<8x128x32xf32, #tpu.memory_space<vmem>>, vector<1x128x32xf32>,
    %c6_96 = arith.constant 6 : index
    %c0_97 = arith.constant 0 : index
    %c0_98 = arith.constant 0 : index
    %241 = vector.load %arg1[%c6_96, %c0_97, %c0_98] : memref<8x128x32xf32, #tpu.memory_space<vmem>>, vector<1x128x32xf32>
    %242 = vector.shape_cast %241 : vector<1x128x32xf32> to vector<128x32xf32>
    %243 = vector.extract_strided_slice %192 {offsets = [192, 0], sizes = [32, 128], strides = [1, 1]} : vector<256x128xf32> to vector<32x128xf32>
    %244 = tpu.transpose %243, [1, 0] : vector<32x128xf32> -> vector<128x32xf32>
    %245 = arith.addf %244, %242 : vector<128x32xf32>
    %c6_99 = arith.constant 6 : index
    %c0_100 = arith.constant 0 : index
    %c0_101 = arith.constant 0 : index
    %246 = vector.load %arg10[%c6_99, %c0_100, %c0_101] : memref<8x128x32xf32, #tpu.memory_space<vmem>>, vector<1x128x32xf32>
    %247 = vector.shape_cast %246 : vector<1x128x32xf32> to vector<128x32xf32>
    %248 = vector.shape_cast %245 : vector<128x32xf32> to vector<1x128x32xf32>
    tpu.vector_store %arg10[%c6_99, %c0_100, %c0_101], %248 {strides = array<i32>} : memref<8x128x32xf32, #tpu.memory_space<vmem>>, vector<1x128x32xf32>,
    %c7_102 = arith.constant 7 : index
    %c0_103 = arith.constant 0 : index
    %c0_104 = arith.constant 0 : index
    %249 = vector.load %arg1[%c7_102, %c0_103, %c0_104] : memref<8x128x32xf32, #tpu.memory_space<vmem>>, vector<1x128x32xf32>
    %250 = vector.shape_cast %249 : vector<1x128x32xf32> to vector<128x32xf32>
    %251 = vector.extract_strided_slice %192 {offsets = [224, 0], sizes = [32, 128], strides = [1, 1]} : vector<256x128xf32> to vector<32x128xf32>
    %252 = tpu.transpose %251, [1, 0] : vector<32x128xf32> -> vector<128x32xf32>
    %253 = arith.addf %252, %250 : vector<128x32xf32>
    %c7_105 = arith.constant 7 : index
    %c0_106 = arith.constant 0 : index
    %c0_107 = arith.constant 0 : index
    %254 = vector.load %arg10[%c7_105, %c0_106, %c0_107] : memref<8x128x32xf32, #tpu.memory_space<vmem>>, vector<1x128x32xf32>
    %255 = vector.shape_cast %254 : vector<1x128x32xf32> to vector<128x32xf32>
    %256 = vector.shape_cast %253 : vector<128x32xf32> to vector<1x128x32xf32>
    tpu.vector_store %arg10[%c7_105, %c0_106, %c0_107], %256 {strides = array<i32>} : memref<8x128x32xf32, #tpu.memory_space<vmem>>, vector<1x128x32xf32>,
    return
  }
  func.func @transform_0(%arg0: i32) -> (i32, i32, i32) {
    %c0_i32 = arith.constant 0 : i32
    %c0_i32_0 = arith.constant 0 : i32
    %c0_i32_1 = arith.constant 0 : i32
    return %arg0, %c0_i32, %c0_i32_0 : i32, i32, i32
  }
  func.func @transform_1(%arg0: i32) -> (i32, i32) {
    %c0_i32 = arith.constant 0 : i32
    %c0_i32_0 = arith.constant 0 : i32
    %c0_i32_1 = arith.constant 0 : i32
    return %c0_i32, %c0_i32_0 : i32, i32
  }
  func.func @transform_2(%arg0: i32) -> (i32, i32) {
    %c0_i32 = arith.constant 0 : i32
    %c0_i32_0 = arith.constant 0 : i32
    %c0_i32_1 = arith.constant 0 : i32
    return %c0_i32, %c0_i32_0 : i32, i32
  }
  func.func @transform_3(%arg0: i32) -> (i32, i32) {
    %c0_i32 = arith.constant 0 : i32
    %c0_i32_0 = arith.constant 0 : i32
    %c0_i32_1 = arith.constant 0 : i32
    return %c0_i32, %c0_i32_0 : i32, i32
  }
  func.func @transform_4(%arg0: i32) -> (i32, i32) {
    %c0_i32 = arith.constant 0 : i32
    %c0_i32_0 = arith.constant 0 : i32
    %c0_i32_1 = arith.constant 0 : i32
    return %c0_i32, %c0_i32_0 : i32, i32
  }
  func.func @transform_5(%arg0: i32) -> (i32, i32) {
    %c0_i32 = arith.constant 0 : i32
    %c0_i32_0 = arith.constant 0 : i32
    return %arg0, %c0_i32 : i32, i32
  }
  func.func @transform_6(%arg0: i32) -> (i32, i32) {
    %c0_i32 = arith.constant 0 : i32
    %c0_i32_0 = arith.constant 0 : i32
    return %arg0, %c0_i32 : i32, i32
  }
  func.func @transform_7(%arg0: i32) -> (i32, i32, i32) {
    %c0_i32 = arith.constant 0 : i32
    %c0_i32_0 = arith.constant 0 : i32
    %c0_i32_1 = arith.constant 0 : i32
    return %arg0, %c0_i32, %c0_i32_0 : i32, i32, i32
  }
  func.func @transform_8(%arg0: i32) -> (i32, i32) {
    %c0_i32 = arith.constant 0 : i32
    %c0_i32_0 = arith.constant 0 : i32
    return %arg0, %c0_i32 : i32, i32
  }
  func.func @transform_9(%arg0: i32) -> (i32, i32, i32) {
    %c0_i32 = arith.constant 0 : i32
    %c0_i32_0 = arith.constant 0 : i32
    %c0_i32_1 = arith.constant 0 : i32
    return %arg0, %c0_i32, %c0_i32_0 : i32, i32, i32
  }
}

</mosaic_0001>

<llo_original>
// kernel: tpu_custom_call.1
$region0: #{tpu_custom_call.1}
  #allocation0 [shape = 'u32[]', space=smem, size = 0x4, offset = 0x4, fixed_abs, tag = 'smem constant byte address 0x4 - core index']
  #allocation1 [shape = 'u32[144,128]{1,0:T(1,128)}', space=vmem, size = 0x12000, scoped, tag = 'internal scratch']
  %s0 = inlined_call_operand.vmem [shape: f32[8,128,32], index: 0, kind: input, shape index: {}]
  %s1 = inlined_call_operand.vmem [shape: f32[64,256], index: 1, kind: input, shape index: {}]
  %s2 = inlined_call_operand.vmem [shape: f32[64,1], index: 2, kind: input, shape index: {}]
  %s3 = inlined_call_operand.vmem [shape: f32[256,64], index: 3, kind: input, shape index: {}]
  %s4 = inlined_call_operand.vmem [shape: f32[256,1], index: 4, kind: input, shape index: {}]
  %s5 = inlined_call_operand.vmem [shape: f32[64,9], index: 5, kind: input, shape index: {}]
  %s6 = inlined_call_operand.vmem [shape: f32[64,1], index: 6, kind: input, shape index: {}]
  %s7 = inlined_call_operand.vmem [shape: f32[1,64,64], index: 7, kind: input, shape index: {}]
  %s8 = inlined_call_operand.vmem [shape: f32[64,1], index: 8, kind: input, shape index: {}]
  %s9 = inlined_call_operand.vmem [shape: f32[8,128,32], index: 9, kind: output, shape index: {}]
  %s10 = sld [smem:[#allocation0]]
  $region46: #{tpu_custom_call.1} parent=0
    _
  %s12 = ssub.s32 1, %s10
  %s13 = scalar_select 0, %s12, %s10
  // Predicated region
  $region2: #{tpu_custom_call.1} parent=0 // pred_check
    _
  $region3: #{tpu_custom_call.1} parent=0 // pred_check_branch
    %15 = sbr.rel (0) target = $region5
  $region4: #{tpu_custom_call.1} parent=0 // pred_region
    _
  $region5: #{tpu_custom_call.1} parent=0 // pred_fallthru
    _
  // Predicated region
  $region6: #{tpu_custom_call.1} parent=0 // pred_check
    _
  $region7: #{tpu_custom_call.1} parent=0 // pred_check_branch
    %17 = sbr.rel (0) target = $region9
  $region8: #{tpu_custom_call.1} parent=0 // pred_region
    _
  $region9: #{tpu_custom_call.1} parent=0 // pred_fallthru
    _
  // Predicated region
  $region10: #{tpu_custom_call.1} parent=0 // pred_check
    _
  $region11: #{tpu_custom_call.1} parent=0 // pred_check_branch
    %19 = sbr.rel (0) target = $region13
  $region12: #{tpu_custom_call.1} parent=0 // pred_region
    _
  $region13: #{tpu_custom_call.1} parent=0 // pred_fallthru
    _
  // Predicated region
  $region14: #{tpu_custom_call.1} parent=0 // pred_check
    _
  $region15: #{tpu_custom_call.1} parent=0 // pred_check_branch
    %21 = sbr.rel (0) target = $region17
  $region16: #{tpu_custom_call.1} parent=0 // pred_region
    _
  $region17: #{tpu_custom_call.1} parent=0 // pred_fallthru
    _
  // Predicated region
  $region18: #{tpu_custom_call.1} parent=0 // pred_check
    _
  $region19: #{tpu_custom_call.1} parent=0 // pred_check_branch
    %23 = sbr.rel (0) target = $region21
  $region20: #{tpu_custom_call.1} parent=0 // pred_region
    _
  $region21: #{tpu_custom_call.1} parent=0 // pred_fallthru
    _
  // Predicated region
  $region22: #{tpu_custom_call.1} parent=0 // pred_check
    _
  $region23: #{tpu_custom_call.1} parent=0 // pred_check_branch
    %25 = sbr.rel (0) target = $region25
  $region24: #{tpu_custom_call.1} parent=0 // pred_region
    _
  $region25: #{tpu_custom_call.1} parent=0 // pred_fallthru
    _
  // Predicated region
  $region26: #{tpu_custom_call.1} parent=0 // pred_check
    _
  $region27: #{tpu_custom_call.1} parent=0 // pred_check_branch
    %27 = sbr.rel (0) target = $region29
  $region28: #{tpu_custom_call.1} parent=0 // pred_region
    _
  $region29: #{tpu_custom_call.1} parent=0 // pred_fallthru
    _
  // Predicated region
  $region30: #{tpu_custom_call.1} parent=0 // pred_check
    _
  $region31: #{tpu_custom_call.1} parent=0 // pred_check_branch
    %29 = sbr.rel (0) target = $region33
  $region32: #{tpu_custom_call.1} parent=0 // pred_region
    _
  $region33: #{tpu_custom_call.1} parent=0 // pred_fallthru
    _
  // Predicated region
  $region34: #{tpu_custom_call.1} parent=0 // pred_check
    _
  $region35: #{tpu_custom_call.1} parent=0 // pred_check_branch
    %31 = sbr.rel (0) target = $region37
  $region36: #{tpu_custom_call.1} parent=0 // pred_region
    _
  $region37: #{tpu_custom_call.1} parent=0 // pred_fallthru
    _
  %v32 = vld [vmem:[%s0] sm:$0xff]
  %v33 = vld [vmem:[%s0 + $0x8] sm:$0xff]
  %v34 = vld [vmem:[%s0 + $0x10] sm:$0xff]
  %v35 = vld [vmem:[%s0 + $0x18] sm:$0xff]
  %v36 = vld [vmem:[%s0 + $0x20] sm:$0xff]
  %v37 = vld [vmem:[%s0 + $0x28] sm:$0xff]
  %v38 = vld [vmem:[%s0 + $0x30] sm:$0xff]
  %v39 = vld [vmem:[%s0 + $0x38] sm:$0xff]
  %v40 = vld [vmem:[%s0 + $0x40] sm:$0xff]
  %v41 = vld [vmem:[%s0 + $0x48] sm:$0xff]
  %v42 = vld [vmem:[%s0 + $0x50] sm:$0xff]
  %v43 = vld [vmem:[%s0 + $0x58] sm:$0xff]
  %v44 = vld [vmem:[%s0 + $0x60] sm:$0xff]
  %v45 = vld [vmem:[%s0 + $0x68] sm:$0xff]
  %v46 = vld [vmem:[%s0 + $0x70] sm:$0xff]
  %v47 = vld [vmem:[%s0 + $0x78] sm:$0xff]
  %48 = vxpose.xlu0.b32.start [1/16] %v32, 128
  %49 = vxpose.xlu0.b32.cont [2/16] %v33, 128
  %50 = vxpose.xlu0.b32.cont [3/16] %v34, 128
  %51 = vxpose.xlu0.b32.cont [4/16] %v35, 128
  %52 = vxpose.xlu0.b32.cont [5/16] %v36, 128
  %53 = vxpose.xlu0.b32.cont [6/16] %v37, 128
  %54 = vxpose.xlu0.b32.cont [7/16] %v38, 128
  %55 = vxpose.xlu0.b32.cont [8/16] %v39, 128
  %56 = vxpose.xlu0.b32.cont [9/16] %v40, 128
  %57 = vxpose.xlu0.b32.cont [10/16] %v41, 128
  %58 = vxpose.xlu0.b32.cont [11/16] %v42, 128
  %59 = vxpose.xlu0.b32.cont [12/16] %v43, 128
  %60 = vxpose.xlu0.b32.cont [13/16] %v44, 128
  %61 = vxpose.xlu0.b32.cont [14/16] %v45, 128
  %62 = vxpose.xlu0.b32.cont [15/16] %v46, 128
  %63 = vxpose.xlu0.b32.end [16/16] %v47, 128
  %v64 = vpop.trf.xlu0
  %v65 = vpop.trf.xlu0
  %v66 = vpop.trf.xlu0
  %v67 = vpop.trf.xlu0
  %v68 = vpop.trf.xlu0
  %v69 = vpop.trf.xlu0
  %v70 = vpop.trf.xlu0
  %v71 = vpop.trf.xlu0
  %v72 = vpop.trf.xlu0
  %v73 = vpop.trf.xlu0
  %v74 = vpop.trf.xlu0
  %v75 = vpop.trf.xlu0
  %v76 = vpop.trf.xlu0
  %v77 = vpop.trf.xlu0
  %v78 = vpop.trf.xlu0
  %v79 = vpop.trf.xlu0
  %s80 = scalar_lea.vmem %s0, 128
  %v81 = vld [vmem:[%s80] sm:$0xff]
  %v82 = vld [vmem:[%s80 + $0x8] sm:$0xff]
  %v83 = vld [vmem:[%s80 + $0x10] sm:$0xff]
  %v84 = vld [vmem:[%s80 + $0x18] sm:$0xff]
  %v85 = vld [vmem:[%s80 + $0x20] sm:$0xff]
  %v86 = vld [vmem:[%s80 + $0x28] sm:$0xff]
  %v87 = vld [vmem:[%s80 + $0x30] sm:$0xff]
  %v88 = vld [vmem:[%s80 + $0x38] sm:$0xff]
  %v89 = vld [vmem:[%s80 + $0x40] sm:$0xff]
  %v90 = vld [vmem:[%s80 + $0x48] sm:$0xff]
  %v91 = vld [vmem:[%s80 + $0x50] sm:$0xff]
  %v92 = vld [vmem:[%s80 + $0x58] sm:$0xff]
  %v93 = vld [vmem:[%s80 + $0x60] sm:$0xff]
  %v94 = vld [vmem:[%s80 + $0x68] sm:$0xff]
  %v95 = vld [vmem:[%s80 + $0x70] sm:$0xff]
  %v96 = vld [vmem:[%s80 + $0x78] sm:$0xff]
  %97 = vxpose.xlu0.b32.start [1/16] %v81, 128
  %98 = vxpose.xlu0.b32.cont [2/16] %v82, 128
  %99 = vxpose.xlu0.b32.cont [3/16] %v83, 128
  %100 = vxpose.xlu0.b32.cont [4/16] %v84, 128
  %101 = vxpose.xlu0.b32.cont [5/16] %v85, 128
  %102 = vxpose.xlu0.b32.cont [6/16] %v86, 128
  %103 = vxpose.xlu0.b32.cont [7/16] %v87, 128
  %104 = vxpose.xlu0.b32.cont [8/16] %v88, 128
  %105 = vxpose.xlu0.b32.cont [9/16] %v89, 128
  %106 = vxpose.xlu0.b32.cont [10/16] %v90, 128
  %107 = vxpose.xlu0.b32.cont [11/16] %v91, 128
  %108 = vxpose.xlu0.b32.cont [12/16] %v92, 128
  %109 = vxpose.xlu0.b32.cont [13/16] %v93, 128
  %110 = vxpose.xlu0.b32.cont [14/16] %v94, 128
  %111 = vxpose.xlu0.b32.cont [15/16] %v95, 128
  %112 = vxpose.xlu0.b32.end [16/16] %v96, 128
  %v113 = vpop.trf.xlu0
  %v114 = vpop.trf.xlu0
  %v115 = vpop.trf.xlu0
  %v116 = vpop.trf.xlu0
  %v117 = vpop.trf.xlu0
  %v118 = vpop.trf.xlu0
  %v119 = vpop.trf.xlu0
  %v120 = vpop.trf.xlu0
  %v121 = vpop.trf.xlu0
  %v122 = vpop.trf.xlu0
  %v123 = vpop.trf.xlu0
  %v124 = vpop.trf.xlu0
  %v125 = vpop.trf.xlu0
  %v126 = vpop.trf.xlu0
  %v127 = vpop.trf.xlu0
  %v128 = vpop.trf.xlu0
  %s129 = scalar_lea.vmem %s0, 256
  %v130 = vld [vmem:[%s129] sm:$0xff]
  %v131 = vld [vmem:[%s129 + $0x8] sm:$0xff]
  %v132 = vld [vmem:[%s129 + $0x10] sm:$0xff]
  %v133 = vld [vmem:[%s129 + $0x18] sm:$0xff]
  %v134 = vld [vmem:[%s129 + $0x20] sm:$0xff]
  %v135 = vld [vmem:[%s129 + $0x28] sm:$0xff]
  %v136 = vld [vmem:[%s129 + $0x30] sm:$0xff]
  %v137 = vld [vmem:[%s129 + $0x38] sm:$0xff]
  %v138 = vld [vmem:[%s129 + $0x40] sm:$0xff]
  %v139 = vld [vmem:[%s129 + $0x48] sm:$0xff]
  %v140 = vld [vmem:[%s129 + $0x50] sm:$0xff]
  %v141 = vld [vmem:[%s129 + $0x58] sm:$0xff]
  %v142 = vld [vmem:[%s129 + $0x60] sm:$0xff]
  %v143 = vld [vmem:[%s129 + $0x68] sm:$0xff]
  %v144 = vld [vmem:[%s129 + $0x70] sm:$0xff]
  %v145 = vld [vmem:[%s129 + $0x78] sm:$0xff]
  %146 = vxpose.xlu0.b32.start [1/16] %v130, 128
  %147 = vxpose.xlu0.b32.cont [2/16] %v131, 128
  %148 = vxpose.xlu0.b32.cont [3/16] %v132, 128
  %149 = vxpose.xlu0.b32.cont [4/16] %v133, 128
  %150 = vxpose.xlu0.b32.cont [5/16] %v134, 128
  %151 = vxpose.xlu0.b32.cont [6/16] %v135, 128
  %152 = vxpose.xlu0.b32.cont [7/16] %v136, 128
  %153 = vxpose.xlu0.b32.cont [8/16] %v137, 128
  %154 = vxpose.xlu0.b32.cont [9/16] %v138, 128
  %155 = vxpose.xlu0.b32.cont [10/16] %v139, 128
  %156 = vxpose.xlu0.b32.cont [11/16] %v140, 128
  %157 = vxpose.xlu0.b32.cont [12/16] %v141, 128
  %158 = vxpose.xlu0.b32.cont [13/16] %v142, 128
  %159 = vxpose.xlu0.b32.cont [14/16] %v143, 128
  %160 = vxpose.xlu0.b32.cont [15/16] %v144, 128
  %161 = vxpose.xlu0.b32.end [16/16] %v145, 128
  %v162 = vpop.trf.xlu0
  %v163 = vpop.trf.xlu0
  %v164 = vpop.trf.xlu0
  %v165 = vpop.trf.xlu0
  %v166 = vpop.trf.xlu0
  %v167 = vpop.trf.xlu0
  %v168 = vpop.trf.xlu0
  %v169 = vpop.trf.xlu0
  %v170 = vpop.trf.xlu0
  %v171 = vpop.trf.xlu0
  %v172 = vpop.trf.xlu0
  %v173 = vpop.trf.xlu0
  %v174 = vpop.trf.xlu0
  %v175 = vpop.trf.xlu0
  %v176 = vpop.trf.xlu0
  %v177 = vpop.trf.xlu0
  %s178 = scalar_lea.vmem %s0, 384
  %v179 = vld [vmem:[%s178] sm:$0xff]
  %v180 = vld [vmem:[%s178 + $0x8] sm:$0xff]
  %v181 = vld [vmem:[%s178 + $0x10] sm:$0xff]
  %v182 = vld [vmem:[%s178 + $0x18] sm:$0xff]
  %v183 = vld [vmem:[%s178 + $0x20] sm:$0xff]
  %v184 = vld [vmem:[%s178 + $0x28] sm:$0xff]
  %v185 = vld [vmem:[%s178 + $0x30] sm:$0xff]
  %v186 = vld [vmem:[%s178 + $0x38] sm:$0xff]
  %v187 = vld [vmem:[%s178 + $0x40] sm:$0xff]
  %v188 = vld [vmem:[%s178 + $0x48] sm:$0xff]
  %v189 = vld [vmem:[%s178 + $0x50] sm:$0xff]
  %v190 = vld [vmem:[%s178 + $0x58] sm:$0xff]
  %v191 = vld [vmem:[%s178 + $0x60] sm:$0xff]
  %v192 = vld [vmem:[%s178 + $0x68] sm:$0xff]
  %v193 = vld [vmem:[%s178 + $0x70] sm:$0xff]
  %v194 = vld [vmem:[%s178 + $0x78] sm:$0xff]
  %195 = vxpose.xlu0.b32.start [1/16] %v179, 128
  %196 = vxpose.xlu0.b32.cont [2/16] %v180, 128
  %197 = vxpose.xlu0.b32.cont [3/16] %v181, 128
  %198 = vxpose.xlu0.b32.cont [4/16] %v182, 128
  %199 = vxpose.xlu0.b32.cont [5/16] %v183, 128
  %200 = vxpose.xlu0.b32.cont [6/16] %v184, 128
  %201 = vxpose.xlu0.b32.cont [7/16] %v185, 128
  %202 = vxpose.xlu0.b32.cont [8/16] %v186, 128
  %203 = vxpose.xlu0.b32.cont [9/16] %v187, 128
  %204 = vxpose.xlu0.b32.cont [10/16] %v188, 128
  %205 = vxpose.xlu0.b32.cont [11/16] %v189, 128
  %206 = vxpose.xlu0.b32.cont [12/16] %v190, 128
  %207 = vxpose.xlu0.b32.cont [13/16] %v191, 128
  %208 = vxpose.xlu0.b32.cont [14/16] %v192, 128
  %209 = vxpose.xlu0.b32.cont [15/16] %v193, 128
  %210 = vxpose.xlu0.b32.end [16/16] %v194, 128
  %v211 = vpop.trf.xlu0
  %v212 = vpop.trf.xlu0
  %v213 = vpop.trf.xlu0
  %v214 = vpop.trf.xlu0
  %v215 = vpop.trf.xlu0
  %v216 = vpop.trf.xlu0
  %v217 = vpop.trf.xlu0
  %v218 = vpop.trf.xlu0
  %v219 = vpop.trf.xlu0
  %v220 = vpop.trf.xlu0
  %v221 = vpop.trf.xlu0
  %v222 = vpop.trf.xlu0
  %v223 = vpop.trf.xlu0
  %v224 = vpop.trf.xlu0
  %v225 = vpop.trf.xlu0
  %v226 = vpop.trf.xlu0
  %s227 = scalar_lea.vmem %s0, 512
  %v228 = vld [vmem:[%s227] sm:$0xff]
  %v229 = vld [vmem:[%s227 + $0x8] sm:$0xff]
  %v230 = vld [vmem:[%s227 + $0x10] sm:$0xff]
  %v231 = vld [vmem:[%s227 + $0x18] sm:$0xff]
  %v232 = vld [vmem:[%s227 + $0x20] sm:$0xff]
  %v233 = vld [vmem:[%s227 + $0x28] sm:$0xff]
  %v234 = vld [vmem:[%s227 + $0x30] sm:$0xff]
  %v235 = vld [vmem:[%s227 + $0x38] sm:$0xff]
  %v236 = vld [vmem:[%s227 + $0x40] sm:$0xff]
  %v237 = vld [vmem:[%s227 + $0x48] sm:$0xff]
  %v238 = vld [vmem:[%s227 + $0x50] sm:$0xff]
  %v239 = vld [vmem:[%s227 + $0x58] sm:$0xff]
  %v240 = vld [vmem:[%s227 + $0x60] sm:$0xff]
  %v241 = vld [vmem:[%s227 + $0x68] sm:$0xff]
  %v242 = vld [vmem:[%s227 + $0x70] sm:$0xff]
  %v243 = vld [vmem:[%s227 + $0x78] sm:$0xff]
  %244 = vxpose.xlu0.b32.start [1/16] %v228, 128
  %245 = vxpose.xlu0.b32.cont [2/16] %v229, 128
  %246 = vxpose.xlu0.b32.cont [3/16] %v230, 128
  %247 = vxpose.xlu0.b32.cont [4/16] %v231, 128
  %248 = vxpose.xlu0.b32.cont [5/16] %v232, 128
  %249 = vxpose.xlu0.b32.cont [6/16] %v233, 128
  %250 = vxpose.xlu0.b32.cont [7/16] %v234, 128
  %251 = vxpose.xlu0.b32.cont [8/16] %v235, 128
  %252 = vxpose.xlu0.b32.cont [9/16] %v236, 128
  %253 = vxpose.xlu0.b32.cont [10/16] %v237, 128
  %254 = vxpose.xlu0.b32.cont [11/16] %v238, 128
  %255 = vxpose.xlu0.b32.cont [12/16] %v239, 128
  %256 = vxpose.xlu0.b32.cont [13/16] %v240, 128
  %257 = vxpose.xlu0.b32.cont [14/16] %v241, 128
  %258 = vxpose.xlu0.b32.cont [15/16] %v242, 128
  %259 = vxpose.xlu0.b32.end [16/16] %v243, 128
  %v260 = vpop.trf.xlu0
  %v261 = vpop.trf.xlu0
  %v262 = vpop.trf.xlu0
  %v263 = vpop.trf.xlu0
  %v264 = vpop.trf.xlu0
  %v265 = vpop.trf.xlu0
  %v266 = vpop.trf.xlu0
  %v267 = vpop.trf.xlu0
  %v268 = vpop.trf.xlu0
  %v269 = vpop.trf.xlu0
  %v270 = vpop.trf.xlu0
  %v271 = vpop.trf.xlu0
  %v272 = vpop.trf.xlu0
  %v273 = vpop.trf.xlu0
  %v274 = vpop.trf.xlu0
  %v275 = vpop.trf.xlu0
  %s276 = scalar_lea.vmem %s0, 640
  %v277 = vld [vmem:[%s276] sm:$0xff]
  %v278 = vld [vmem:[%s276 + $0x8] sm:$0xff]
  %v279 = vld [vmem:[%s276 + $0x10] sm:$0xff]
  %v280 = vld [vmem:[%s276 + $0x18] sm:$0xff]
  %v281 = vld [vmem:[%s276 + $0x20] sm:$0xff]
  %v282 = vld [vmem:[%s276 + $0x28] sm:$0xff]
  %v283 = vld [vmem:[%s276 + $0x30] sm:$0xff]
  %v284 = vld [vmem:[%s276 + $0x38] sm:$0xff]
  %v285 = vld [vmem:[%s276 + $0x40] sm:$0xff]
  %v286 = vld [vmem:[%s276 + $0x48] sm:$0xff]
  %v287 = vld [vmem:[%s276 + $0x50] sm:$0xff]
  %v288 = vld [vmem:[%s276 + $0x58] sm:$0xff]
  %v289 = vld [vmem:[%s276 + $0x60] sm:$0xff]
  %v290 = vld [vmem:[%s276 + $0x68] sm:$0xff]
  %v291 = vld [vmem:[%s276 + $0x70] sm:$0xff]
  %v292 = vld [vmem:[%s276 + $0x78] sm:$0xff]
  %293 = vxpose.xlu0.b32.start [1/16] %v277, 128
  %294 = vxpose.xlu0.b32.cont [2/16] %v278, 128
  %295 = vxpose.xlu0.b32.cont [3/16] %v279, 128
  %296 = vxpose.xlu0.b32.cont [4/16] %v280, 128
  %297 = vxpose.xlu0.b32.cont [5/16] %v281, 128
  %298 = vxpose.xlu0.b32.cont [6/16] %v282, 128
  %299 = vxpose.xlu0.b32.cont [7/16] %v283, 128
  %300 = vxpose.xlu0.b32.cont [8/16] %v284, 128
  %301 = vxpose.xlu0.b32.cont [9/16] %v285, 128
  %302 = vxpose.xlu0.b32.cont [10/16] %v286, 128
  %303 = vxpose.xlu0.b32.cont [11/16] %v287, 128
  %304 = vxpose.xlu0.b32.cont [12/16] %v288, 128
  %305 = vxpose.xlu0.b32.cont [13/16] %v289, 128
  %306 = vxpose.xlu0.b32.cont [14/16] %v290, 128
  %307 = vxpose.xlu0.b32.cont [15/16] %v291, 128
  %308 = vxpose.xlu0.b32.end [16/16] %v292, 128
  %v309 = vpop.trf.xlu0
  %v310 = vpop.trf.xlu0
  %v311 = vpop.trf.xlu0
  %v312 = vpop.trf.xlu0
  %v313 = vpop.trf.xlu0
  %v314 = vpop.trf.xlu0
  %v315 = vpop.trf.xlu0
  %v316 = vpop.trf.xlu0
  %v317 = vpop.trf.xlu0
  %v318 = vpop.trf.xlu0
  %v319 = vpop.trf.xlu0
  %v320 = vpop.trf.xlu0
  %v321 = vpop.trf.xlu0
  %v322 = vpop.trf.xlu0
  %v323 = vpop.trf.xlu0
  %v324 = vpop.trf.xlu0
  %s325 = scalar_lea.vmem %s0, 768
  %v326 = vld [vmem:[%s325] sm:$0xff]
  %v327 = vld [vmem:[%s325 + $0x8] sm:$0xff]
  %v328 = vld [vmem:[%s325 + $0x10] sm:$0xff]
  %v329 = vld [vmem:[%s325 + $0x18] sm:$0xff]
  %v330 = vld [vmem:[%s325 + $0x20] sm:$0xff]
  %v331 = vld [vmem:[%s325 + $0x28] sm:$0xff]
  %v332 = vld [vmem:[%s325 + $0x30] sm:$0xff]
  %v333 = vld [vmem:[%s325 + $0x38] sm:$0xff]
  %v334 = vld [vmem:[%s325 + $0x40] sm:$0xff]
  %v335 = vld [vmem:[%s325 + $0x48] sm:$0xff]
  %v336 = vld [vmem:[%s325 + $0x50] sm:$0xff]
  %v337 = vld [vmem:[%s325 + $0x58] sm:$0xff]
  %v338 = vld [vmem:[%s325 + $0x60] sm:$0xff]
  %v339 = vld [vmem:[%s325 + $0x68] sm:$0xff]
  %v340 = vld [vmem:[%s325 + $0x70] sm:$0xff]
  %v341 = vld [vmem:[%s325 + $0x78] sm:$0xff]
  %342 = vxpose.xlu0.b32.start [1/16] %v326, 128
  %343 = vxpose.xlu0.b32.cont [2/16] %v327, 128
  %344 = vxpose.xlu0.b32.cont [3/16] %v328, 128
  %345 = vxpose.xlu0.b32.cont [4/16] %v329, 128
  %346 = vxpose.xlu0.b32.cont [5/16] %v330, 128
  %347 = vxpose.xlu0.b32.cont [6/16] %v331, 128
  %348 = vxpose.xlu0.b32.cont [7/16] %v332, 128
  %349 = vxpose.xlu0.b32.cont [8/16] %v333, 128
  %350 = vxpose.xlu0.b32.cont [9/16] %v334, 128
  %351 = vxpose.xlu0.b32.cont [10/16] %v335, 128
  %352 = vxpose.xlu0.b32.cont [11/16] %v336, 128
  %353 = vxpose.xlu0.b32.cont [12/16] %v337, 128
  %354 = vxpose.xlu0.b32.cont [13/16] %v338, 128
  %355 = vxpose.xlu0.b32.cont [14/16] %v339, 128
  %356 = vxpose.xlu0.b32.cont [15/16] %v340, 128
  %357 = vxpose.xlu0.b32.end [16/16] %v341, 128
  %v358 = vpop.trf.xlu0
  %v359 = vpop.trf.xlu0
  %v360 = vpop.trf.xlu0
  %v361 = vpop.trf.xlu0
  %v362 = vpop.trf.xlu0
  %v363 = vpop.trf.xlu0
  %v364 = vpop.trf.xlu0
  %v365 = vpop.trf.xlu0
  %v366 = vpop.trf.xlu0
  %v367 = vpop.trf.xlu0
  %v368 = vpop.trf.xlu0
  %v369 = vpop.trf.xlu0
  %v370 = vpop.trf.xlu0
  %v371 = vpop.trf.xlu0
  %v372 = vpop.trf.xlu0
  %v373 = vpop.trf.xlu0
  %s374 = scalar_lea.vmem %s0, 896
  %v375 = vld [vmem:[%s374] sm:$0xff]
  %v376 = vld [vmem:[%s374 + $0x8] sm:$0xff]
  %v377 = vld [vmem:[%s374 + $0x10] sm:$0xff]
  %v378 = vld [vmem:[%s374 + $0x18] sm:$0xff]
  %v379 = vld [vmem:[%s374 + $0x20] sm:$0xff]
  %v380 = vld [vmem:[%s374 + $0x28] sm:$0xff]
  %v381 = vld [vmem:[%s374 + $0x30] sm:$0xff]
  %v382 = vld [vmem:[%s374 + $0x38] sm:$0xff]
  %v383 = vld [vmem:[%s374 + $0x40] sm:$0xff]
  %v384 = vld [vmem:[%s374 + $0x48] sm:$0xff]
  %v385 = vld [vmem:[%s374 + $0x50] sm:$0xff]
  %v386 = vld [vmem:[%s374 + $0x58] sm:$0xff]
  %v387 = vld [vmem:[%s374 + $0x60] sm:$0xff]
  %v388 = vld [vmem:[%s374 + $0x68] sm:$0xff]
  %v389 = vld [vmem:[%s374 + $0x70] sm:$0xff]
  %v390 = vld [vmem:[%s374 + $0x78] sm:$0xff]
  %391 = vxpose.xlu0.b32.start [1/16] %v375, 128
  %392 = vxpose.xlu0.b32.cont [2/16] %v376, 128
  %393 = vxpose.xlu0.b32.cont [3/16] %v377, 128
  %394 = vxpose.xlu0.b32.cont [4/16] %v378, 128
  %395 = vxpose.xlu0.b32.cont [5/16] %v379, 128
  %396 = vxpose.xlu0.b32.cont [6/16] %v380, 128
  %397 = vxpose.xlu0.b32.cont [7/16] %v381, 128
  %398 = vxpose.xlu0.b32.cont [8/16] %v382, 128
  %399 = vxpose.xlu0.b32.cont [9/16] %v383, 128
  %400 = vxpose.xlu0.b32.cont [10/16] %v384, 128
  %401 = vxpose.xlu0.b32.cont [11/16] %v385, 128
  %402 = vxpose.xlu0.b32.cont [12/16] %v386, 128
  %403 = vxpose.xlu0.b32.cont [13/16] %v387, 128
  %404 = vxpose.xlu0.b32.cont [14/16] %v388, 128
  %405 = vxpose.xlu0.b32.cont [15/16] %v389, 128
  %406 = vxpose.xlu0.b32.end [16/16] %v390, 128
  %v407 = vpop.trf.xlu0
  %v408 = vpop.trf.xlu0
  %v409 = vpop.trf.xlu0
  %v410 = vpop.trf.xlu0
  %v411 = vpop.trf.xlu0
  %v412 = vpop.trf.xlu0
  %v413 = vpop.trf.xlu0
  %v414 = vpop.trf.xlu0
  %v415 = vpop.trf.xlu0
  %v416 = vpop.trf.xlu0
  %v417 = vpop.trf.xlu0
  %v418 = vpop.trf.xlu0
  %v419 = vpop.trf.xlu0
  %v420 = vpop.trf.xlu0
  %v421 = vpop.trf.xlu0
  %v422 = vpop.trf.xlu0
  %v423 = vld [vmem:[%s1] sm:$0xff]
  %v424 = vld [vmem:[%s1 + $0x8] sm:$0xff]
  %v425 = vld [vmem:[%s1 + $0x10] sm:$0xff]
  %v426 = vld [vmem:[%s1 + $0x18] sm:$0xff]
  %v427 = vld [vmem:[%s1 + $0x20] sm:$0xff]
  %v428 = vld [vmem:[%s1 + $0x28] sm:$0xff]
  %v429 = vld [vmem:[%s1 + $0x30] sm:$0xff]
  %v430 = vld [vmem:[%s1 + $0x38] sm:$0xff]
  %v431 = vld [vmem:[%s1 + $0x40] sm:$0xff]
  %v432 = vld [vmem:[%s1 + $0x48] sm:$0xff]
  %v433 = vld [vmem:[%s1 + $0x50] sm:$0xff]
  %v434 = vld [vmem:[%s1 + $0x58] sm:$0xff]
  %v435 = vld [vmem:[%s1 + $0x60] sm:$0xff]
  %v436 = vld [vmem:[%s1 + $0x68] sm:$0xff]
  %v437 = vld [vmem:[%s1 + $0x70] sm:$0xff]
  %v438 = vld [vmem:[%s1 + $0x78] sm:$0xff]
  %v439 = vld [vmem:[%s2] sm:$0xff]
  %v440 = vld [vmem:[%s2 + $0x8] sm:$0xff]
  %v441 = vld [vmem:[%s2 + $0x10] sm:$0xff]
  %v442 = vld [vmem:[%s2 + $0x18] sm:$0xff]
  %v443 = vld [vmem:[%s2 + $0x20] sm:$0xff]
  %v444 = vld [vmem:[%s2 + $0x28] sm:$0xff]
  %v445 = vld [vmem:[%s2 + $0x30] sm:$0xff]
  %v446 = vld [vmem:[%s2 + $0x38] sm:$0xff]
  %448 = vset.pattern.permute.xlu0 0
  %449 = vperm.xlu0 %448, %v439
  %v450 = vpop.permute.xlu0 %449
  %453 = vset.pattern.permute.xlu0 0
  %454 = vperm.xlu0 %453, %v440
  %v455 = vpop.permute.xlu0 %454
  %458 = vset.pattern.permute.xlu0 0
  %459 = vperm.xlu0 %458, %v441
  %v460 = vpop.permute.xlu0 %459
  %463 = vset.pattern.permute.xlu0 0
  %464 = vperm.xlu0 %463, %v442
  %v465 = vpop.permute.xlu0 %464
  %468 = vset.pattern.permute.xlu0 0
  %469 = vperm.xlu0 %468, %v443
  %v470 = vpop.permute.xlu0 %469
  %473 = vset.pattern.permute.xlu0 0
  %474 = vperm.xlu0 %473, %v444
  %v475 = vpop.permute.xlu0 %474
  %478 = vset.pattern.permute.xlu0 0
  %479 = vperm.xlu0 %478, %v445
  %v480 = vpop.permute.xlu0 %479
  %483 = vset.pattern.permute.xlu0 0
  %484 = vperm.xlu0 %483, %v446
  %v485 = vpop.permute.xlu0 %484
  %487 = vmatprep.subr.mxu0 0.0
  %488 = vmatpush1.msra.mxu0 %v64
  %489 = vmatprep.subr.mxu0 0.0
  %490 = vmatpush1.msra.mxu0 %v65
  %491 = vmatprep.subr.mxu0 0.0
  %492 = vmatpush1.msra.mxu0 %v66
  %493 = vmatprep.subr.mxu0 0.0
  %494 = vmatpush1.msra.mxu0 %v67
  %495 = vmatprep.subr.mxu0 0.0
  %496 = vmatpush1.msra.mxu0 %v113
  %497 = vmatprep.subr.mxu0 0.0
  %498 = vmatpush1.msra.mxu0 %v114
  %499 = vmatprep.subr.mxu0 0.0
  %500 = vmatpush1.msra.mxu0 %v115
  %501 = vmatprep.subr.mxu0 0.0
  %502 = vmatpush1.msra.mxu0 %v116
  %503 = vmatprep.subr.mxu0 0.0
  %504 = vmatpush1.msra.mxu0 %v162
  %505 = vmatprep.subr.mxu0 0.0
  %506 = vmatpush1.msra.mxu0 %v163
  %507 = vmatprep.subr.mxu0 0.0
  %508 = vmatpush1.msra.mxu0 %v164
  %509 = vmatprep.subr.mxu0 0.0
  %510 = vmatpush1.msra.mxu0 %v165
  %511 = vmatprep.subr.mxu0 0.0
  %512 = vmatpush1.msra.mxu0 %v211
  %513 = vmatprep.subr.mxu0 0.0
  %514 = vmatpush1.msra.mxu0 %v212
  %515 = vmatprep.subr.mxu0 0.0
  %516 = vmatpush1.msra.mxu0 %v213
  %517 = vmatprep.subr.mxu0 0.0
  %518 = vmatpush1.msra.mxu0 %v214
  %519 = vmatprep.subr.mxu0 0.0
  %520 = vmatpush1.msra.mxu0 %v260
  %521 = vmatprep.subr.mxu0 0.0
  %522 = vmatpush1.msra.mxu0 %v261
  %523 = vmatprep.subr.mxu0 0.0
  %524 = vmatpush1.msra.mxu0 %v262
  %525 = vmatprep.subr.mxu0 0.0
  %526 = vmatpush1.msra.mxu0 %v263
  %527 = vmatprep.subr.mxu0 0.0
  %528 = vmatpush1.msra.mxu0 %v309
  %529 = vmatprep.subr.mxu0 0.0
  %530 = vmatpush1.msra.mxu0 %v310
  %531 = vmatprep.subr.mxu0 0.0
  %532 = vmatpush1.msra.mxu0 %v311
  %533 = vmatprep.subr.mxu0 0.0
  %534 = vmatpush1.msra.mxu0 %v312
  %535 = vmatprep.subr.mxu0 0.0
  %536 = vmatpush1.msra.mxu0 %v358
  %537 = vmatprep.subr.mxu0 0.0
  %538 = vmatpush1.msra.mxu0 %v359
  %539 = vmatprep.subr.mxu0 0.0
  %540 = vmatpush1.msra.mxu0 %v360
  %541 = vmatprep.subr.mxu0 0.0
  %542 = vmatpush1.msra.mxu0 %v361
  %543 = vmatprep.subr.mxu0 0.0
  %544 = vmatpush1.msra.mxu0 %v407
  %545 = vmatprep.subr.mxu0 0.0
  %546 = vmatpush1.msra.mxu0 %v408
  %547 = vmatprep.subr.mxu0 0.0
  %548 = vmatpush1.msra.mxu0 %v409
  %549 = vmatprep.subr.mxu0 0.0
  %550 = vmatpush1.msra.mxu0 %v410
  %551 = vmatprep.mubr.f32.mxu0 %v424
  %552 = vmatmul.mubr.f32.gmra.mrb[0].mxu0 %v423
  %v553 = vpop.f32.mrb[0].mxu0
  %v554 = vadd.f32 %v450, %v553
  %v555 = vpop.f32.mrb[0].mxu0
  %556 = vmatprep.mubr.f32.mxu0 %v426
  %557 = vmatmul.mubr.f32.gmra.mrb[0].mxu0 %v425
  %v558 = vpop.f32.mrb[0].mxu0
  %v559 = vadd.f32 %v455, %v558
  %v560 = vpop.f32.mrb[0].mxu0
  %561 = vmatprep.mubr.f32.mxu0 %v428
  %562 = vmatmul.mubr.f32.gmra.mrb[0].mxu0 %v427
  %v563 = vpop.f32.mrb[0].mxu0
  %v564 = vadd.f32 %v460, %v563
  %v565 = vpop.f32.mrb[0].mxu0
  %566 = vmatprep.mubr.f32.mxu0 %v430
  %567 = vmatmul.mubr.f32.gmra.mrb[0].mxu0 %v429
  %v568 = vpop.f32.mrb[0].mxu0
  %v569 = vadd.f32 %v465, %v568
  %v570 = vpop.f32.mrb[0].mxu0
  %571 = vmatprep.mubr.f32.mxu0 %v432
  %572 = vmatmul.mubr.f32.gmra.mrb[0].mxu0 %v431
  %v573 = vpop.f32.mrb[0].mxu0
  %v574 = vadd.f32 %v470, %v573
  %v575 = vpop.f32.mrb[0].mxu0
  %576 = vmatprep.mubr.f32.mxu0 %v434
  %577 = vmatmul.mubr.f32.gmra.mrb[0].mxu0 %v433
  %v578 = vpop.f32.mrb[0].mxu0
  %v579 = vadd.f32 %v475, %v578
  %v580 = vpop.f32.mrb[0].mxu0
  %581 = vmatprep.mubr.f32.mxu0 %v436
  %582 = vmatmul.mubr.f32.gmra.mrb[0].mxu0 %v435
  %v583 = vpop.f32.mrb[0].mxu0
  %v584 = vadd.f32 %v480, %v583
  %v585 = vpop.f32.mrb[0].mxu0
  %586 = vmatprep.mubr.f32.mxu0 %v438
  %587 = vmatmul.mubr.f32.gmra.mrb[0].mxu0 %v437
  %v588 = vpop.f32.mrb[0].mxu0
  %v589 = vadd.f32 %v485, %v588
  %v590 = vpop.f32.mrb[0].mxu0
  %591 = vdwg.mxu0
  %v592 = vmin.f32 %v554, 20.0
  %v593 = vmin.f32 %v559, 20.0
  %v594 = vmin.f32 %v564, 20.0
  %v595 = vmin.f32 %v569, 20.0
  %v596 = vmin.f32 %v574, 20.0
  %v597 = vmin.f32 %v579, 20.0
  %v598 = vmin.f32 %v584, 20.0
  %v599 = vmin.f32 %v589, 20.0
  %v600 = vmul.f32 %v592, 1.442695
  %v601 = vpow.pop %v600
  %v602 = vmul.f32 %v593, 1.442695
  %v603 = vpow.pop %v602
  %v604 = vmul.f32 %v594, 1.442695
  %v605 = vpow.pop %v604
  %v606 = vmul.f32 %v595, 1.442695
  %v607 = vpow.pop %v606
  %v608 = vmul.f32 %v596, 1.442695
  %v609 = vpow.pop %v608
  %v610 = vmul.f32 %v597, 1.442695
  %v611 = vpow.pop %v610
  %v612 = vmul.f32 %v598, 1.442695
  %v613 = vpow.pop %v612
  %v614 = vmul.f32 %v599, 1.442695
  %v615 = vpow.pop %v614
  %v616 = vadd.f32 %v601, 2.0
  %v617 = vadd.f32 %v603, 2.0
  %v618 = vadd.f32 %v605, 2.0
  %v619 = vadd.f32 %v607, 2.0
  %v620 = vadd.f32 %v609, 2.0
  %v621 = vadd.f32 %v611, 2.0
  %v622 = vadd.f32 %v613, 2.0
  %v623 = vadd.f32 %v615, 2.0
  %v624 = vmul.f32 %v601, %v616
  %v625 = vmul.f32 %v603, %v617
  %v626 = vmul.f32 %v605, %v618
  %v627 = vmul.f32 %v607, %v619
  %v628 = vmul.f32 %v609, %v620
  %v629 = vmul.f32 %v611, %v621
  %v630 = vmul.f32 %v613, %v622
  %v631 = vmul.f32 %v615, %v623
  %v632 = vadd.f32 %v624, 2.0
  %v633 = vadd.f32 %v625, 2.0
  %v634 = vadd.f32 %v626, 2.0
  %v635 = vadd.f32 %v627, 2.0
  %v636 = vadd.f32 %v628, 2.0
  %v637 = vadd.f32 %v629, 2.0
  %v638 = vadd.f32 %v630, 2.0
  %v639 = vadd.f32 %v631, 2.0
  %v640 = vrcp.pop %v632
  %v641 = vrcp.pop %v633
  %v642 = vrcp.pop %v634
  %v643 = vrcp.pop %v635
  %v644 = vrcp.pop %v636
  %v645 = vrcp.pop %v637
  %v646 = vrcp.pop %v638
  %v647 = vrcp.pop %v639
  %v648 = vmul.f32 %v632, %v640
  %v649 = vmul.f32 %v633, %v641
  %v650 = vmul.f32 %v634, %v642
  %v651 = vmul.f32 %v635, %v643
  %v652 = vmul.f32 %v636, %v644
  %v653 = vmul.f32 %v637, %v645
  %v654 = vmul.f32 %v638, %v646
  %v655 = vmul.f32 %v639, %v647
  %v656 = vsub.f32 2.0, %v648
  %v657 = vsub.f32 2.0, %v649
  %v658 = vsub.f32 2.0, %v650
  %v659 = vsub.f32 2.0, %v651
  %v660 = vsub.f32 2.0, %v652
  %v661 = vsub.f32 2.0, %v653
  %v662 = vsub.f32 2.0, %v654
  %v663 = vsub.f32 2.0, %v655
  %v664 = vmul.f32 %v640, %v656
  %v665 = vmul.f32 %v641, %v657
  %v666 = vmul.f32 %v642, %v658
  %v667 = vmul.f32 %v643, %v659
  %v668 = vmul.f32 %v644, %v660
  %v669 = vmul.f32 %v645, %v661
  %v670 = vmul.f32 %v646, %v662
  %v671 = vmul.f32 %v647, %v663
  %v672 = vmul.f32 %v624, %v664
  %v673 = vmul.f32 %v625, %v665
  %v674 = vmul.f32 %v626, %v666
  %v675 = vmul.f32 %v627, %v667
  %v676 = vmul.f32 %v628, %v668
  %v677 = vmul.f32 %v629, %v669
  %v678 = vmul.f32 %v630, %v670
  %v679 = vmul.f32 %v631, %v671
  %v680 = vmul.f32 %v554, %v672
  %v681 = vmul.f32 %v559, %v673
  %v682 = vmul.f32 %v564, %v674
  %v683 = vmul.f32 %v569, %v675
  %v684 = vmul.f32 %v574, %v676
  %v685 = vmul.f32 %v579, %v677
  %v686 = vmul.f32 %v584, %v678
  %v687 = vmul.f32 %v589, %v679
  %v688 = vld [vmem:[%s5] sm:$0xff]
  %v689 = vld [vmem:[%s5 + $0x8] sm:$0xff]
  %v690 = vld [vmem:[%s5 + $0x10] sm:$0xff]
  %v691 = vld [vmem:[%s5 + $0x18] sm:$0xff]
  %v692 = vld [vmem:[%s5 + $0x20] sm:$0xff]
  %v693 = vld [vmem:[%s5 + $0x28] sm:$0xff]
  %v694 = vld [vmem:[%s5 + $0x30] sm:$0xff]
  %v695 = vld [vmem:[%s5 + $0x38] sm:$0xff]
  %v696 = vlaneseq
  %v697 = vand.u32 %v696, 127
  %698 = vrot.lane.b32.xlu0 %v680, 4
  %v699 = vpop.permute.xlu0 %698
  %700 = vrot.lane.b32.xlu0 %v681, 4
  %v701 = vpop.permute.xlu0 %700
  %702 = vrot.lane.b32.xlu0 %v682, 4
  %v703 = vpop.permute.xlu0 %702
  %704 = vrot.lane.b32.xlu0 %v683, 4
  %v705 = vpop.permute.xlu0 %704
  %706 = vrot.lane.b32.xlu0 %v684, 4
  %v707 = vpop.permute.xlu0 %706
  %708 = vrot.lane.b32.xlu0 %v685, 4
  %v709 = vpop.permute.xlu0 %708
  %710 = vrot.lane.b32.xlu0 %v686, 4
  %v711 = vpop.permute.xlu0 %710
  %712 = vrot.lane.b32.xlu0 %v687, 4
  %v713 = vpop.permute.xlu0 %712
  %vm714 = vcmp.ge.s32.totalorder %v697, 4
  %vm715 = vcmp.lt.s32.totalorder %v697, 132
  %vm716 = vmand %vm714, %vm715
  %v717 = vsel %vm716, 1, 0
  %vm718 = vcmp.eq.s32.totalorder %v717, 1
  %v719 = vsel %vm718, %v699, 0.0
  %v720 = vsel %vm718, %v701, 0.0
  %v721 = vsel %vm718, %v703, 0.0
  %v722 = vsel %vm718, %v705, 0.0
  %v723 = vsel %vm718, %v707, 0.0
  %v724 = vsel %vm718, %v709, 0.0
  %v725 = vsel %vm718, %v711, 0.0
  %v726 = vsel %vm718, %v713, 0.0
  %728 = vset.pattern.permute.xlu0 0
  %729 = vperm.xlu0 %728, %v688
  %v730 = vpop.permute.xlu0 %729
  %733 = vset.pattern.permute.xlu0 0
  %734 = vperm.xlu0 %733, %v689
  %v735 = vpop.permute.xlu0 %734
  %738 = vset.pattern.permute.xlu0 0
  %739 = vperm.xlu0 %738, %v690
  %v740 = vpop.permute.xlu0 %739
  %743 = vset.pattern.permute.xlu0 0
  %744 = vperm.xlu0 %743, %v691
  %v745 = vpop.permute.xlu0 %744
  %748 = vset.pattern.permute.xlu0 0
  %749 = vperm.xlu0 %748, %v692
  %v750 = vpop.permute.xlu0 %749
  %753 = vset.pattern.permute.xlu0 0
  %754 = vperm.xlu0 %753, %v693
  %v755 = vpop.permute.xlu0 %754
  %758 = vset.pattern.permute.xlu0 0
  %759 = vperm.xlu0 %758, %v694
  %v760 = vpop.permute.xlu0 %759
  %763 = vset.pattern.permute.xlu0 0
  %764 = vperm.xlu0 %763, %v695
  %v765 = vpop.permute.xlu0 %764
  %v767 = vmul.f32 %v719, %v730
  %v768 = vmul.f32 %v720, %v735
  %v769 = vmul.f32 %v721, %v740
  %v770 = vmul.f32 %v722, %v745
  %v771 = vmul.f32 %v723, %v750
  %v772 = vmul.f32 %v724, %v755
  %v773 = vmul.f32 %v725, %v760
  %v774 = vmul.f32 %v726, %v765
  %v775 = vadd.f32 %v767, 0.0
  %v776 = vadd.f32 %v768, 0.0
  %v777 = vadd.f32 %v769, 0.0
  %v778 = vadd.f32 %v770, 0.0
  %v779 = vadd.f32 %v771, 0.0
  %v780 = vadd.f32 %v772, 0.0
  %v781 = vadd.f32 %v773, 0.0
  %v782 = vadd.f32 %v774, 0.0
  %783 = vrot.lane.b32.xlu0 %v680, 3
  %v784 = vpop.permute.xlu0 %783
  %785 = vrot.lane.b32.xlu0 %v681, 3
  %v786 = vpop.permute.xlu0 %785
  %787 = vrot.lane.b32.xlu0 %v682, 3
  %v788 = vpop.permute.xlu0 %787
  %789 = vrot.lane.b32.xlu0 %v683, 3
  %v790 = vpop.permute.xlu0 %789
  %791 = vrot.lane.b32.xlu0 %v684, 3
  %v792 = vpop.permute.xlu0 %791
  %793 = vrot.lane.b32.xlu0 %v685, 3
  %v794 = vpop.permute.xlu0 %793
  %795 = vrot.lane.b32.xlu0 %v686, 3
  %v796 = vpop.permute.xlu0 %795
  %797 = vrot.lane.b32.xlu0 %v687, 3
  %v798 = vpop.permute.xlu0 %797
  %vm799 = vcmp.ge.s32.totalorder %v697, 3
  %vm800 = vcmp.lt.s32.totalorder %v697, 131
  %vm801 = vmand %vm799, %vm800
  %v802 = vsel %vm801, 1, 0
  %vm803 = vcmp.eq.s32.totalorder %v802, 1
  %v804 = vsel %vm803, %v784, 0.0
  %v805 = vsel %vm803, %v786, 0.0
  %v806 = vsel %vm803, %v788, 0.0
  %v807 = vsel %vm803, %v790, 0.0
  %v808 = vsel %vm803, %v792, 0.0
  %v809 = vsel %vm803, %v794, 0.0
  %v810 = vsel %vm803, %v796, 0.0
  %v811 = vsel %vm803, %v798, 0.0
  %812 = vset.pattern.permute.xlu0 1
  %813 = vperm.xlu0 %812, %v688
  %v814 = vpop.permute.xlu0 %813
  %816 = vset.pattern.permute.xlu0 1
  %817 = vperm.xlu0 %816, %v689
  %v818 = vpop.permute.xlu0 %817
  %820 = vset.pattern.permute.xlu0 1
  %821 = vperm.xlu0 %820, %v690
  %v822 = vpop.permute.xlu0 %821
  %824 = vset.pattern.permute.xlu0 1
  %825 = vperm.xlu0 %824, %v691
  %v826 = vpop.permute.xlu0 %825
  %828 = vset.pattern.permute.xlu0 1
  %829 = vperm.xlu0 %828, %v692
  %v830 = vpop.permute.xlu0 %829
  %832 = vset.pattern.permute.xlu0 1
  %833 = vperm.xlu0 %832, %v693
  %v834 = vpop.permute.xlu0 %833
  %836 = vset.pattern.permute.xlu0 1
  %837 = vperm.xlu0 %836, %v694
  %v838 = vpop.permute.xlu0 %837
  %840 = vset.pattern.permute.xlu0 1
  %841 = vperm.xlu0 %840, %v695
  %v842 = vpop.permute.xlu0 %841
  %v844 = vmul.f32 %v804, %v814
  %v845 = vmul.f32 %v805, %v818
  %v846 = vmul.f32 %v806, %v822
  %v847 = vmul.f32 %v807, %v826
  %v848 = vmul.f32 %v808, %v830
  %v849 = vmul.f32 %v809, %v834
  %v850 = vmul.f32 %v810, %v838
  %v851 = vmul.f32 %v811, %v842
  %v852 = vadd.f32 %v775, %v844
  %v853 = vadd.f32 %v776, %v845
  %v854 = vadd.f32 %v777, %v846
  %v855 = vadd.f32 %v778, %v847
  %v856 = vadd.f32 %v779, %v848
  %v857 = vadd.f32 %v780, %v849
  %v858 = vadd.f32 %v781, %v850
  %v859 = vadd.f32 %v782, %v851
  %860 = vrot.lane.b32.xlu0 %v680, 2
  %v861 = vpop.permute.xlu0 %860
  %862 = vrot.lane.b32.xlu0 %v681, 2
  %v863 = vpop.permute.xlu0 %862
  %864 = vrot.lane.b32.xlu0 %v682, 2
  %v865 = vpop.permute.xlu0 %864
  %866 = vrot.lane.b32.xlu0 %v683, 2
  %v867 = vpop.permute.xlu0 %866
  %868 = vrot.lane.b32.xlu0 %v684, 2
  %v869 = vpop.permute.xlu0 %868
  %870 = vrot.lane.b32.xlu0 %v685, 2
  %v871 = vpop.permute.xlu0 %870
  %872 = vrot.lane.b32.xlu0 %v686, 2
  %v873 = vpop.permute.xlu0 %872
  %874 = vrot.lane.b32.xlu0 %v687, 2
  %v875 = vpop.permute.xlu0 %874
  %vm876 = vcmp.ge.s32.totalorder %v697, 2
  %vm877 = vcmp.lt.s32.totalorder %v697, 130
  %vm878 = vmand %vm876, %vm877
  %v879 = vsel %vm878, 1, 0
  %vm880 = vcmp.eq.s32.totalorder %v879, 1
  %v881 = vsel %vm880, %v861, 0.0
  %v882 = vsel %vm880, %v863, 0.0
  %v883 = vsel %vm880, %v865, 0.0
  %v884 = vsel %vm880, %v867, 0.0
  %v885 = vsel %vm880, %v869, 0.0
  %v886 = vsel %vm880, %v871, 0.0
  %v887 = vsel %vm880, %v873, 0.0
  %v888 = vsel %vm880, %v875, 0.0
  %889 = vset.pattern.permute.xlu0 2
  %890 = vperm.xlu0 %889, %v688
  %v891 = vpop.permute.xlu0 %890
  %893 = vset.pattern.permute.xlu0 2
  %894 = vperm.xlu0 %893, %v689
  %v895 = vpop.permute.xlu0 %894
  %897 = vset.pattern.permute.xlu0 2
  %898 = vperm.xlu0 %897, %v690
  %v899 = vpop.permute.xlu0 %898
  %901 = vset.pattern.permute.xlu0 2
  %902 = vperm.xlu0 %901, %v691
  %v903 = vpop.permute.xlu0 %902
  %905 = vset.pattern.permute.xlu0 2
  %906 = vperm.xlu0 %905, %v692
  %v907 = vpop.permute.xlu0 %906
  %909 = vset.pattern.permute.xlu0 2
  %910 = vperm.xlu0 %909, %v693
  %v911 = vpop.permute.xlu0 %910
  %913 = vset.pattern.permute.xlu0 2
  %914 = vperm.xlu0 %913, %v694
  %v915 = vpop.permute.xlu0 %914
  %917 = vset.pattern.permute.xlu0 2
  %918 = vperm.xlu0 %917, %v695
  %v919 = vpop.permute.xlu0 %918
  %v921 = vmul.f32 %v881, %v891
  %v922 = vmul.f32 %v882, %v895
  %v923 = vmul.f32 %v883, %v899
  %v924 = vmul.f32 %v884, %v903
  %v925 = vmul.f32 %v885, %v907
  %v926 = vmul.f32 %v886, %v911
  %v927 = vmul.f32 %v887, %v915
  %v928 = vmul.f32 %v888, %v919
  %v929 = vadd.f32 %v852, %v921
  %v930 = vadd.f32 %v853, %v922
  %v931 = vadd.f32 %v854, %v923
  %v932 = vadd.f32 %v855, %v924
  %v933 = vadd.f32 %v856, %v925
  %v934 = vadd.f32 %v857, %v926
  %v935 = vadd.f32 %v858, %v927
  %v936 = vadd.f32 %v859, %v928
  %937 = vrot.lane.b32.xlu0 %v680, 1
  %v938 = vpop.permute.xlu0 %937
  %939 = vrot.lane.b32.xlu0 %v681, 1
  %v940 = vpop.permute.xlu0 %939
  %941 = vrot.lane.b32.xlu0 %v682, 1
  %v942 = vpop.permute.xlu0 %941
  %943 = vrot.lane.b32.xlu0 %v683, 1
  %v944 = vpop.permute.xlu0 %943
  %945 = vrot.lane.b32.xlu0 %v684, 1
  %v946 = vpop.permute.xlu0 %945
  %947 = vrot.lane.b32.xlu0 %v685, 1
  %v948 = vpop.permute.xlu0 %947
  %949 = vrot.lane.b32.xlu0 %v686, 1
  %v950 = vpop.permute.xlu0 %949
  %951 = vrot.lane.b32.xlu0 %v687, 1
  %v952 = vpop.permute.xlu0 %951
  %vm953 = vcmp.ge.s32.totalorder %v697, 1
  %vm954 = vcmp.lt.s32.totalorder %v697, 129
  %vm955 = vmand %vm953, %vm954
  %v956 = vsel %vm955, 1, 0
  %vm957 = vcmp.eq.s32.totalorder %v956, 1
  %v958 = vsel %vm957, %v938, 0.0
  %v959 = vsel %vm957, %v940, 0.0
  %v960 = vsel %vm957, %v942, 0.0
  %v961 = vsel %vm957, %v944, 0.0
  %v962 = vsel %vm957, %v946, 0.0
  %v963 = vsel %vm957, %v948, 0.0
  %v964 = vsel %vm957, %v950, 0.0
  %v965 = vsel %vm957, %v952, 0.0
  %966 = vset.pattern.permute.xlu0 3
  %967 = vperm.xlu0 %966, %v688
  %v968 = vpop.permute.xlu0 %967
  %970 = vset.pattern.permute.xlu0 3
  %971 = vperm.xlu0 %970, %v689
  %v972 = vpop.permute.xlu0 %971
  %974 = vset.pattern.permute.xlu0 3
  %975 = vperm.xlu0 %974, %v690
  %v976 = vpop.permute.xlu0 %975
  %978 = vset.pattern.permute.xlu0 3
  %979 = vperm.xlu0 %978, %v691
  %v980 = vpop.permute.xlu0 %979
  %982 = vset.pattern.permute.xlu0 3
  %983 = vperm.xlu0 %982, %v692
  %v984 = vpop.permute.xlu0 %983
  %986 = vset.pattern.permute.xlu0 3
  %987 = vperm.xlu0 %986, %v693
  %v988 = vpop.permute.xlu0 %987
  %990 = vset.pattern.permute.xlu0 3
  %991 = vperm.xlu0 %990, %v694
  %v992 = vpop.permute.xlu0 %991
  %994 = vset.pattern.permute.xlu0 3
  %995 = vperm.xlu0 %994, %v695
  %v996 = vpop.permute.xlu0 %995
  %v998 = vmul.f32 %v958, %v968
  %v999 = vmul.f32 %v959, %v972
  %v1000 = vmul.f32 %v960, %v976
  %v1001 = vmul.f32 %v961, %v980
  %v1002 = vmul.f32 %v962, %v984
  %v1003 = vmul.f32 %v963, %v988
  %v1004 = vmul.f32 %v964, %v992
  %v1005 = vmul.f32 %v965, %v996
  %v1006 = vadd.f32 %v929, %v998
  %v1007 = vadd.f32 %v930, %v999
  %v1008 = vadd.f32 %v931, %v1000
  %v1009 = vadd.f32 %v932, %v1001
  %v1010 = vadd.f32 %v933, %v1002
  %v1011 = vadd.f32 %v934, %v1003
  %v1012 = vadd.f32 %v935, %v1004
  %v1013 = vadd.f32 %v936, %v1005
  %1014 = vset.pattern.permute.xlu0 4
  %1015 = vperm.xlu0 %1014, %v688
  %v1016 = vpop.permute.xlu0 %1015
  %1018 = vset.pattern.permute.xlu0 4
  %1019 = vperm.xlu0 %1018, %v689
  %v1020 = vpop.permute.xlu0 %1019
  %1022 = vset.pattern.permute.xlu0 4
  %1023 = vperm.xlu0 %1022, %v690
  %v1024 = vpop.permute.xlu0 %1023
  %1026 = vset.pattern.permute.xlu0 4
  %1027 = vperm.xlu0 %1026, %v691
  %v1028 = vpop.permute.xlu0 %1027
  %1030 = vset.pattern.permute.xlu0 4
  %1031 = vperm.xlu0 %1030, %v692
  %v1032 = vpop.permute.xlu0 %1031
  %1034 = vset.pattern.permute.xlu0 4
  %1035 = vperm.xlu0 %1034, %v693
  %v1036 = vpop.permute.xlu0 %1035
  %1038 = vset.pattern.permute.xlu0 4
  %1039 = vperm.xlu0 %1038, %v694
  %v1040 = vpop.permute.xlu0 %1039
  %1042 = vset.pattern.permute.xlu0 4
  %1043 = vperm.xlu0 %1042, %v695
  %v1044 = vpop.permute.xlu0 %1043
  %v1046 = vmul.f32 %v680, %v1016
  %v1047 = vmul.f32 %v681, %v1020
  %v1048 = vmul.f32 %v682, %v1024
  %v1049 = vmul.f32 %v683, %v1028
  %v1050 = vmul.f32 %v684, %v1032
  %v1051 = vmul.f32 %v685, %v1036
  %v1052 = vmul.f32 %v686, %v1040
  %v1053 = vmul.f32 %v687, %v1044
  %v1054 = vadd.f32 %v1006, %v1046
  %v1055 = vadd.f32 %v1007, %v1047
  %v1056 = vadd.f32 %v1008, %v1048
  %v1057 = vadd.f32 %v1009, %v1049
  %v1058 = vadd.f32 %v1010, %v1050
  %v1059 = vadd.f32 %v1011, %v1051
  %v1060 = vadd.f32 %v1012, %v1052
  %v1061 = vadd.f32 %v1013, %v1053
  %1062 = vrot.lane.b32.xlu0 %v680, 127
  %v1063 = vpop.permute.xlu0 %1062
  %1064 = vrot.lane.b32.xlu0 %v681, 127
  %v1065 = vpop.permute.xlu0 %1064
  %1066 = vrot.lane.b32.xlu0 %v682, 127
  %v1067 = vpop.permute.xlu0 %1066
  %1068 = vrot.lane.b32.xlu0 %v683, 127
  %v1069 = vpop.permute.xlu0 %1068
  %1070 = vrot.lane.b32.xlu0 %v684, 127
  %v1071 = vpop.permute.xlu0 %1070
  %1072 = vrot.lane.b32.xlu0 %v685, 127
  %v1073 = vpop.permute.xlu0 %1072
  %1074 = vrot.lane.b32.xlu0 %v686, 127
  %v1075 = vpop.permute.xlu0 %1074
  %1076 = vrot.lane.b32.xlu0 %v687, 127
  %v1077 = vpop.permute.xlu0 %1076
  %vm1078 = vcmp.ge.s32.totalorder %v697, 4294967295
  %vm1079 = vcmp.lt.s32.totalorder %v697, 127
  %vm1080 = vmand %vm1078, %vm1079
  %v1081 = vsel %vm1080, 1, 0
  %vm1082 = vcmp.eq.s32.totalorder %v1081, 1
  %v1083 = vsel %vm1082, %v1063, 0.0
  %v1084 = vsel %vm1082, %v1065, 0.0
  %v1085 = vsel %vm1082, %v1067, 0.0
  %v1086 = vsel %vm1082, %v1069, 0.0
  %v1087 = vsel %vm1082, %v1071, 0.0
  %v1088 = vsel %vm1082, %v1073, 0.0
  %v1089 = vsel %vm1082, %v1075, 0.0
  %v1090 = vsel %vm1082, %v1077, 0.0
  %1091 = vset.pattern.permute.xlu0 5
  %1092 = vperm.xlu0 %1091, %v688
  %v1093 = vpop.permute.xlu0 %1092
  %1095 = vset.pattern.permute.xlu0 5
  %1096 = vperm.xlu0 %1095, %v689
  %v1097 = vpop.permute.xlu0 %1096
  %1099 = vset.pattern.permute.xlu0 5
  %1100 = vperm.xlu0 %1099, %v690
  %v1101 = vpop.permute.xlu0 %1100
  %1103 = vset.pattern.permute.xlu0 5
  %1104 = vperm.xlu0 %1103, %v691
  %v1105 = vpop.permute.xlu0 %1104
  %1107 = vset.pattern.permute.xlu0 5
  %1108 = vperm.xlu0 %1107, %v692
  %v1109 = vpop.permute.xlu0 %1108
  %1111 = vset.pattern.permute.xlu0 5
  %1112 = vperm.xlu0 %1111, %v693
  %v1113 = vpop.permute.xlu0 %1112
  %1115 = vset.pattern.permute.xlu0 5
  %1116 = vperm.xlu0 %1115, %v694
  %v1117 = vpop.permute.xlu0 %1116
  %1119 = vset.pattern.permute.xlu0 5
  %1120 = vperm.xlu0 %1119, %v695
  %v1121 = vpop.permute.xlu0 %1120
  %v1123 = vmul.f32 %v1083, %v1093
  %v1124 = vmul.f32 %v1084, %v1097
  %v1125 = vmul.f32 %v1085, %v1101
  %v1126 = vmul.f32 %v1086, %v1105
  %v1127 = vmul.f32 %v1087, %v1109
  %v1128 = vmul.f32 %v1088, %v1113
  %v1129 = vmul.f32 %v1089, %v1117
  %v1130 = vmul.f32 %v1090, %v1121
  %v1131 = vadd.f32 %v1054, %v1123
  %v1132 = vadd.f32 %v1055, %v1124
  %v1133 = vadd.f32 %v1056, %v1125
  %v1134 = vadd.f32 %v1057, %v1126
  %v1135 = vadd.f32 %v1058, %v1127
  %v1136 = vadd.f32 %v1059, %v1128
  %v1137 = vadd.f32 %v1060, %v1129
  %v1138 = vadd.f32 %v1061, %v1130
  %1139 = vrot.lane.b32.xlu0 %v680, 126
  %v1140 = vpop.permute.xlu0 %1139
  %1141 = vrot.lane.b32.xlu0 %v681, 126
  %v1142 = vpop.permute.xlu0 %1141
  %1143 = vrot.lane.b32.xlu0 %v682, 126
  %v1144 = vpop.permute.xlu0 %1143
  %1145 = vrot.lane.b32.xlu0 %v683, 126
  %v1146 = vpop.permute.xlu0 %1145
  %1147 = vrot.lane.b32.xlu0 %v684, 126
  %v1148 = vpop.permute.xlu0 %1147
  %1149 = vrot.lane.b32.xlu0 %v685, 126
  %v1150 = vpop.permute.xlu0 %1149
  %1151 = vrot.lane.b32.xlu0 %v686, 126
  %v1152 = vpop.permute.xlu0 %1151
  %1153 = vrot.lane.b32.xlu0 %v687, 126
  %v1154 = vpop.permute.xlu0 %1153
  %vm1155 = vcmp.ge.s32.totalorder %v697, 4294967294
  %vm1156 = vcmp.lt.s32.totalorder %v697, 126
  %vm1157 = vmand %vm1155, %vm1156
  %v1158 = vsel %vm1157, 1, 0
  %vm1159 = vcmp.eq.s32.totalorder %v1158, 1
  %v1160 = vsel %vm1159, %v1140, 0.0
  %v1161 = vsel %vm1159, %v1142, 0.0
  %v1162 = vsel %vm1159, %v1144, 0.0
  %v1163 = vsel %vm1159, %v1146, 0.0
  %v1164 = vsel %vm1159, %v1148, 0.0
  %v1165 = vsel %vm1159, %v1150, 0.0
  %v1166 = vsel %vm1159, %v1152, 0.0
  %v1167 = vsel %vm1159, %v1154, 0.0
  %1168 = vset.pattern.permute.xlu0 6
  %1169 = vperm.xlu0 %1168, %v688
  %v1170 = vpop.permute.xlu0 %1169
  %1172 = vset.pattern.permute.xlu0 6
  %1173 = vperm.xlu0 %1172, %v689
  %v1174 = vpop.permute.xlu0 %1173
  %1176 = vset.pattern.permute.xlu0 6
  %1177 = vperm.xlu0 %1176, %v690
  %v1178 = vpop.permute.xlu0 %1177
  %1180 = vset.pattern.permute.xlu0 6
  %1181 = vperm.xlu0 %1180, %v691
  %v1182 = vpop.permute.xlu0 %1181
  %1184 = vset.pattern.permute.xlu0 6
  %1185 = vperm.xlu0 %1184, %v692
  %v1186 = vpop.permute.xlu0 %1185
  %1188 = vset.pattern.permute.xlu0 6
  %1189 = vperm.xlu0 %1188, %v693
  %v1190 = vpop.permute.xlu0 %1189
  %1192 = vset.pattern.permute.xlu0 6
  %1193 = vperm.xlu0 %1192, %v694
  %v1194 = vpop.permute.xlu0 %1193
  %1196 = vset.pattern.permute.xlu0 6
  %1197 = vperm.xlu0 %1196, %v695
  %v1198 = vpop.permute.xlu0 %1197
  %v1200 = vmul.f32 %v1160, %v1170
  %v1201 = vmul.f32 %v1161, %v1174
  %v1202 = vmul.f32 %v1162, %v1178
  %v1203 = vmul.f32 %v1163, %v1182
  %v1204 = vmul.f32 %v1164, %v1186
  %v1205 = vmul.f32 %v1165, %v1190
  %v1206 = vmul.f32 %v1166, %v1194
  %v1207 = vmul.f32 %v1167, %v1198
  %v1208 = vadd.f32 %v1131, %v1200
  %v1209 = vadd.f32 %v1132, %v1201
  %v1210 = vadd.f32 %v1133, %v1202
  %v1211 = vadd.f32 %v1134, %v1203
  %v1212 = vadd.f32 %v1135, %v1204
  %v1213 = vadd.f32 %v1136, %v1205
  %v1214 = vadd.f32 %v1137, %v1206
  %v1215 = vadd.f32 %v1138, %v1207
  %1216 = vrot.lane.b32.xlu0 %v680, 125
  %v1217 = vpop.permute.xlu0 %1216
  %1218 = vrot.lane.b32.xlu0 %v681, 125
  %v1219 = vpop.permute.xlu0 %1218
  %1220 = vrot.lane.b32.xlu0 %v682, 125
  %v1221 = vpop.permute.xlu0 %1220
  %1222 = vrot.lane.b32.xlu0 %v683, 125
  %v1223 = vpop.permute.xlu0 %1222
  %1224 = vrot.lane.b32.xlu0 %v684, 125
  %v1225 = vpop.permute.xlu0 %1224
  %1226 = vrot.lane.b32.xlu0 %v685, 125
  %v1227 = vpop.permute.xlu0 %1226
  %1228 = vrot.lane.b32.xlu0 %v686, 125
  %v1229 = vpop.permute.xlu0 %1228
  %1230 = vrot.lane.b32.xlu0 %v687, 125
  %v1231 = vpop.permute.xlu0 %1230
  %vm1232 = vcmp.ge.s32.totalorder %v697, 4294967293
  %vm1233 = vcmp.lt.s32.totalorder %v697, 125
  %vm1234 = vmand %vm1232, %vm1233
  %v1235 = vsel %vm1234, 1, 0
  %vm1236 = vcmp.eq.s32.totalorder %v1235, 1
  %v1237 = vsel %vm1236, %v1217, 0.0
  %v1238 = vsel %vm1236, %v1219, 0.0
  %v1239 = vsel %vm1236, %v1221, 0.0
  %v1240 = vsel %vm1236, %v1223, 0.0
  %v1241 = vsel %vm1236, %v1225, 0.0
  %v1242 = vsel %vm1236, %v1227, 0.0
  %v1243 = vsel %vm1236, %v1229, 0.0
  %v1244 = vsel %vm1236, %v1231, 0.0
  %1245 = vset.pattern.permute.xlu0 7
  %1246 = vperm.xlu0 %1245, %v688
  %v1247 = vpop.permute.xlu0 %1246
  %1249 = vset.pattern.permute.xlu0 7
  %1250 = vperm.xlu0 %1249, %v689
  %v1251 = vpop.permute.xlu0 %1250
  %1253 = vset.pattern.permute.xlu0 7
  %1254 = vperm.xlu0 %1253, %v690
  %v1255 = vpop.permute.xlu0 %1254
  %1257 = vset.pattern.permute.xlu0 7
  %1258 = vperm.xlu0 %1257, %v691
  %v1259 = vpop.permute.xlu0 %1258
  %1261 = vset.pattern.permute.xlu0 7
  %1262 = vperm.xlu0 %1261, %v692
  %v1263 = vpop.permute.xlu0 %1262
  %1265 = vset.pattern.permute.xlu0 7
  %1266 = vperm.xlu0 %1265, %v693
  %v1267 = vpop.permute.xlu0 %1266
  %1269 = vset.pattern.permute.xlu0 7
  %1270 = vperm.xlu0 %1269, %v694
  %v1271 = vpop.permute.xlu0 %1270
  %1273 = vset.pattern.permute.xlu0 7
  %1274 = vperm.xlu0 %1273, %v695
  %v1275 = vpop.permute.xlu0 %1274
  %v1277 = vmul.f32 %v1237, %v1247
  %v1278 = vmul.f32 %v1238, %v1251
  %v1279 = vmul.f32 %v1239, %v1255
  %v1280 = vmul.f32 %v1240, %v1259
  %v1281 = vmul.f32 %v1241, %v1263
  %v1282 = vmul.f32 %v1242, %v1267
  %v1283 = vmul.f32 %v1243, %v1271
  %v1284 = vmul.f32 %v1244, %v1275
  %v1285 = vadd.f32 %v1208, %v1277
  %v1286 = vadd.f32 %v1209, %v1278
  %v1287 = vadd.f32 %v1210, %v1279
  %v1288 = vadd.f32 %v1211, %v1280
  %v1289 = vadd.f32 %v1212, %v1281
  %v1290 = vadd.f32 %v1213, %v1282
  %v1291 = vadd.f32 %v1214, %v1283
  %v1292 = vadd.f32 %v1215, %v1284
  %1293 = vrot.lane.b32.xlu0 %v680, 124
  %v1294 = vpop.permute.xlu0 %1293
  %1295 = vrot.lane.b32.xlu0 %v681, 124
  %v1296 = vpop.permute.xlu0 %1295
  %1297 = vrot.lane.b32.xlu0 %v682, 124
  %v1298 = vpop.permute.xlu0 %1297
  %1299 = vrot.lane.b32.xlu0 %v683, 124
  %v1300 = vpop.permute.xlu0 %1299
  %1301 = vrot.lane.b32.xlu0 %v684, 124
  %v1302 = vpop.permute.xlu0 %1301
  %1303 = vrot.lane.b32.xlu0 %v685, 124
  %v1304 = vpop.permute.xlu0 %1303
  %1305 = vrot.lane.b32.xlu0 %v686, 124
  %v1306 = vpop.permute.xlu0 %1305
  %1307 = vrot.lane.b32.xlu0 %v687, 124
  %v1308 = vpop.permute.xlu0 %1307
  %vm1309 = vcmp.ge.s32.totalorder %v697, 4294967292
  %vm1310 = vcmp.lt.s32.totalorder %v697, 124
  %vm1311 = vmand %vm1309, %vm1310
  %v1312 = vsel %vm1311, 1, 0
  %vm1313 = vcmp.eq.s32.totalorder %v1312, 1
  %v1314 = vsel %vm1313, %v1294, 0.0
  %v1315 = vsel %vm1313, %v1296, 0.0
  %v1316 = vsel %vm1313, %v1298, 0.0
  %v1317 = vsel %vm1313, %v1300, 0.0
  %v1318 = vsel %vm1313, %v1302, 0.0
  %v1319 = vsel %vm1313, %v1304, 0.0
  %v1320 = vsel %vm1313, %v1306, 0.0
  %v1321 = vsel %vm1313, %v1308, 0.0
  %1322 = vset.pattern.permute.xlu0 8
  %1323 = vperm.xlu0 %1322, %v688
  %v1324 = vpop.permute.xlu0 %1323
  %1326 = vset.pattern.permute.xlu0 8
  %1327 = vperm.xlu0 %1326, %v689
  %v1328 = vpop.permute.xlu0 %1327
  %1330 = vset.pattern.permute.xlu0 8
  %1331 = vperm.xlu0 %1330, %v690
  %v1332 = vpop.permute.xlu0 %1331
  %1334 = vset.pattern.permute.xlu0 8
  %1335 = vperm.xlu0 %1334, %v691
  %v1336 = vpop.permute.xlu0 %1335
  %1338 = vset.pattern.permute.xlu0 8
  %1339 = vperm.xlu0 %1338, %v692
  %v1340 = vpop.permute.xlu0 %1339
  %1342 = vset.pattern.permute.xlu0 8
  %1343 = vperm.xlu0 %1342, %v693
  %v1344 = vpop.permute.xlu0 %1343
  %1346 = vset.pattern.permute.xlu0 8
  %1347 = vperm.xlu0 %1346, %v694
  %v1348 = vpop.permute.xlu0 %1347
  %1350 = vset.pattern.permute.xlu0 8
  %1351 = vperm.xlu0 %1350, %v695
  %v1352 = vpop.permute.xlu0 %1351
  %v1354 = vmul.f32 %v1314, %v1324
  %v1355 = vmul.f32 %v1315, %v1328
  %v1356 = vmul.f32 %v1316, %v1332
  %v1357 = vmul.f32 %v1317, %v1336
  %v1358 = vmul.f32 %v1318, %v1340
  %v1359 = vmul.f32 %v1319, %v1344
  %v1360 = vmul.f32 %v1320, %v1348
  %v1361 = vmul.f32 %v1321, %v1352
  %v1362 = vadd.f32 %v1285, %v1354
  %v1363 = vadd.f32 %v1286, %v1355
  %v1364 = vadd.f32 %v1287, %v1356
  %v1365 = vadd.f32 %v1288, %v1357
  %v1366 = vadd.f32 %v1289, %v1358
  %v1367 = vadd.f32 %v1290, %v1359
  %v1368 = vadd.f32 %v1291, %v1360
  %v1369 = vadd.f32 %v1292, %v1361
  %v1370 = vld [vmem:[%s6] sm:$0xff]
  %v1371 = vld [vmem:[%s6 + $0x8] sm:$0xff]
  %v1372 = vld [vmem:[%s6 + $0x10] sm:$0xff]
  %v1373 = vld [vmem:[%s6 + $0x18] sm:$0xff]
  %v1374 = vld [vmem:[%s6 + $0x20] sm:$0xff]
  %v1375 = vld [vmem:[%s6 + $0x28] sm:$0xff]
  %v1376 = vld [vmem:[%s6 + $0x30] sm:$0xff]
  %v1377 = vld [vmem:[%s6 + $0x38] sm:$0xff]
  %1379 = vset.pattern.permute.xlu0 0
  %1380 = vperm.xlu0 %1379, %v1370
  %v1381 = vpop.permute.xlu0 %1380
  %1384 = vset.pattern.permute.xlu0 0
  %1385 = vperm.xlu0 %1384, %v1371
  %v1386 = vpop.permute.xlu0 %1385
  %1389 = vset.pattern.permute.xlu0 0
  %1390 = vperm.xlu0 %1389, %v1372
  %v1391 = vpop.permute.xlu0 %1390
  %1394 = vset.pattern.permute.xlu0 0
  %1395 = vperm.xlu0 %1394, %v1373
  %v1396 = vpop.permute.xlu0 %1395
  %1399 = vset.pattern.permute.xlu0 0
  %1400 = vperm.xlu0 %1399, %v1374
  %v1401 = vpop.permute.xlu0 %1400
  %1404 = vset.pattern.permute.xlu0 0
  %1405 = vperm.xlu0 %1404, %v1375
  %v1406 = vpop.permute.xlu0 %1405
  %1409 = vset.pattern.permute.xlu0 0
  %1410 = vperm.xlu0 %1409, %v1376
  %v1411 = vpop.permute.xlu0 %1410
  %1414 = vset.pattern.permute.xlu0 0
  %1415 = vperm.xlu0 %1414, %v1377
  %v1416 = vpop.permute.xlu0 %1415
  %v1418 = vadd.f32 %v1362, %v1381
  %v1419 = vadd.f32 %v1363, %v1386
  %v1420 = vadd.f32 %v1364, %v1391
  %v1421 = vadd.f32 %v1365, %v1396
  %v1422 = vadd.f32 %v1366, %v1401
  %v1423 = vadd.f32 %v1367, %v1406
  %v1424 = vadd.f32 %v1368, %v1411
  %v1425 = vadd.f32 %v1369, %v1416
  %v1426 = vld [vmem:[%s7] sm:$0xff]
  %v1427 = vld [vmem:[%s7 + $0x8] sm:$0xff]
  %v1428 = vld [vmem:[%s7 + $0x10] sm:$0xff]
  %v1429 = vld [vmem:[%s7 + $0x18] sm:$0xff]
  %v1430 = vld [vmem:[%s7 + $0x20] sm:$0xff]
  %v1431 = vld [vmem:[%s7 + $0x28] sm:$0xff]
  %v1432 = vld [vmem:[%s7 + $0x30] sm:$0xff]
  %v1433 = vld [vmem:[%s7 + $0x38] sm:$0xff]
  %v1434 = vld [vmem:[%s8] sm:$0xff]
  %v1435 = vld [vmem:[%s8 + $0x8] sm:$0xff]
  %v1436 = vld [vmem:[%s8 + $0x10] sm:$0xff]
  %v1437 = vld [vmem:[%s8 + $0x18] sm:$0xff]
  %v1438 = vld [vmem:[%s8 + $0x20] sm:$0xff]
  %v1439 = vld [vmem:[%s8 + $0x28] sm:$0xff]
  %v1440 = vld [vmem:[%s8 + $0x30] sm:$0xff]
  %v1441 = vld [vmem:[%s8 + $0x38] sm:$0xff]
  %1443 = vset.pattern.permute.xlu0 0
  %1444 = vperm.xlu0 %1443, %v1434
  %v1445 = vpop.permute.xlu0 %1444
  %1448 = vset.pattern.permute.xlu0 0
  %1449 = vperm.xlu0 %1448, %v1435
  %v1450 = vpop.permute.xlu0 %1449
  %1453 = vset.pattern.permute.xlu0 0
  %1454 = vperm.xlu0 %1453, %v1436
  %v1455 = vpop.permute.xlu0 %1454
  %1458 = vset.pattern.permute.xlu0 0
  %1459 = vperm.xlu0 %1458, %v1437
  %v1460 = vpop.permute.xlu0 %1459
  %1463 = vset.pattern.permute.xlu0 0
  %1464 = vperm.xlu0 %1463, %v1438
  %v1465 = vpop.permute.xlu0 %1464
  %1468 = vset.pattern.permute.xlu0 0
  %1469 = vperm.xlu0 %1468, %v1439
  %v1470 = vpop.permute.xlu0 %1469
  %1473 = vset.pattern.permute.xlu0 0
  %1474 = vperm.xlu0 %1473, %v1440
  %v1475 = vpop.permute.xlu0 %1474
  %1478 = vset.pattern.permute.xlu0 0
  %1479 = vperm.xlu0 %1478, %v1441
  %v1480 = vpop.permute.xlu0 %1479
  %vm1482 = vcmask 523264
  %v1484 = vsel %vm1482, %v1426, 0
  %v1487 = vsel %vm1482, %v1427, 0
  %v1490 = vsel %vm1482, %v1428, 0
  %v1493 = vsel %vm1482, %v1429, 0
  %v1496 = vsel %vm1482, %v1430, 0
  %v1499 = vsel %vm1482, %v1431, 0
  %v1502 = vsel %vm1482, %v1432, 0
  %v1505 = vsel %vm1482, %v1433, 0
  %1507 = vmatprep.subr.mxu0 0.0
  %1508 = vmatpush1.msra.mxu0 %v1418
  %1509 = vmatprep.subr.mxu0 0.0
  %1510 = vmatpush1.msra.mxu0 %v1419
  %1511 = vmatprep.subr.mxu0 0.0
  %1512 = vmatpush1.msra.mxu0 %v1420
  %1513 = vmatprep.subr.mxu0 0.0
  %1514 = vmatpush1.msra.mxu0 %v1421
  %1515 = vmatprep.subr.mxu0 0.0
  %1516 = vmatpush1.msra.mxu0 %v1422
  %1517 = vmatprep.subr.mxu0 0.0
  %1518 = vmatpush1.msra.mxu0 %v1423
  %1519 = vmatprep.subr.mxu0 0.0
  %1520 = vmatpush1.msra.mxu0 %v1424
  %1521 = vmatprep.subr.mxu0 0.0
  %1522 = vmatpush1.msra.mxu0 %v1425
  %1523 = vmatprep.subr.mxu0 0.0
  %1524 = vmatpush1.msra.mxu0 0.0
  %1525 = vmatprep.subr.mxu0 0.0
  %1526 = vmatpush1.msra.mxu0 0.0
  %1527 = vmatprep.subr.mxu0 0.0
  %1528 = vmatpush1.msra.mxu0 0.0
  %1529 = vmatprep.subr.mxu0 0.0
  %1530 = vmatpush1.msra.mxu0 0.0
  %1531 = vmatprep.subr.mxu0 0.0
  %1532 = vmatpush1.msra.mxu0 0.0
  %1533 = vmatprep.subr.mxu0 0.0
  %1534 = vmatpush1.msra.mxu0 0.0
  %1535 = vmatprep.subr.mxu0 0.0
  %1536 = vmatpush1.msra.mxu0 0.0
  %1537 = vmatprep.subr.mxu0 0.0
  %1538 = vmatpush1.msra.mxu0 0.0
  %1539 = vmatprep.subr.mxu0 0.0
  %1540 = vmatpush1.msra.mxu0 0.0
  %1541 = vmatprep.subr.mxu0 0.0
  %1542 = vmatpush1.msra.mxu0 0.0
  %1543 = vmatprep.subr.mxu0 0.0
  %1544 = vmatpush1.msra.mxu0 0.0
  %1545 = vmatprep.subr.mxu0 0.0
  %1546 = vmatpush1.msra.mxu0 0.0
  %1547 = vmatprep.subr.mxu0 0.0
  %1548 = vmatpush1.msra.mxu0 0.0
  %1549 = vmatprep.subr.mxu0 0.0
  %1550 = vmatpush1.msra.mxu0 0.0
  %1551 = vmatprep.subr.mxu0 0.0
  %1552 = vmatpush1.msra.mxu0 0.0
  %1553 = vmatprep.subr.mxu0 0.0
  %1554 = vmatpush1.msra.mxu0 0.0
  %1555 = vmatprep.subr.mxu0 0.0
  %1556 = vmatpush1.msra.mxu0 0.0
  %1557 = vmatprep.subr.mxu0 0.0
  %1558 = vmatpush1.msra.mxu0 0.0
  %1559 = vmatprep.subr.mxu0 0.0
  %1560 = vmatpush1.msra.mxu0 0.0
  %1561 = vmatprep.subr.mxu0 0.0
  %1562 = vmatpush1.msra.mxu0 0.0
  %1563 = vmatprep.subr.mxu0 0.0
  %1564 = vmatpush1.msra.mxu0 0.0
  %1565 = vmatprep.subr.mxu0 0.0
  %1566 = vmatpush1.msra.mxu0 0.0
  %1567 = vmatprep.subr.mxu0 0.0
  %1568 = vmatpush1.msra.mxu0 0.0
  %1569 = vmatprep.subr.mxu0 0.0
  %1570 = vmatpush1.msra.mxu0 0.0
  %1571 = vmatprep.mubr.f32.mxu0 0.0
  %1572 = vmatmul.mubr.f32.gmra.mrb[0].mxu0 %v1484
  %v1573 = vpop.f32.mrb[0].mxu0
  %v1574 = vadd.f32 %v1445, %v1573
  %v1575 = vpop.f32.mrb[0].mxu0
  %1576 = vmatprep.mubr.f32.mxu0 0.0
  %1577 = vmatmul.mubr.f32.gmra.mrb[0].mxu0 %v1487
  %v1578 = vpop.f32.mrb[0].mxu0
  %v1579 = vadd.f32 %v1450, %v1578
  %v1580 = vpop.f32.mrb[0].mxu0
  %1581 = vmatprep.mubr.f32.mxu0 0.0
  %1582 = vmatmul.mubr.f32.gmra.mrb[0].mxu0 %v1490
  %v1583 = vpop.f32.mrb[0].mxu0
  %v1584 = vadd.f32 %v1455, %v1583
  %v1585 = vpop.f32.mrb[0].mxu0
  %1586 = vmatprep.mubr.f32.mxu0 0.0
  %1587 = vmatmul.mubr.f32.gmra.mrb[0].mxu0 %v1493
  %v1588 = vpop.f32.mrb[0].mxu0
  %v1589 = vadd.f32 %v1460, %v1588
  %v1590 = vpop.f32.mrb[0].mxu0
  %1591 = vmatprep.mubr.f32.mxu0 0.0
  %1592 = vmatmul.mubr.f32.gmra.mrb[0].mxu0 %v1496
  %v1593 = vpop.f32.mrb[0].mxu0
  %v1594 = vadd.f32 %v1465, %v1593
  %v1595 = vpop.f32.mrb[0].mxu0
  %1596 = vmatprep.mubr.f32.mxu0 0.0
  %1597 = vmatmul.mubr.f32.gmra.mrb[0].mxu0 %v1499
  %v1598 = vpop.f32.mrb[0].mxu0
  %v1599 = vadd.f32 %v1470, %v1598
  %v1600 = vpop.f32.mrb[0].mxu0
  %1601 = vmatprep.mubr.f32.mxu0 0.0
  %1602 = vmatmul.mubr.f32.gmra.mrb[0].mxu0 %v1502
  %v1603 = vpop.f32.mrb[0].mxu0
  %v1604 = vadd.f32 %v1475, %v1603
  %v1605 = vpop.f32.mrb[0].mxu0
  %1606 = vmatprep.mubr.f32.mxu0 0.0
  %1607 = vmatmul.mubr.f32.gmra.mrb[0].mxu0 %v1505
  %v1608 = vpop.f32.mrb[0].mxu0
  %v1609 = vadd.f32 %v1480, %v1608
  %v1610 = vpop.f32.mrb[0].mxu0
  %1611 = vdwg.mxu0
  %v1612 = vmin.f32 %v1574, 20.0
  %v1613 = vmin.f32 %v1579, 20.0
  %v1614 = vmin.f32 %v1584, 20.0
  %v1615 = vmin.f32 %v1589, 20.0
  %v1616 = vmin.f32 %v1594, 20.0
  %v1617 = vmin.f32 %v1599, 20.0
  %v1618 = vmin.f32 %v1604, 20.0
  %v1619 = vmin.f32 %v1609, 20.0
  %v1620 = vmul.f32 %v1612, 1.442695
  %v1621 = vpow.pop %v1620
  %v1622 = vmul.f32 %v1613, 1.442695
  %v1623 = vpow.pop %v1622
  %v1624 = vmul.f32 %v1614, 1.442695
  %v1625 = vpow.pop %v1624
  %v1626 = vmul.f32 %v1615, 1.442695
  %v1627 = vpow.pop %v1626
  %v1628 = vmul.f32 %v1616, 1.442695
  %v1629 = vpow.pop %v1628
  %v1630 = vmul.f32 %v1617, 1.442695
  %v1631 = vpow.pop %v1630
  %v1632 = vmul.f32 %v1618, 1.442695
  %v1633 = vpow.pop %v1632
  %v1634 = vmul.f32 %v1619, 1.442695
  %v1635 = vpow.pop %v1634
  %v1636 = vadd.f32 %v1621, 2.0
  %v1637 = vadd.f32 %v1623, 2.0
  %v1638 = vadd.f32 %v1625, 2.0
  %v1639 = vadd.f32 %v1627, 2.0
  %v1640 = vadd.f32 %v1629, 2.0
  %v1641 = vadd.f32 %v1631, 2.0
  %v1642 = vadd.f32 %v1633, 2.0
  %v1643 = vadd.f32 %v1635, 2.0
  %v1644 = vmul.f32 %v1621, %v1636
  %v1645 = vmul.f32 %v1623, %v1637
  %v1646 = vmul.f32 %v1625, %v1638
  %v1647 = vmul.f32 %v1627, %v1639
  %v1648 = vmul.f32 %v1629, %v1640
  %v1649 = vmul.f32 %v1631, %v1641
  %v1650 = vmul.f32 %v1633, %v1642
  %v1651 = vmul.f32 %v1635, %v1643
  %v1652 = vadd.f32 %v1644, 2.0
  %v1653 = vadd.f32 %v1645, 2.0
  %v1654 = vadd.f32 %v1646, 2.0
  %v1655 = vadd.f32 %v1647, 2.0
  %v1656 = vadd.f32 %v1648, 2.0
  %v1657 = vadd.f32 %v1649, 2.0
  %v1658 = vadd.f32 %v1650, 2.0
  %v1659 = vadd.f32 %v1651, 2.0
  %v1660 = vrcp.pop %v1652
  %v1661 = vrcp.pop %v1653
  %v1662 = vrcp.pop %v1654
  %v1663 = vrcp.pop %v1655
  %v1664 = vrcp.pop %v1656
  %v1665 = vrcp.pop %v1657
  %v1666 = vrcp.pop %v1658
  %v1667 = vrcp.pop %v1659
  %v1668 = vmul.f32 %v1652, %v1660
  %v1669 = vmul.f32 %v1653, %v1661
  %v1670 = vmul.f32 %v1654, %v1662
  %v1671 = vmul.f32 %v1655, %v1663
  %v1672 = vmul.f32 %v1656, %v1664
  %v1673 = vmul.f32 %v1657, %v1665
  %v1674 = vmul.f32 %v1658, %v1666
  %v1675 = vmul.f32 %v1659, %v1667
  %v1676 = vsub.f32 2.0, %v1668
  %v1677 = vsub.f32 2.0, %v1669
  %v1678 = vsub.f32 2.0, %v1670
  %v1679 = vsub.f32 2.0, %v1671
  %v1680 = vsub.f32 2.0, %v1672
  %v1681 = vsub.f32 2.0, %v1673
  %v1682 = vsub.f32 2.0, %v1674
  %v1683 = vsub.f32 2.0, %v1675
  %v1684 = vmul.f32 %v1660, %v1676
  %v1685 = vmul.f32 %v1661, %v1677
  %v1686 = vmul.f32 %v1662, %v1678
  %v1687 = vmul.f32 %v1663, %v1679
  %v1688 = vmul.f32 %v1664, %v1680
  %v1689 = vmul.f32 %v1665, %v1681
  %v1690 = vmul.f32 %v1666, %v1682
  %v1691 = vmul.f32 %v1667, %v1683
  %v1692 = vmul.f32 %v1644, %v1684
  %v1693 = vmul.f32 %v1645, %v1685
  %v1694 = vmul.f32 %v1646, %v1686
  %v1695 = vmul.f32 %v1647, %v1687
  %v1696 = vmul.f32 %v1648, %v1688
  %v1697 = vmul.f32 %v1649, %v1689
  %v1698 = vmul.f32 %v1650, %v1690
  %v1699 = vmul.f32 %v1651, %v1691
  %v1700 = vmul.f32 %v1574, %v1692
  %v1701 = vmul.f32 %v1579, %v1693
  %v1702 = vmul.f32 %v1584, %v1694
  %v1703 = vmul.f32 %v1589, %v1695
  %v1704 = vmul.f32 %v1594, %v1696
  %v1705 = vmul.f32 %v1599, %v1697
  %v1706 = vmul.f32 %v1604, %v1698
  %v1707 = vmul.f32 %v1609, %v1699
  %v1708 = vld [vmem:[%s3] sm:$0xff]
  %v1709 = vld [vmem:[%s3 + $0x8] sm:$0xff]
  %v1710 = vld [vmem:[%s3 + $0x10] sm:$0xff]
  %v1711 = vld [vmem:[%s3 + $0x18] sm:$0xff]
  %v1712 = vld [vmem:[%s3 + $0x20] sm:$0xff]
  %v1713 = vld [vmem:[%s3 + $0x28] sm:$0xff]
  %v1714 = vld [vmem:[%s3 + $0x30] sm:$0xff]
  %v1715 = vld [vmem:[%s3 + $0x38] sm:$0xff]
  %v1716 = vld [vmem:[%s3 + $0x40] sm:$0xff]
  %v1717 = vld [vmem:[%s3 + $0x48] sm:$0xff]
  %v1718 = vld [vmem:[%s3 + $0x50] sm:$0xff]
  %v1719 = vld [vmem:[%s3 + $0x58] sm:$0xff]
  %v1720 = vld [vmem:[%s3 + $0x60] sm:$0xff]
  %v1721 = vld [vmem:[%s3 + $0x68] sm:$0xff]
  %v1722 = vld [vmem:[%s3 + $0x70] sm:$0xff]
  %v1723 = vld [vmem:[%s3 + $0x78] sm:$0xff]
  %v1724 = vld [vmem:[%s3 + $0x80] sm:$0xff]
  %v1725 = vld [vmem:[%s3 + $0x88] sm:$0xff]
  %v1726 = vld [vmem:[%s3 + $0x90] sm:$0xff]
  %v1727 = vld [vmem:[%s3 + $0x98] sm:$0xff]
  %v1728 = vld [vmem:[%s3 + $0xa0] sm:$0xff]
  %v1729 = vld [vmem:[%s3 + $0xa8] sm:$0xff]
  %v1730 = vld [vmem:[%s3 + $0xb0] sm:$0xff]
  %v1731 = vld [vmem:[%s3 + $0xb8] sm:$0xff]
  %v1732 = vld [vmem:[%s3 + $0xc0] sm:$0xff]
  %v1733 = vld [vmem:[%s3 + $0xc8] sm:$0xff]
  %v1734 = vld [vmem:[%s3 + $0xd0] sm:$0xff]
  %v1735 = vld [vmem:[%s3 + $0xd8] sm:$0xff]
  %v1736 = vld [vmem:[%s3 + $0xe0] sm:$0xff]
  %v1737 = vld [vmem:[%s3 + $0xe8] sm:$0xff]
  %v1738 = vld [vmem:[%s3 + $0xf0] sm:$0xff]
  %v1739 = vld [vmem:[%s3 + $0xf8] sm:$0xff]
  %v1740 = vld [vmem:[%s4] sm:$0xff]
  %v1741 = vld [vmem:[%s4 + $0x8] sm:$0xff]
  %v1742 = vld [vmem:[%s4 + $0x10] sm:$0xff]
  %v1743 = vld [vmem:[%s4 + $0x18] sm:$0xff]
  %v1744 = vld [vmem:[%s4 + $0x20] sm:$0xff]
  %v1745 = vld [vmem:[%s4 + $0x28] sm:$0xff]
  %v1746 = vld [vmem:[%s4 + $0x30] sm:$0xff]
  %v1747 = vld [vmem:[%s4 + $0x38] sm:$0xff]
  %v1748 = vld [vmem:[%s4 + $0x40] sm:$0xff]
  %v1749 = vld [vmem:[%s4 + $0x48] sm:$0xff]
  %v1750 = vld [vmem:[%s4 + $0x50] sm:$0xff]
  %v1751 = vld [vmem:[%s4 + $0x58] sm:$0xff]
  %v1752 = vld [vmem:[%s4 + $0x60] sm:$0xff]
  %v1753 = vld [vmem:[%s4 + $0x68] sm:$0xff]
  %v1754 = vld [vmem:[%s4 + $0x70] sm:$0xff]
  %v1755 = vld [vmem:[%s4 + $0x78] sm:$0xff]
  %v1756 = vld [vmem:[%s4 + $0x80] sm:$0xff]
  %v1757 = vld [vmem:[%s4 + $0x88] sm:$0xff]
  %v1758 = vld [vmem:[%s4 + $0x90] sm:$0xff]
  %v1759 = vld [vmem:[%s4 + $0x98] sm:$0xff]
  %v1760 = vld [vmem:[%s4 + $0xa0] sm:$0xff]
  %v1761 = vld [vmem:[%s4 + $0xa8] sm:$0xff]
  %v1762 = vld [vmem:[%s4 + $0xb0] sm:$0xff]
  %v1763 = vld [vmem:[%s4 + $0xb8] sm:$0xff]
  %v1764 = vld [vmem:[%s4 + $0xc0] sm:$0xff]
  %v1765 = vld [vmem:[%s4 + $0xc8] sm:$0xff]
  %v1766 = vld [vmem:[%s4 + $0xd0] sm:$0xff]
  %v1767 = vld [vmem:[%s4 + $0xd8] sm:$0xff]
  %v1768 = vld [vmem:[%s4 + $0xe0] sm:$0xff]
  %v1769 = vld [vmem:[%s4 + $0xe8] sm:$0xff]
  %v1770 = vld [vmem:[%s4 + $0xf0] sm:$0xff]
  %v1771 = vld [vmem:[%s4 + $0xf8] sm:$0xff]
  %1773 = vset.pattern.permute.xlu0 0
  %1774 = vperm.xlu0 %1773, %v1740
  %v1775 = vpop.permute.xlu0 %1774
  %1778 = vset.pattern.permute.xlu0 0
  %1779 = vperm.xlu0 %1778, %v1741
  %v1780 = vpop.permute.xlu0 %1779
  %1783 = vset.pattern.permute.xlu0 0
  %1784 = vperm.xlu0 %1783, %v1742
  %v1785 = vpop.permute.xlu0 %1784
  %1788 = vset.pattern.permute.xlu0 0
  %1789 = vperm.xlu0 %1788, %v1743
  %v1790 = vpop.permute.xlu0 %1789
  %1793 = vset.pattern.permute.xlu0 0
  %1794 = vperm.xlu0 %1793, %v1744
  %v1795 = vpop.permute.xlu0 %1794
  %1798 = vset.pattern.permute.xlu0 0
  %1799 = vperm.xlu0 %1798, %v1745
  %v1800 = vpop.permute.xlu0 %1799
  %1803 = vset.pattern.permute.xlu0 0
  %1804 = vperm.xlu0 %1803, %v1746
  %v1805 = vpop.permute.xlu0 %1804
  %1808 = vset.pattern.permute.xlu0 0
  %1809 = vperm.xlu0 %1808, %v1747
  %v1810 = vpop.permute.xlu0 %1809
  %1813 = vset.pattern.permute.xlu0 0
  %1814 = vperm.xlu0 %1813, %v1748
  %v1815 = vpop.permute.xlu0 %1814
  %1818 = vset.pattern.permute.xlu0 0
  %1819 = vperm.xlu0 %1818, %v1749
  %v1820 = vpop.permute.xlu0 %1819
  %1823 = vset.pattern.permute.xlu0 0
  %1824 = vperm.xlu0 %1823, %v1750
  %v1825 = vpop.permute.xlu0 %1824
  %1828 = vset.pattern.permute.xlu0 0
  %1829 = vperm.xlu0 %1828, %v1751
  %v1830 = vpop.permute.xlu0 %1829
  %1833 = vset.pattern.permute.xlu0 0
  %1834 = vperm.xlu0 %1833, %v1752
  %v1835 = vpop.permute.xlu0 %1834
  %1838 = vset.pattern.permute.xlu0 0
  %1839 = vperm.xlu0 %1838, %v1753
  %v1840 = vpop.permute.xlu0 %1839
  %1843 = vset.pattern.permute.xlu0 0
  %1844 = vperm.xlu0 %1843, %v1754
  %v1845 = vpop.permute.xlu0 %1844
  %1848 = vset.pattern.permute.xlu0 0
  %1849 = vperm.xlu0 %1848, %v1755
  %v1850 = vpop.permute.xlu0 %1849
  %1853 = vset.pattern.permute.xlu0 0
  %1854 = vperm.xlu0 %1853, %v1756
  %v1855 = vpop.permute.xlu0 %1854
  %1858 = vset.pattern.permute.xlu0 0
  %1859 = vperm.xlu0 %1858, %v1757
  %v1860 = vpop.permute.xlu0 %1859
  %1863 = vset.pattern.permute.xlu0 0
  %1864 = vperm.xlu0 %1863, %v1758
  %v1865 = vpop.permute.xlu0 %1864
  %1868 = vset.pattern.permute.xlu0 0
  %1869 = vperm.xlu0 %1868, %v1759
  %v1870 = vpop.permute.xlu0 %1869
  %1873 = vset.pattern.permute.xlu0 0
  %1874 = vperm.xlu0 %1873, %v1760
  %v1875 = vpop.permute.xlu0 %1874
  %1878 = vset.pattern.permute.xlu0 0
  %1879 = vperm.xlu0 %1878, %v1761
  %v1880 = vpop.permute.xlu0 %1879
  %1883 = vset.pattern.permute.xlu0 0
  %1884 = vperm.xlu0 %1883, %v1762
  %v1885 = vpop.permute.xlu0 %1884
  %1888 = vset.pattern.permute.xlu0 0
  %1889 = vperm.xlu0 %1888, %v1763
  %v1890 = vpop.permute.xlu0 %1889
  %1893 = vset.pattern.permute.xlu0 0
  %1894 = vperm.xlu0 %1893, %v1764
  %v1895 = vpop.permute.xlu0 %1894
  %1898 = vset.pattern.permute.xlu0 0
  %1899 = vperm.xlu0 %1898, %v1765
  %v1900 = vpop.permute.xlu0 %1899
  %1903 = vset.pattern.permute.xlu0 0
  %1904 = vperm.xlu0 %1903, %v1766
  %v1905 = vpop.permute.xlu0 %1904
  %1908 = vset.pattern.permute.xlu0 0
  %1909 = vperm.xlu0 %1908, %v1767
  %v1910 = vpop.permute.xlu0 %1909
  %1913 = vset.pattern.permute.xlu0 0
  %1914 = vperm.xlu0 %1913, %v1768
  %v1915 = vpop.permute.xlu0 %1914
  %1918 = vset.pattern.permute.xlu0 0
  %1919 = vperm.xlu0 %1918, %v1769
  %v1920 = vpop.permute.xlu0 %1919
  %1923 = vset.pattern.permute.xlu0 0
  %1924 = vperm.xlu0 %1923, %v1770
  %v1925 = vpop.permute.xlu0 %1924
  %1928 = vset.pattern.permute.xlu0 0
  %1929 = vperm.xlu0 %1928, %v1771
  %v1930 = vpop.permute.xlu0 %1929
  %v1933 = vsel %vm1482, %v1708, 0
  %v1936 = vsel %vm1482, %v1709, 0
  %v1939 = vsel %vm1482, %v1710, 0
  %v1942 = vsel %vm1482, %v1711, 0
  %v1945 = vsel %vm1482, %v1712, 0
  %v1948 = vsel %vm1482, %v1713, 0
  %v1951 = vsel %vm1482, %v1714, 0
  %v1954 = vsel %vm1482, %v1715, 0
  %v1957 = vsel %vm1482, %v1716, 0
  %v1960 = vsel %vm1482, %v1717, 0
  %v1963 = vsel %vm1482, %v1718, 0
  %v1966 = vsel %vm1482, %v1719, 0
  %v1969 = vsel %vm1482, %v1720, 0
  %v1972 = vsel %vm1482, %v1721, 0
  %v1975 = vsel %vm1482, %v1722, 0
  %v1978 = vsel %vm1482, %v1723, 0
  %v1981 = vsel %vm1482, %v1724, 0
  %v1984 = vsel %vm1482, %v1725, 0
  %v1987 = vsel %vm1482, %v1726, 0
  %v1990 = vsel %vm1482, %v1727, 0
  %v1993 = vsel %vm1482, %v1728, 0
  %v1996 = vsel %vm1482, %v1729, 0
  %v1999 = vsel %vm1482, %v1730, 0
  %v2002 = vsel %vm1482, %v1731, 0
  %v2005 = vsel %vm1482, %v1732, 0
  %v2008 = vsel %vm1482, %v1733, 0
  %v2011 = vsel %vm1482, %v1734, 0
  %v2014 = vsel %vm1482, %v1735, 0
  %v2017 = vsel %vm1482, %v1736, 0
  %v2020 = vsel %vm1482, %v1737, 0
  %v2023 = vsel %vm1482, %v1738, 0
  %v2026 = vsel %vm1482, %v1739, 0
  %2028 = vmatprep.subr.mxu0 0.0
  %2029 = vmatpush1.msra.mxu0 %v1700
  %2030 = vmatprep.subr.mxu0 0.0
  %2031 = vmatpush1.msra.mxu0 %v1701
  %2032 = vmatprep.subr.mxu0 0.0
  %2033 = vmatpush1.msra.mxu0 %v1702
  %2034 = vmatprep.subr.mxu0 0.0
  %2035 = vmatpush1.msra.mxu0 %v1703
  %2036 = vmatprep.subr.mxu0 0.0
  %2037 = vmatpush1.msra.mxu0 %v1704
  %2038 = vmatprep.subr.mxu0 0.0
  %2039 = vmatpush1.msra.mxu0 %v1705
  %2040 = vmatprep.subr.mxu0 0.0
  %2041 = vmatpush1.msra.mxu0 %v1706
  %2042 = vmatprep.subr.mxu0 0.0
  %2043 = vmatpush1.msra.mxu0 %v1707
  %2044 = vmatprep.subr.mxu0 0.0
  %2045 = vmatpush1.msra.mxu0 0.0
  %2046 = vmatprep.subr.mxu0 0.0
  %2047 = vmatpush1.msra.mxu0 0.0
  %2048 = vmatprep.subr.mxu0 0.0
  %2049 = vmatpush1.msra.mxu0 0.0
  %2050 = vmatprep.subr.mxu0 0.0
  %2051 = vmatpush1.msra.mxu0 0.0
  %2052 = vmatprep.subr.mxu0 0.0
  %2053 = vmatpush1.msra.mxu0 0.0
  %2054 = vmatprep.subr.mxu0 0.0
  %2055 = vmatpush1.msra.mxu0 0.0
  %2056 = vmatprep.subr.mxu0 0.0
  %2057 = vmatpush1.msra.mxu0 0.0
  %2058 = vmatprep.subr.mxu0 0.0
  %2059 = vmatpush1.msra.mxu0 0.0
  %2060 = vmatprep.subr.mxu0 0.0
  %2061 = vmatpush1.msra.mxu0 0.0
  %2062 = vmatprep.subr.mxu0 0.0
  %2063 = vmatpush1.msra.mxu0 0.0
  %2064 = vmatprep.subr.mxu0 0.0
  %2065 = vmatpush1.msra.mxu0 0.0
  %2066 = vmatprep.subr.mxu0 0.0
  %2067 = vmatpush1.msra.mxu0 0.0
  %2068 = vmatprep.subr.mxu0 0.0
  %2069 = vmatpush1.msra.mxu0 0.0
  %2070 = vmatprep.subr.mxu0 0.0
  %2071 = vmatpush1.msra.mxu0 0.0
  %2072 = vmatprep.subr.mxu0 0.0
  %2073 = vmatpush1.msra.mxu0 0.0
  %2074 = vmatprep.subr.mxu0 0.0
  %2075 = vmatpush1.msra.mxu0 0.0
  %2076 = vmatprep.subr.mxu0 0.0
  %2077 = vmatpush1.msra.mxu0 0.0
  %2078 = vmatprep.subr.mxu0 0.0
  %2079 = vmatpush1.msra.mxu0 0.0
  %2080 = vmatprep.subr.mxu0 0.0
  %2081 = vmatpush1.msra.mxu0 0.0
  %2082 = vmatprep.subr.mxu0 0.0
  %2083 = vmatpush1.msra.mxu0 0.0
  %2084 = vmatprep.subr.mxu0 0.0
  %2085 = vmatpush1.msra.mxu0 0.0
  %2086 = vmatprep.subr.mxu0 0.0
  %2087 = vmatpush1.msra.mxu0 0.0
  %2088 = vmatprep.subr.mxu0 0.0
  %2089 = vmatpush1.msra.mxu0 0.0
  %2090 = vmatprep.subr.mxu0 0.0
  %2091 = vmatpush1.msra.mxu0 0.0
  %2092 = vmatprep.mubr.f32.mxu0 0.0
  %2093 = vmatmul.mubr.f32.gmra.mrb[0].mxu0 %v1933
  %v2094 = vpop.f32.mrb[0].mxu0
  %v2095 = vadd.f32 %v1775, %v2094
  %v2096 = vpop.f32.mrb[0].mxu0
  %2097 = vmatprep.mubr.f32.mxu0 0.0
  %2098 = vmatmul.mubr.f32.gmra.mrb[0].mxu0 %v1936
  %v2099 = vpop.f32.mrb[0].mxu0
  %v2100 = vadd.f32 %v1780, %v2099
  %v2101 = vpop.f32.mrb[0].mxu0
  %2102 = vmatprep.mubr.f32.mxu0 0.0
  %2103 = vmatmul.mubr.f32.gmra.mrb[0].mxu0 %v1939
  %v2104 = vpop.f32.mrb[0].mxu0
  %v2105 = vadd.f32 %v1785, %v2104
  %v2106 = vpop.f32.mrb[0].mxu0
  %2107 = vmatprep.mubr.f32.mxu0 0.0
  %2108 = vmatmul.mubr.f32.gmra.mrb[0].mxu0 %v1942
  %v2109 = vpop.f32.mrb[0].mxu0
  %v2110 = vadd.f32 %v1790, %v2109
  %v2111 = vpop.f32.mrb[0].mxu0
  %2112 = vmatprep.mubr.f32.mxu0 0.0
  %2113 = vmatmul.mubr.f32.gmra.mrb[0].mxu0 %v1945
  %v2114 = vpop.f32.mrb[0].mxu0
  %v2115 = vadd.f32 %v1795, %v2114
  %v2116 = vpop.f32.mrb[0].mxu0
  %2117 = vmatprep.mubr.f32.mxu0 0.0
  %2118 = vmatmul.mubr.f32.gmra.mrb[0].mxu0 %v1948
  %v2119 = vpop.f32.mrb[0].mxu0
  %v2120 = vadd.f32 %v1800, %v2119
  %v2121 = vpop.f32.mrb[0].mxu0
  %2122 = vmatprep.mubr.f32.mxu0 0.0
  %2123 = vmatmul.mubr.f32.gmra.mrb[0].mxu0 %v1951
  %v2124 = vpop.f32.mrb[0].mxu0
  %v2125 = vadd.f32 %v1805, %v2124
  %v2126 = vpop.f32.mrb[0].mxu0
  %2127 = vmatprep.mubr.f32.mxu0 0.0
  %2128 = vmatmul.mubr.f32.gmra.mrb[0].mxu0 %v1954
  %v2129 = vpop.f32.mrb[0].mxu0
  %v2130 = vadd.f32 %v1810, %v2129
  %v2131 = vpop.f32.mrb[0].mxu0
  %2132 = vmatprep.mubr.f32.mxu0 0.0
  %2133 = vmatmul.mubr.f32.gmra.mrb[0].mxu0 %v1957
  %v2134 = vpop.f32.mrb[0].mxu0
  %v2135 = vadd.f32 %v1815, %v2134
  %v2136 = vpop.f32.mrb[0].mxu0
  %2137 = vmatprep.mubr.f32.mxu0 0.0
  %2138 = vmatmul.mubr.f32.gmra.mrb[0].mxu0 %v1960
  %v2139 = vpop.f32.mrb[0].mxu0
  %v2140 = vadd.f32 %v1820, %v2139
  %v2141 = vpop.f32.mrb[0].mxu0
  %2142 = vmatprep.mubr.f32.mxu0 0.0
  %2143 = vmatmul.mubr.f32.gmra.mrb[0].mxu0 %v1963
  %v2144 = vpop.f32.mrb[0].mxu0
  %v2145 = vadd.f32 %v1825, %v2144
  %v2146 = vpop.f32.mrb[0].mxu0
  %2147 = vmatprep.mubr.f32.mxu0 0.0
  %2148 = vmatmul.mubr.f32.gmra.mrb[0].mxu0 %v1966
  %v2149 = vpop.f32.mrb[0].mxu0
  %v2150 = vadd.f32 %v1830, %v2149
  %v2151 = vpop.f32.mrb[0].mxu0
  %2152 = vmatprep.mubr.f32.mxu0 0.0
  %2153 = vmatmul.mubr.f32.gmra.mrb[0].mxu0 %v1969
  %v2154 = vpop.f32.mrb[0].mxu0
  %v2155 = vadd.f32 %v1835, %v2154
  %v2156 = vpop.f32.mrb[0].mxu0
  %2157 = vmatprep.mubr.f32.mxu0 0.0
  %2158 = vmatmul.mubr.f32.gmra.mrb[0].mxu0 %v1972
  %v2159 = vpop.f32.mrb[0].mxu0
  %v2160 = vadd.f32 %v1840, %v2159
  %v2161 = vpop.f32.mrb[0].mxu0
  %2162 = vmatprep.mubr.f32.mxu0 0.0
  %2163 = vmatmul.mubr.f32.gmra.mrb[0].mxu0 %v1975
  %v2164 = vpop.f32.mrb[0].mxu0
  %v2165 = vadd.f32 %v1845, %v2164
  %v2166 = vpop.f32.mrb[0].mxu0
  %2167 = vmatprep.mubr.f32.mxu0 0.0
  %2168 = vmatmul.mubr.f32.gmra.mrb[0].mxu0 %v1978
  %v2169 = vpop.f32.mrb[0].mxu0
  %v2170 = vadd.f32 %v1850, %v2169
  %v2171 = vpop.f32.mrb[0].mxu0
  %2172 = vmatprep.mubr.f32.mxu0 0.0
  %2173 = vmatmul.mubr.f32.gmra.mrb[0].mxu0 %v1981
  %v2174 = vpop.f32.mrb[0].mxu0
  %v2175 = vadd.f32 %v1855, %v2174
  %v2176 = vpop.f32.mrb[0].mxu0
  %2177 = vmatprep.mubr.f32.mxu0 0.0
  %2178 = vmatmul.mubr.f32.gmra.mrb[0].mxu0 %v1984
  %v2179 = vpop.f32.mrb[0].mxu0
  %v2180 = vadd.f32 %v1860, %v2179
  %v2181 = vpop.f32.mrb[0].mxu0
  %2182 = vmatprep.mubr.f32.mxu0 0.0
  %2183 = vmatmul.mubr.f32.gmra.mrb[0].mxu0 %v1987
  %v2184 = vpop.f32.mrb[0].mxu0
  %v2185 = vadd.f32 %v1865, %v2184
  %v2186 = vpop.f32.mrb[0].mxu0
  %2187 = vmatprep.mubr.f32.mxu0 0.0
  %2188 = vmatmul.mubr.f32.gmra.mrb[0].mxu0 %v1990
  %v2189 = vpop.f32.mrb[0].mxu0
  %v2190 = vadd.f32 %v1870, %v2189
  %v2191 = vpop.f32.mrb[0].mxu0
  %2192 = vmatprep.mubr.f32.mxu0 0.0
  %2193 = vmatmul.mubr.f32.gmra.mrb[0].mxu0 %v1993
  %v2194 = vpop.f32.mrb[0].mxu0
  %v2195 = vadd.f32 %v1875, %v2194
  %v2196 = vpop.f32.mrb[0].mxu0
  %2197 = vmatprep.mubr.f32.mxu0 0.0
  %2198 = vmatmul.mubr.f32.gmra.mrb[0].mxu0 %v1996
  %v2199 = vpop.f32.mrb[0].mxu0
  %v2200 = vadd.f32 %v1880, %v2199
  %v2201 = vpop.f32.mrb[0].mxu0
  %2202 = vmatprep.mubr.f32.mxu0 0.0
  %2203 = vmatmul.mubr.f32.gmra.mrb[0].mxu0 %v1999
  %v2204 = vpop.f32.mrb[0].mxu0
  %v2205 = vadd.f32 %v1885, %v2204
  %v2206 = vpop.f32.mrb[0].mxu0
  %2207 = vmatprep.mubr.f32.mxu0 0.0
  %2208 = vmatmul.mubr.f32.gmra.mrb[0].mxu0 %v2002
  %v2209 = vpop.f32.mrb[0].mxu0
  %v2210 = vadd.f32 %v1890, %v2209
  %v2211 = vpop.f32.mrb[0].mxu0
  %2212 = vmatprep.mubr.f32.mxu0 0.0
  %2213 = vmatmul.mubr.f32.gmra.mrb[0].mxu0 %v2005
  %v2214 = vpop.f32.mrb[0].mxu0
  %v2215 = vadd.f32 %v1895, %v2214
  %v2216 = vpop.f32.mrb[0].mxu0
  %2217 = vmatprep.mubr.f32.mxu0 0.0
  %2218 = vmatmul.mubr.f32.gmra.mrb[0].mxu0 %v2008
  %v2219 = vpop.f32.mrb[0].mxu0
  %v2220 = vadd.f32 %v1900, %v2219
  %v2221 = vpop.f32.mrb[0].mxu0
  %2222 = vmatprep.mubr.f32.mxu0 0.0
  %2223 = vmatmul.mubr.f32.gmra.mrb[0].mxu0 %v2011
  %v2224 = vpop.f32.mrb[0].mxu0
  %v2225 = vadd.f32 %v1905, %v2224
  %v2226 = vpop.f32.mrb[0].mxu0
  %2227 = vmatprep.mubr.f32.mxu0 0.0
  %2228 = vmatmul.mubr.f32.gmra.mrb[0].mxu0 %v2014
  %v2229 = vpop.f32.mrb[0].mxu0
  %v2230 = vadd.f32 %v1910, %v2229
  %v2231 = vpop.f32.mrb[0].mxu0
  %2232 = vmatprep.mubr.f32.mxu0 0.0
  %2233 = vmatmul.mubr.f32.gmra.mrb[0].mxu0 %v2017
  %v2234 = vpop.f32.mrb[0].mxu0
  %v2235 = vadd.f32 %v1915, %v2234
  %v2236 = vpop.f32.mrb[0].mxu0
  %2237 = vmatprep.mubr.f32.mxu0 0.0
  %2238 = vmatmul.mubr.f32.gmra.mrb[0].mxu0 %v2020
  %v2239 = vpop.f32.mrb[0].mxu0
  %v2240 = vadd.f32 %v1920, %v2239
  %v2241 = vpop.f32.mrb[0].mxu0
  %2242 = vmatprep.mubr.f32.mxu0 0.0
  %2243 = vmatmul.mubr.f32.gmra.mrb[0].mxu0 %v2023
  %v2244 = vpop.f32.mrb[0].mxu0
  %v2245 = vadd.f32 %v1925, %v2244
  %v2246 = vpop.f32.mrb[0].mxu0
  %2247 = vmatprep.mubr.f32.mxu0 0.0
  %2248 = vmatmul.mubr.f32.gmra.mrb[0].mxu0 %v2026
  %v2249 = vpop.f32.mrb[0].mxu0
  %v2250 = vadd.f32 %v1930, %v2249
  %v2251 = vpop.f32.mrb[0].mxu0
  %2252 = vdwg.mxu0
  %2253 = vxpose.xlu0.b32.start [1/16] %v2095, 128
  %2254 = vxpose.xlu0.b32.cont [2/16] %v2100, 128
  %2255 = vxpose.xlu0.b32.cont [3/16] %v2105, 128
  %2256 = vxpose.xlu0.b32.cont [4/16] %v2110, 128
  %2257 = vxpose.xlu0.b32.cont [5/16] 0.0, 128
  %2258 = vxpose.xlu0.b32.cont [6/16] 0.0, 128
  %2259 = vxpose.xlu0.b32.cont [7/16] 0.0, 128
  %2260 = vxpose.xlu0.b32.cont [8/16] 0.0, 128
  %2261 = vxpose.xlu0.b32.cont [9/16] 0.0, 128
  %2262 = vxpose.xlu0.b32.cont [10/16] 0.0, 128
  %2263 = vxpose.xlu0.b32.cont [11/16] 0.0, 128
  %2264 = vxpose.xlu0.b32.cont [12/16] 0.0, 128
  %2265 = vxpose.xlu0.b32.cont [13/16] 0.0, 128
  %2266 = vxpose.xlu0.b32.cont [14/16] 0.0, 128
  %2267 = vxpose.xlu0.b32.cont [15/16] 0.0, 128
  %2268 = vxpose.xlu0.b32.end [16/16] 0.0, 128
  %v2269 = vpop.trf.xlu0
  %v2270 = vpop.trf.xlu0
  %v2271 = vpop.trf.xlu0
  %v2272 = vpop.trf.xlu0
  %v2273 = vpop.trf.xlu0
  %v2274 = vpop.trf.xlu0
  %v2275 = vpop.trf.xlu0
  %v2276 = vpop.trf.xlu0
  %v2277 = vpop.trf.xlu0
  %v2278 = vpop.trf.xlu0
  %v2279 = vpop.trf.xlu0
  %v2280 = vpop.trf.xlu0
  %v2281 = vpop.trf.xlu0
  %v2282 = vpop.trf.xlu0
  %v2283 = vpop.trf.xlu0
  %v2284 = vpop.trf.xlu0
  %v2285 = vadd.f32 %v2269, %v32
  %v2286 = vadd.f32 %v2270, %v33
  %v2287 = vadd.f32 %v2271, %v34
  %v2288 = vadd.f32 %v2272, %v35
  %v2289 = vadd.f32 %v2273, %v36
  %v2290 = vadd.f32 %v2274, %v37
  %v2291 = vadd.f32 %v2275, %v38
  %v2292 = vadd.f32 %v2276, %v39
  %v2293 = vadd.f32 %v2277, %v40
  %v2294 = vadd.f32 %v2278, %v41
  %v2295 = vadd.f32 %v2279, %v42
  %v2296 = vadd.f32 %v2280, %v43
  %v2297 = vadd.f32 %v2281, %v44
  %v2298 = vadd.f32 %v2282, %v45
  %v2299 = vadd.f32 %v2283, %v46
  %v2300 = vadd.f32 %v2284, %v47
  %vm2301 = vcmask 261120
  %2302 = vst.msk [vmem:[%s9] sm:$0xff] %vm2301, %v2285
  %2303 = vst.msk [vmem:[%s9 + $0x8] sm:$0xff] %vm2301, %v2286
  %2304 = vst.msk [vmem:[%s9 + $0x10] sm:$0xff] %vm2301, %v2287
  %2305 = vst.msk [vmem:[%s9 + $0x18] sm:$0xff] %vm2301, %v2288
  %2306 = vst.msk [vmem:[%s9 + $0x20] sm:$0xff] %vm2301, %v2289
  %2307 = vst.msk [vmem:[%s9 + $0x28] sm:$0xff] %vm2301, %v2290
  %2308 = vst.msk [vmem:[%s9 + $0x30] sm:$0xff] %vm2301, %v2291
  %2309 = vst.msk [vmem:[%s9 + $0x38] sm:$0xff] %vm2301, %v2292
  %2310 = vst.msk [vmem:[%s9 + $0x40] sm:$0xff] %vm2301, %v2293
  %2311 = vst.msk [vmem:[%s9 + $0x48] sm:$0xff] %vm2301, %v2294
  %2312 = vst.msk [vmem:[%s9 + $0x50] sm:$0xff] %vm2301, %v2295
  %2313 = vst.msk [vmem:[%s9 + $0x58] sm:$0xff] %vm2301, %v2296
  %2314 = vst.msk [vmem:[%s9 + $0x60] sm:$0xff] %vm2301, %v2297
  %2315 = vst.msk [vmem:[%s9 + $0x68] sm:$0xff] %vm2301, %v2298
  %2316 = vst.msk [vmem:[%s9 + $0x70] sm:$0xff] %vm2301, %v2299
  %2317 = vst.msk [vmem:[%s9 + $0x78] sm:$0xff] %vm2301, %v2300
  %v2318 = vld [vmem:[%s80] sm:$0xff]
  %v2319 = vld [vmem:[%s80 + $0x8] sm:$0xff]
  %v2320 = vld [vmem:[%s80 + $0x10] sm:$0xff]
  %v2321 = vld [vmem:[%s80 + $0x18] sm:$0xff]
  %v2322 = vld [vmem:[%s80 + $0x20] sm:$0xff]
  %v2323 = vld [vmem:[%s80 + $0x28] sm:$0xff]
  %v2324 = vld [vmem:[%s80 + $0x30] sm:$0xff]
  %v2325 = vld [vmem:[%s80 + $0x38] sm:$0xff]
  %v2326 = vld [vmem:[%s80 + $0x40] sm:$0xff]
  %v2327 = vld [vmem:[%s80 + $0x48] sm:$0xff]
  %v2328 = vld [vmem:[%s80 + $0x50] sm:$0xff]
  %v2329 = vld [vmem:[%s80 + $0x58] sm:$0xff]
  %v2330 = vld [vmem:[%s80 + $0x60] sm:$0xff]
  %v2331 = vld [vmem:[%s80 + $0x68] sm:$0xff]
  %v2332 = vld [vmem:[%s80 + $0x70] sm:$0xff]
  %v2333 = vld [vmem:[%s80 + $0x78] sm:$0xff]
  %2334 = vxpose.xlu0.b32.start [1/16] %v2115, 128
  %2335 = vxpose.xlu0.b32.cont [2/16] %v2120, 128
  %2336 = vxpose.xlu0.b32.cont [3/16] %v2125, 128
  %2337 = vxpose.xlu0.b32.cont [4/16] %v2130, 128
  %2338 = vxpose.xlu0.b32.cont [5/16] 0.0, 128
  %2339 = vxpose.xlu0.b32.cont [6/16] 0.0, 128
  %2340 = vxpose.xlu0.b32.cont [7/16] 0.0, 128
  %2341 = vxpose.xlu0.b32.cont [8/16] 0.0, 128
  %2342 = vxpose.xlu0.b32.cont [9/16] 0.0, 128
  %2343 = vxpose.xlu0.b32.cont [10/16] 0.0, 128
  %2344 = vxpose.xlu0.b32.cont [11/16] 0.0, 128
  %2345 = vxpose.xlu0.b32.cont [12/16] 0.0, 128
  %2346 = vxpose.xlu0.b32.cont [13/16] 0.0, 128
  %2347 = vxpose.xlu0.b32.cont [14/16] 0.0, 128
  %2348 = vxpose.xlu0.b32.cont [15/16] 0.0, 128
  %2349 = vxpose.xlu0.b32.end [16/16] 0.0, 128
  %v2350 = vpop.trf.xlu0
  %v2351 = vpop.trf.xlu0
  %v2352 = vpop.trf.xlu0
  %v2353 = vpop.trf.xlu0
  %v2354 = vpop.trf.xlu0
  %v2355 = vpop.trf.xlu0
  %v2356 = vpop.trf.xlu0
  %v2357 = vpop.trf.xlu0
  %v2358 = vpop.trf.xlu0
  %v2359 = vpop.trf.xlu0
  %v2360 = vpop.trf.xlu0
  %v2361 = vpop.trf.xlu0
  %v2362 = vpop.trf.xlu0
  %v2363 = vpop.trf.xlu0
  %v2364 = vpop.trf.xlu0
  %v2365 = vpop.trf.xlu0
  %v2366 = vadd.f32 %v2350, %v2318
  %v2367 = vadd.f32 %v2351, %v2319
  %v2368 = vadd.f32 %v2352, %v2320
  %v2369 = vadd.f32 %v2353, %v2321
  %v2370 = vadd.f32 %v2354, %v2322
  %v2371 = vadd.f32 %v2355, %v2323
  %v2372 = vadd.f32 %v2356, %v2324
  %v2373 = vadd.f32 %v2357, %v2325
  %v2374 = vadd.f32 %v2358, %v2326
  %v2375 = vadd.f32 %v2359, %v2327
  %v2376 = vadd.f32 %v2360, %v2328
  %v2377 = vadd.f32 %v2361, %v2329
  %v2378 = vadd.f32 %v2362, %v2330
  %v2379 = vadd.f32 %v2363, %v2331
  %v2380 = vadd.f32 %v2364, %v2332
  %v2381 = vadd.f32 %v2365, %v2333
  %s2382 = scalar_lea.vmem %s9, 128
  %2383 = vst.msk [vmem:[%s2382] sm:$0xff] %vm2301, %v2366
  %2384 = vst.msk [vmem:[%s2382 + $0x8] sm:$0xff] %vm2301, %v2367
  %2385 = vst.msk [vmem:[%s2382 + $0x10] sm:$0xff] %vm2301, %v2368
  %2386 = vst.msk [vmem:[%s2382 + $0x18] sm:$0xff] %vm2301, %v2369
  %2387 = vst.msk [vmem:[%s2382 + $0x20] sm:$0xff] %vm2301, %v2370
  %2388 = vst.msk [vmem:[%s2382 + $0x28] sm:$0xff] %vm2301, %v2371
  %2389 = vst.msk [vmem:[%s2382 + $0x30] sm:$0xff] %vm2301, %v2372
  %2390 = vst.msk [vmem:[%s2382 + $0x38] sm:$0xff] %vm2301, %v2373
  %2391 = vst.msk [vmem:[%s2382 + $0x40] sm:$0xff] %vm2301, %v2374
  %2392 = vst.msk [vmem:[%s2382 + $0x48] sm:$0xff] %vm2301, %v2375
  %2393 = vst.msk [vmem:[%s2382 + $0x50] sm:$0xff] %vm2301, %v2376
  %2394 = vst.msk [vmem:[%s2382 + $0x58] sm:$0xff] %vm2301, %v2377
  %2395 = vst.msk [vmem:[%s2382 + $0x60] sm:$0xff] %vm2301, %v2378
  %2396 = vst.msk [vmem:[%s2382 + $0x68] sm:$0xff] %vm2301, %v2379
  %2397 = vst.msk [vmem:[%s2382 + $0x70] sm:$0xff] %vm2301, %v2380
  %2398 = vst.msk [vmem:[%s2382 + $0x78] sm:$0xff] %vm2301, %v2381
  %v2399 = vld [vmem:[%s129] sm:$0xff]
  %v2400 = vld [vmem:[%s129 + $0x8] sm:$0xff]
  %v2401 = vld [vmem:[%s129 + $0x10] sm:$0xff]
  %v2402 = vld [vmem:[%s129 + $0x18] sm:$0xff]
  %v2403 = vld [vmem:[%s129 + $0x20] sm:$0xff]
  %v2404 = vld [vmem:[%s129 + $0x28] sm:$0xff]
  %v2405 = vld [vmem:[%s129 + $0x30] sm:$0xff]
  %v2406 = vld [vmem:[%s129 + $0x38] sm:$0xff]
  %v2407 = vld [vmem:[%s129 + $0x40] sm:$0xff]
  %v2408 = vld [vmem:[%s129 + $0x48] sm:$0xff]
  %v2409 = vld [vmem:[%s129 + $0x50] sm:$0xff]
  %v2410 = vld [vmem:[%s129 + $0x58] sm:$0xff]
  %v2411 = vld [vmem:[%s129 + $0x60] sm:$0xff]
  %v2412 = vld [vmem:[%s129 + $0x68] sm:$0xff]
  %v2413 = vld [vmem:[%s129 + $0x70] sm:$0xff]
  %v2414 = vld [vmem:[%s129 + $0x78] sm:$0xff]
  %2415 = vxpose.xlu0.b32.start [1/16] %v2135, 128
  %2416 = vxpose.xlu0.b32.cont [2/16] %v2140, 128
  %2417 = vxpose.xlu0.b32.cont [3/16] %v2145, 128
  %2418 = vxpose.xlu0.b32.cont [4/16] %v2150, 128
  %2419 = vxpose.xlu0.b32.cont [5/16] 0.0, 128
  %2420 = vxpose.xlu0.b32.cont [6/16] 0.0, 128
  %2421 = vxpose.xlu0.b32.cont [7/16] 0.0, 128
  %2422 = vxpose.xlu0.b32.cont [8/16] 0.0, 128
  %2423 = vxpose.xlu0.b32.cont [9/16] 0.0, 128
  %2424 = vxpose.xlu0.b32.cont [10/16] 0.0, 128
  %2425 = vxpose.xlu0.b32.cont [11/16] 0.0, 128
  %2426 = vxpose.xlu0.b32.cont [12/16] 0.0, 128
  %2427 = vxpose.xlu0.b32.cont [13/16] 0.0, 128
  %2428 = vxpose.xlu0.b32.cont [14/16] 0.0, 128
  %2429 = vxpose.xlu0.b32.cont [15/16] 0.0, 128
  %2430 = vxpose.xlu0.b32.end [16/16] 0.0, 128
  %v2431 = vpop.trf.xlu0
  %v2432 = vpop.trf.xlu0
  %v2433 = vpop.trf.xlu0
  %v2434 = vpop.trf.xlu0
  %v2435 = vpop.trf.xlu0
  %v2436 = vpop.trf.xlu0
  %v2437 = vpop.trf.xlu0
  %v2438 = vpop.trf.xlu0
  %v2439 = vpop.trf.xlu0
  %v2440 = vpop.trf.xlu0
  %v2441 = vpop.trf.xlu0
  %v2442 = vpop.trf.xlu0
  %v2443 = vpop.trf.xlu0
  %v2444 = vpop.trf.xlu0
  %v2445 = vpop.trf.xlu0
  %v2446 = vpop.trf.xlu0
  %v2447 = vadd.f32 %v2431, %v2399
  %v2448 = vadd.f32 %v2432, %v2400
  %v2449 = vadd.f32 %v2433, %v2401
  %v2450 = vadd.f32 %v2434, %v2402
  %v2451 = vadd.f32 %v2435, %v2403
  %v2452 = vadd.f32 %v2436, %v2404
  %v2453 = vadd.f32 %v2437, %v2405
  %v2454 = vadd.f32 %v2438, %v2406
  %v2455 = vadd.f32 %v2439, %v2407
  %v2456 = vadd.f32 %v2440, %v2408
  %v2457 = vadd.f32 %v2441, %v2409
  %v2458 = vadd.f32 %v2442, %v2410
  %v2459 = vadd.f32 %v2443, %v2411
  %v2460 = vadd.f32 %v2444, %v2412
  %v2461 = vadd.f32 %v2445, %v2413
  %v2462 = vadd.f32 %v2446, %v2414
  %s2463 = scalar_lea.vmem %s9, 256
  %2464 = vst.msk [vmem:[%s2463] sm:$0xff] %vm2301, %v2447
  %2465 = vst.msk [vmem:[%s2463 + $0x8] sm:$0xff] %vm2301, %v2448
  %2466 = vst.msk [vmem:[%s2463 + $0x10] sm:$0xff] %vm2301, %v2449
  %2467 = vst.msk [vmem:[%s2463 + $0x18] sm:$0xff] %vm2301, %v2450
  %2468 = vst.msk [vmem:[%s2463 + $0x20] sm:$0xff] %vm2301, %v2451
  %2469 = vst.msk [vmem:[%s2463 + $0x28] sm:$0xff] %vm2301, %v2452
  %2470 = vst.msk [vmem:[%s2463 + $0x30] sm:$0xff] %vm2301, %v2453
  %2471 = vst.msk [vmem:[%s2463 + $0x38] sm:$0xff] %vm2301, %v2454
  %2472 = vst.msk [vmem:[%s2463 + $0x40] sm:$0xff] %vm2301, %v2455
  %2473 = vst.msk [vmem:[%s2463 + $0x48] sm:$0xff] %vm2301, %v2456
  %2474 = vst.msk [vmem:[%s2463 + $0x50] sm:$0xff] %vm2301, %v2457
  %2475 = vst.msk [vmem:[%s2463 + $0x58] sm:$0xff] %vm2301, %v2458
  %2476 = vst.msk [vmem:[%s2463 + $0x60] sm:$0xff] %vm2301, %v2459
  %2477 = vst.msk [vmem:[%s2463 + $0x68] sm:$0xff] %vm2301, %v2460
  %2478 = vst.msk [vmem:[%s2463 + $0x70] sm:$0xff] %vm2301, %v2461
  %2479 = vst.msk [vmem:[%s2463 + $0x78] sm:$0xff] %vm2301, %v2462
  %v2480 = vld [vmem:[%s178] sm:$0xff]
  %v2481 = vld [vmem:[%s178 + $0x8] sm:$0xff]
  %v2482 = vld [vmem:[%s178 + $0x10] sm:$0xff]
  %v2483 = vld [vmem:[%s178 + $0x18] sm:$0xff]
  %v2484 = vld [vmem:[%s178 + $0x20] sm:$0xff]
  %v2485 = vld [vmem:[%s178 + $0x28] sm:$0xff]
  %v2486 = vld [vmem:[%s178 + $0x30] sm:$0xff]
  %v2487 = vld [vmem:[%s178 + $0x38] sm:$0xff]
  %v2488 = vld [vmem:[%s178 + $0x40] sm:$0xff]
  %v2489 = vld [vmem:[%s178 + $0x48] sm:$0xff]
  %v2490 = vld [vmem:[%s178 + $0x50] sm:$0xff]
  %v2491 = vld [vmem:[%s178 + $0x58] sm:$0xff]
  %v2492 = vld [vmem:[%s178 + $0x60] sm:$0xff]
  %v2493 = vld [vmem:[%s178 + $0x68] sm:$0xff]
  %v2494 = vld [vmem:[%s178 + $0x70] sm:$0xff]
  %v2495 = vld [vmem:[%s178 + $0x78] sm:$0xff]
  %2496 = vxpose.xlu0.b32.start [1/16] %v2155, 128
  %2497 = vxpose.xlu0.b32.cont [2/16] %v2160, 128
  %2498 = vxpose.xlu0.b32.cont [3/16] %v2165, 128
  %2499 = vxpose.xlu0.b32.cont [4/16] %v2170, 128
  %2500 = vxpose.xlu0.b32.cont [5/16] 0.0, 128
  %2501 = vxpose.xlu0.b32.cont [6/16] 0.0, 128
  %2502 = vxpose.xlu0.b32.cont [7/16] 0.0, 128
  %2503 = vxpose.xlu0.b32.cont [8/16] 0.0, 128
  %2504 = vxpose.xlu0.b32.cont [9/16] 0.0, 128
  %2505 = vxpose.xlu0.b32.cont [10/16] 0.0, 128
  %2506 = vxpose.xlu0.b32.cont [11/16] 0.0, 128
  %2507 = vxpose.xlu0.b32.cont [12/16] 0.0, 128
  %2508 = vxpose.xlu0.b32.cont [13/16] 0.0, 128
  %2509 = vxpose.xlu0.b32.cont [14/16] 0.0, 128
  %2510 = vxpose.xlu0.b32.cont [15/16] 0.0, 128
  %2511 = vxpose.xlu0.b32.end [16/16] 0.0, 128
  %v2512 = vpop.trf.xlu0
  %v2513 = vpop.trf.xlu0
  %v2514 = vpop.trf.xlu0
  %v2515 = vpop.trf.xlu0
  %v2516 = vpop.trf.xlu0
  %v2517 = vpop.trf.xlu0
  %v2518 = vpop.trf.xlu0
  %v2519 = vpop.trf.xlu0
  %v2520 = vpop.trf.xlu0
  %v2521 = vpop.trf.xlu0
  %v2522 = vpop.trf.xlu0
  %v2523 = vpop.trf.xlu0
  %v2524 = vpop.trf.xlu0
  %v2525 = vpop.trf.xlu0
  %v2526 = vpop.trf.xlu0
  %v2527 = vpop.trf.xlu0
  %v2528 = vadd.f32 %v2512, %v2480
  %v2529 = vadd.f32 %v2513, %v2481
  %v2530 = vadd.f32 %v2514, %v2482
  %v2531 = vadd.f32 %v2515, %v2483
  %v2532 = vadd.f32 %v2516, %v2484
  %v2533 = vadd.f32 %v2517, %v2485
  %v2534 = vadd.f32 %v2518, %v2486
  %v2535 = vadd.f32 %v2519, %v2487
  %v2536 = vadd.f32 %v2520, %v2488
  %v2537 = vadd.f32 %v2521, %v2489
  %v2538 = vadd.f32 %v2522, %v2490
  %v2539 = vadd.f32 %v2523, %v2491
  %v2540 = vadd.f32 %v2524, %v2492
  %v2541 = vadd.f32 %v2525, %v2493
  %v2542 = vadd.f32 %v2526, %v2494
  %v2543 = vadd.f32 %v2527, %v2495
  %s2544 = scalar_lea.vmem %s9, 384
  %2545 = vst.msk [vmem:[%s2544] sm:$0xff] %vm2301, %v2528
  %2546 = vst.msk [vmem:[%s2544 + $0x8] sm:$0xff] %vm2301, %v2529
  %2547 = vst.msk [vmem:[%s2544 + $0x10] sm:$0xff] %vm2301, %v2530
  %2548 = vst.msk [vmem:[%s2544 + $0x18] sm:$0xff] %vm2301, %v2531
  %2549 = vst.msk [vmem:[%s2544 + $0x20] sm:$0xff] %vm2301, %v2532
  %2550 = vst.msk [vmem:[%s2544 + $0x28] sm:$0xff] %vm2301, %v2533
  %2551 = vst.msk [vmem:[%s2544 + $0x30] sm:$0xff] %vm2301, %v2534
  %2552 = vst.msk [vmem:[%s2544 + $0x38] sm:$0xff] %vm2301, %v2535
  %2553 = vst.msk [vmem:[%s2544 + $0x40] sm:$0xff] %vm2301, %v2536
  %2554 = vst.msk [vmem:[%s2544 + $0x48] sm:$0xff] %vm2301, %v2537
  %2555 = vst.msk [vmem:[%s2544 + $0x50] sm:$0xff] %vm2301, %v2538
  %2556 = vst.msk [vmem:[%s2544 + $0x58] sm:$0xff] %vm2301, %v2539
  %2557 = vst.msk [vmem:[%s2544 + $0x60] sm:$0xff] %vm2301, %v2540
  %2558 = vst.msk [vmem:[%s2544 + $0x68] sm:$0xff] %vm2301, %v2541
  %2559 = vst.msk [vmem:[%s2544 + $0x70] sm:$0xff] %vm2301, %v2542
  %2560 = vst.msk [vmem:[%s2544 + $0x78] sm:$0xff] %vm2301, %v2543
  %v2561 = vld [vmem:[%s227] sm:$0xff]
  %v2562 = vld [vmem:[%s227 + $0x8] sm:$0xff]
  %v2563 = vld [vmem:[%s227 + $0x10] sm:$0xff]
  %v2564 = vld [vmem:[%s227 + $0x18] sm:$0xff]
  %v2565 = vld [vmem:[%s227 + $0x20] sm:$0xff]
  %v2566 = vld [vmem:[%s227 + $0x28] sm:$0xff]
  %v2567 = vld [vmem:[%s227 + $0x30] sm:$0xff]
  %v2568 = vld [vmem:[%s227 + $0x38] sm:$0xff]
  %v2569 = vld [vmem:[%s227 + $0x40] sm:$0xff]
  %v2570 = vld [vmem:[%s227 + $0x48] sm:$0xff]
  %v2571 = vld [vmem:[%s227 + $0x50] sm:$0xff]
  %v2572 = vld [vmem:[%s227 + $0x58] sm:$0xff]
  %v2573 = vld [vmem:[%s227 + $0x60] sm:$0xff]
  %v2574 = vld [vmem:[%s227 + $0x68] sm:$0xff]
  %v2575 = vld [vmem:[%s227 + $0x70] sm:$0xff]
  %v2576 = vld [vmem:[%s227 + $0x78] sm:$0xff]
  %2577 = vxpose.xlu0.b32.start [1/16] %v2175, 128
  %2578 = vxpose.xlu0.b32.cont [2/16] %v2180, 128
  %2579 = vxpose.xlu0.b32.cont [3/16] %v2185, 128
  %2580 = vxpose.xlu0.b32.cont [4/16] %v2190, 128
  %2581 = vxpose.xlu0.b32.cont [5/16] 0.0, 128
  %2582 = vxpose.xlu0.b32.cont [6/16] 0.0, 128
  %2583 = vxpose.xlu0.b32.cont [7/16] 0.0, 128
  %2584 = vxpose.xlu0.b32.cont [8/16] 0.0, 128
  %2585 = vxpose.xlu0.b32.cont [9/16] 0.0, 128
  %2586 = vxpose.xlu0.b32.cont [10/16] 0.0, 128
  %2587 = vxpose.xlu0.b32.cont [11/16] 0.0, 128
  %2588 = vxpose.xlu0.b32.cont [12/16] 0.0, 128
  %2589 = vxpose.xlu0.b32.cont [13/16] 0.0, 128
  %2590 = vxpose.xlu0.b32.cont [14/16] 0.0, 128
  %2591 = vxpose.xlu0.b32.cont [15/16] 0.0, 128
  %2592 = vxpose.xlu0.b32.end [16/16] 0.0, 128
  %v2593 = vpop.trf.xlu0
  %v2594 = vpop.trf.xlu0
  %v2595 = vpop.trf.xlu0
  %v2596 = vpop.trf.xlu0
  %v2597 = vpop.trf.xlu0
  %v2598 = vpop.trf.xlu0
  %v2599 = vpop.trf.xlu0
  %v2600 = vpop.trf.xlu0
  %v2601 = vpop.trf.xlu0
  %v2602 = vpop.trf.xlu0
  %v2603 = vpop.trf.xlu0
  %v2604 = vpop.trf.xlu0
  %v2605 = vpop.trf.xlu0
  %v2606 = vpop.trf.xlu0
  %v2607 = vpop.trf.xlu0
  %v2608 = vpop.trf.xlu0
  %v2609 = vadd.f32 %v2593, %v2561
  %v2610 = vadd.f32 %v2594, %v2562
  %v2611 = vadd.f32 %v2595, %v2563
  %v2612 = vadd.f32 %v2596, %v2564
  %v2613 = vadd.f32 %v2597, %v2565
  %v2614 = vadd.f32 %v2598, %v2566
  %v2615 = vadd.f32 %v2599, %v2567
  %v2616 = vadd.f32 %v2600, %v2568
  %v2617 = vadd.f32 %v2601, %v2569
  %v2618 = vadd.f32 %v2602, %v2570
  %v2619 = vadd.f32 %v2603, %v2571
  %v2620 = vadd.f32 %v2604, %v2572
  %v2621 = vadd.f32 %v2605, %v2573
  %v2622 = vadd.f32 %v2606, %v2574
  %v2623 = vadd.f32 %v2607, %v2575
  %v2624 = vadd.f32 %v2608, %v2576
  %s2625 = scalar_lea.vmem %s9, 512
  %2626 = vst.msk [vmem:[%s2625] sm:$0xff] %vm2301, %v2609
  %2627 = vst.msk [vmem:[%s2625 + $0x8] sm:$0xff] %vm2301, %v2610
  %2628 = vst.msk [vmem:[%s2625 + $0x10] sm:$0xff] %vm2301, %v2611
  %2629 = vst.msk [vmem:[%s2625 + $0x18] sm:$0xff] %vm2301, %v2612
  %2630 = vst.msk [vmem:[%s2625 + $0x20] sm:$0xff] %vm2301, %v2613
  %2631 = vst.msk [vmem:[%s2625 + $0x28] sm:$0xff] %vm2301, %v2614
  %2632 = vst.msk [vmem:[%s2625 + $0x30] sm:$0xff] %vm2301, %v2615
  %2633 = vst.msk [vmem:[%s2625 + $0x38] sm:$0xff] %vm2301, %v2616
  %2634 = vst.msk [vmem:[%s2625 + $0x40] sm:$0xff] %vm2301, %v2617
  %2635 = vst.msk [vmem:[%s2625 + $0x48] sm:$0xff] %vm2301, %v2618
  %2636 = vst.msk [vmem:[%s2625 + $0x50] sm:$0xff] %vm2301, %v2619
  %2637 = vst.msk [vmem:[%s2625 + $0x58] sm:$0xff] %vm2301, %v2620
  %2638 = vst.msk [vmem:[%s2625 + $0x60] sm:$0xff] %vm2301, %v2621
  %2639 = vst.msk [vmem:[%s2625 + $0x68] sm:$0xff] %vm2301, %v2622
  %2640 = vst.msk [vmem:[%s2625 + $0x70] sm:$0xff] %vm2301, %v2623
  %2641 = vst.msk [vmem:[%s2625 + $0x78] sm:$0xff] %vm2301, %v2624
  %v2642 = vld [vmem:[%s276] sm:$0xff]
  %v2643 = vld [vmem:[%s276 + $0x8] sm:$0xff]
  %v2644 = vld [vmem:[%s276 + $0x10] sm:$0xff]
  %v2645 = vld [vmem:[%s276 + $0x18] sm:$0xff]
  %v2646 = vld [vmem:[%s276 + $0x20] sm:$0xff]
  %v2647 = vld [vmem:[%s276 + $0x28] sm:$0xff]
  %v2648 = vld [vmem:[%s276 + $0x30] sm:$0xff]
  %v2649 = vld [vmem:[%s276 + $0x38] sm:$0xff]
  %v2650 = vld [vmem:[%s276 + $0x40] sm:$0xff]
  %v2651 = vld [vmem:[%s276 + $0x48] sm:$0xff]
  %v2652 = vld [vmem:[%s276 + $0x50] sm:$0xff]
  %v2653 = vld [vmem:[%s276 + $0x58] sm:$0xff]
  %v2654 = vld [vmem:[%s276 + $0x60] sm:$0xff]
  %v2655 = vld [vmem:[%s276 + $0x68] sm:$0xff]
  %v2656 = vld [vmem:[%s276 + $0x70] sm:$0xff]
  %v2657 = vld [vmem:[%s276 + $0x78] sm:$0xff]
  %2658 = vxpose.xlu0.b32.start [1/16] %v2195, 128
  %2659 = vxpose.xlu0.b32.cont [2/16] %v2200, 128
  %2660 = vxpose.xlu0.b32.cont [3/16] %v2205, 128
  %2661 = vxpose.xlu0.b32.cont [4/16] %v2210, 128
  %2662 = vxpose.xlu0.b32.cont [5/16] 0.0, 128
  %2663 = vxpose.xlu0.b32.cont [6/16] 0.0, 128
  %2664 = vxpose.xlu0.b32.cont [7/16] 0.0, 128
  %2665 = vxpose.xlu0.b32.cont [8/16] 0.0, 128
  %2666 = vxpose.xlu0.b32.cont [9/16] 0.0, 128
  %2667 = vxpose.xlu0.b32.cont [10/16] 0.0, 128
  %2668 = vxpose.xlu0.b32.cont [11/16] 0.0, 128
  %2669 = vxpose.xlu0.b32.cont [12/16] 0.0, 128
  %2670 = vxpose.xlu0.b32.cont [13/16] 0.0, 128
  %2671 = vxpose.xlu0.b32.cont [14/16] 0.0, 128
  %2672 = vxpose.xlu0.b32.cont [15/16] 0.0, 128
  %2673 = vxpose.xlu0.b32.end [16/16] 0.0, 128
  %v2674 = vpop.trf.xlu0
  %v2675 = vpop.trf.xlu0
  %v2676 = vpop.trf.xlu0
  %v2677 = vpop.trf.xlu0
  %v2678 = vpop.trf.xlu0
  %v2679 = vpop.trf.xlu0
  %v2680 = vpop.trf.xlu0
  %v2681 = vpop.trf.xlu0
  %v2682 = vpop.trf.xlu0
  %v2683 = vpop.trf.xlu0
  %v2684 = vpop.trf.xlu0
  %v2685 = vpop.trf.xlu0
  %v2686 = vpop.trf.xlu0
  %v2687 = vpop.trf.xlu0
  %v2688 = vpop.trf.xlu0
  %v2689 = vpop.trf.xlu0
  %v2690 = vadd.f32 %v2674, %v2642
  %v2691 = vadd.f32 %v2675, %v2643
  %v2692 = vadd.f32 %v2676, %v2644
  %v2693 = vadd.f32 %v2677, %v2645
  %v2694 = vadd.f32 %v2678, %v2646
  %v2695 = vadd.f32 %v2679, %v2647
  %v2696 = vadd.f32 %v2680, %v2648
  %v2697 = vadd.f32 %v2681, %v2649
  %v2698 = vadd.f32 %v2682, %v2650
  %v2699 = vadd.f32 %v2683, %v2651
  %v2700 = vadd.f32 %v2684, %v2652
  %v2701 = vadd.f32 %v2685, %v2653
  %v2702 = vadd.f32 %v2686, %v2654
  %v2703 = vadd.f32 %v2687, %v2655
  %v2704 = vadd.f32 %v2688, %v2656
  %v2705 = vadd.f32 %v2689, %v2657
  %s2706 = scalar_lea.vmem %s9, 640
  %2707 = vst.msk [vmem:[%s2706] sm:$0xff] %vm2301, %v2690
  %2708 = vst.msk [vmem:[%s2706 + $0x8] sm:$0xff] %vm2301, %v2691
  %2709 = vst.msk [vmem:[%s2706 + $0x10] sm:$0xff] %vm2301, %v2692
  %2710 = vst.msk [vmem:[%s2706 + $0x18] sm:$0xff] %vm2301, %v2693
  %2711 = vst.msk [vmem:[%s2706 + $0x20] sm:$0xff] %vm2301, %v2694
  %2712 = vst.msk [vmem:[%s2706 + $0x28] sm:$0xff] %vm2301, %v2695
  %2713 = vst.msk [vmem:[%s2706 + $0x30] sm:$0xff] %vm2301, %v2696
  %2714 = vst.msk [vmem:[%s2706 + $0x38] sm:$0xff] %vm2301, %v2697
  %2715 = vst.msk [vmem:[%s2706 + $0x40] sm:$0xff] %vm2301, %v2698
  %2716 = vst.msk [vmem:[%s2706 + $0x48] sm:$0xff] %vm2301, %v2699
  %2717 = vst.msk [vmem:[%s2706 + $0x50] sm:$0xff] %vm2301, %v2700
  %2718 = vst.msk [vmem:[%s2706 + $0x58] sm:$0xff] %vm2301, %v2701
  %2719 = vst.msk [vmem:[%s2706 + $0x60] sm:$0xff] %vm2301, %v2702
  %2720 = vst.msk [vmem:[%s2706 + $0x68] sm:$0xff] %vm2301, %v2703
  %2721 = vst.msk [vmem:[%s2706 + $0x70] sm:$0xff] %vm2301, %v2704
  %2722 = vst.msk [vmem:[%s2706 + $0x78] sm:$0xff] %vm2301, %v2705
  %v2723 = vld [vmem:[%s325] sm:$0xff]
  %v2724 = vld [vmem:[%s325 + $0x8] sm:$0xff]
  %v2725 = vld [vmem:[%s325 + $0x10] sm:$0xff]
  %v2726 = vld [vmem:[%s325 + $0x18] sm:$0xff]
  %v2727 = vld [vmem:[%s325 + $0x20] sm:$0xff]
  %v2728 = vld [vmem:[%s325 + $0x28] sm:$0xff]
  %v2729 = vld [vmem:[%s325 + $0x30] sm:$0xff]
  %v2730 = vld [vmem:[%s325 + $0x38] sm:$0xff]
  %v2731 = vld [vmem:[%s325 + $0x40] sm:$0xff]
  %v2732 = vld [vmem:[%s325 + $0x48] sm:$0xff]
  %v2733 = vld [vmem:[%s325 + $0x50] sm:$0xff]
  %v2734 = vld [vmem:[%s325 + $0x58] sm:$0xff]
  %v2735 = vld [vmem:[%s325 + $0x60] sm:$0xff]
  %v2736 = vld [vmem:[%s325 + $0x68] sm:$0xff]
  %v2737 = vld [vmem:[%s325 + $0x70] sm:$0xff]
  %v2738 = vld [vmem:[%s325 + $0x78] sm:$0xff]
  %2739 = vxpose.xlu0.b32.start [1/16] %v2215, 128
  %2740 = vxpose.xlu0.b32.cont [2/16] %v2220, 128
  %2741 = vxpose.xlu0.b32.cont [3/16] %v2225, 128
  %2742 = vxpose.xlu0.b32.cont [4/16] %v2230, 128
  %2743 = vxpose.xlu0.b32.cont [5/16] 0.0, 128
  %2744 = vxpose.xlu0.b32.cont [6/16] 0.0, 128
  %2745 = vxpose.xlu0.b32.cont [7/16] 0.0, 128
  %2746 = vxpose.xlu0.b32.cont [8/16] 0.0, 128
  %2747 = vxpose.xlu0.b32.cont [9/16] 0.0, 128
  %2748 = vxpose.xlu0.b32.cont [10/16] 0.0, 128
  %2749 = vxpose.xlu0.b32.cont [11/16] 0.0, 128
  %2750 = vxpose.xlu0.b32.cont [12/16] 0.0, 128
  %2751 = vxpose.xlu0.b32.cont [13/16] 0.0, 128
  %2752 = vxpose.xlu0.b32.cont [14/16] 0.0, 128
  %2753 = vxpose.xlu0.b32.cont [15/16] 0.0, 128
  %2754 = vxpose.xlu0.b32.end [16/16] 0.0, 128
  %v2755 = vpop.trf.xlu0
  %v2756 = vpop.trf.xlu0
  %v2757 = vpop.trf.xlu0
  %v2758 = vpop.trf.xlu0
  %v2759 = vpop.trf.xlu0
  %v2760 = vpop.trf.xlu0
  %v2761 = vpop.trf.xlu0
  %v2762 = vpop.trf.xlu0
  %v2763 = vpop.trf.xlu0
  %v2764 = vpop.trf.xlu0
  %v2765 = vpop.trf.xlu0
  %v2766 = vpop.trf.xlu0
  %v2767 = vpop.trf.xlu0
  %v2768 = vpop.trf.xlu0
  %v2769 = vpop.trf.xlu0
  %v2770 = vpop.trf.xlu0
  %v2771 = vadd.f32 %v2755, %v2723
  %v2772 = vadd.f32 %v2756, %v2724
  %v2773 = vadd.f32 %v2757, %v2725
  %v2774 = vadd.f32 %v2758, %v2726
  %v2775 = vadd.f32 %v2759, %v2727
  %v2776 = vadd.f32 %v2760, %v2728
  %v2777 = vadd.f32 %v2761, %v2729
  %v2778 = vadd.f32 %v2762, %v2730
  %v2779 = vadd.f32 %v2763, %v2731
  %v2780 = vadd.f32 %v2764, %v2732
  %v2781 = vadd.f32 %v2765, %v2733
  %v2782 = vadd.f32 %v2766, %v2734
  %v2783 = vadd.f32 %v2767, %v2735
  %v2784 = vadd.f32 %v2768, %v2736
  %v2785 = vadd.f32 %v2769, %v2737
  %v2786 = vadd.f32 %v2770, %v2738
  %s2787 = scalar_lea.vmem %s9, 768
  %2788 = vst.msk [vmem:[%s2787] sm:$0xff] %vm2301, %v2771
  %2789 = vst.msk [vmem:[%s2787 + $0x8] sm:$0xff] %vm2301, %v2772
  %2790 = vst.msk [vmem:[%s2787 + $0x10] sm:$0xff] %vm2301, %v2773
  %2791 = vst.msk [vmem:[%s2787 + $0x18] sm:$0xff] %vm2301, %v2774
  %2792 = vst.msk [vmem:[%s2787 + $0x20] sm:$0xff] %vm2301, %v2775
  %2793 = vst.msk [vmem:[%s2787 + $0x28] sm:$0xff] %vm2301, %v2776
  %2794 = vst.msk [vmem:[%s2787 + $0x30] sm:$0xff] %vm2301, %v2777
  %2795 = vst.msk [vmem:[%s2787 + $0x38] sm:$0xff] %vm2301, %v2778
  %2796 = vst.msk [vmem:[%s2787 + $0x40] sm:$0xff] %vm2301, %v2779
  %2797 = vst.msk [vmem:[%s2787 + $0x48] sm:$0xff] %vm2301, %v2780
  %2798 = vst.msk [vmem:[%s2787 + $0x50] sm:$0xff] %vm2301, %v2781
  %2799 = vst.msk [vmem:[%s2787 + $0x58] sm:$0xff] %vm2301, %v2782
  %2800 = vst.msk [vmem:[%s2787 + $0x60] sm:$0xff] %vm2301, %v2783
  %2801 = vst.msk [vmem:[%s2787 + $0x68] sm:$0xff] %vm2301, %v2784
  %2802 = vst.msk [vmem:[%s2787 + $0x70] sm:$0xff] %vm2301, %v2785
  %2803 = vst.msk [vmem:[%s2787 + $0x78] sm:$0xff] %vm2301, %v2786
  %v2804 = vld [vmem:[%s374] sm:$0xff]
  %v2805 = vld [vmem:[%s374 + $0x8] sm:$0xff]
  %v2806 = vld [vmem:[%s374 + $0x10] sm:$0xff]
  %v2807 = vld [vmem:[%s374 + $0x18] sm:$0xff]
  %v2808 = vld [vmem:[%s374 + $0x20] sm:$0xff]
  %v2809 = vld [vmem:[%s374 + $0x28] sm:$0xff]
  %v2810 = vld [vmem:[%s374 + $0x30] sm:$0xff]
  %v2811 = vld [vmem:[%s374 + $0x38] sm:$0xff]
  %v2812 = vld [vmem:[%s374 + $0x40] sm:$0xff]
  %v2813 = vld [vmem:[%s374 + $0x48] sm:$0xff]
  %v2814 = vld [vmem:[%s374 + $0x50] sm:$0xff]
  %v2815 = vld [vmem:[%s374 + $0x58] sm:$0xff]
  %v2816 = vld [vmem:[%s374 + $0x60] sm:$0xff]
  %v2817 = vld [vmem:[%s374 + $0x68] sm:$0xff]
  %v2818 = vld [vmem:[%s374 + $0x70] sm:$0xff]
  %v2819 = vld [vmem:[%s374 + $0x78] sm:$0xff]
  %2820 = vxpose.xlu0.b32.start [1/16] %v2235, 128
  %2821 = vxpose.xlu0.b32.cont [2/16] %v2240, 128
  %2822 = vxpose.xlu0.b32.cont [3/16] %v2245, 128
  %2823 = vxpose.xlu0.b32.cont [4/16] %v2250, 128
  %2824 = vxpose.xlu0.b32.cont [5/16] 0.0, 128
  %2825 = vxpose.xlu0.b32.cont [6/16] 0.0, 128
  %2826 = vxpose.xlu0.b32.cont [7/16] 0.0, 128
  %2827 = vxpose.xlu0.b32.cont [8/16] 0.0, 128
  %2828 = vxpose.xlu0.b32.cont [9/16] 0.0, 128
  %2829 = vxpose.xlu0.b32.cont [10/16] 0.0, 128
  %2830 = vxpose.xlu0.b32.cont [11/16] 0.0, 128
  %2831 = vxpose.xlu0.b32.cont [12/16] 0.0, 128
  %2832 = vxpose.xlu0.b32.cont [13/16] 0.0, 128
  %2833 = vxpose.xlu0.b32.cont [14/16] 0.0, 128
  %2834 = vxpose.xlu0.b32.cont [15/16] 0.0, 128
  %2835 = vxpose.xlu0.b32.end [16/16] 0.0, 128
  %v2836 = vpop.trf.xlu0
  %v2837 = vpop.trf.xlu0
  %v2838 = vpop.trf.xlu0
  %v2839 = vpop.trf.xlu0
  %v2840 = vpop.trf.xlu0
  %v2841 = vpop.trf.xlu0
  %v2842 = vpop.trf.xlu0
  %v2843 = vpop.trf.xlu0
  %v2844 = vpop.trf.xlu0
  %v2845 = vpop.trf.xlu0
  %v2846 = vpop.trf.xlu0
  %v2847 = vpop.trf.xlu0
  %v2848 = vpop.trf.xlu0
  %v2849 = vpop.trf.xlu0
  %v2850 = vpop.trf.xlu0
  %v2851 = vpop.trf.xlu0
  %v2852 = vadd.f32 %v2836, %v2804
  %v2853 = vadd.f32 %v2837, %v2805
  %v2854 = vadd.f32 %v2838, %v2806
  %v2855 = vadd.f32 %v2839, %v2807
  %v2856 = vadd.f32 %v2840, %v2808
  %v2857 = vadd.f32 %v2841, %v2809
  %v2858 = vadd.f32 %v2842, %v2810
  %v2859 = vadd.f32 %v2843, %v2811
  %v2860 = vadd.f32 %v2844, %v2812
  %v2861 = vadd.f32 %v2845, %v2813
  %v2862 = vadd.f32 %v2846, %v2814
  %v2863 = vadd.f32 %v2847, %v2815
  %v2864 = vadd.f32 %v2848, %v2816
  %v2865 = vadd.f32 %v2849, %v2817
  %v2866 = vadd.f32 %v2850, %v2818
  %v2867 = vadd.f32 %v2851, %v2819
  %s2868 = scalar_lea.vmem %s9, 896
  %2869 = vst.msk [vmem:[%s2868] sm:$0xff] %vm2301, %v2852
  %2870 = vst.msk [vmem:[%s2868 + $0x8] sm:$0xff] %vm2301, %v2853
  %2871 = vst.msk [vmem:[%s2868 + $0x10] sm:$0xff] %vm2301, %v2854
  %2872 = vst.msk [vmem:[%s2868 + $0x18] sm:$0xff] %vm2301, %v2855
  %2873 = vst.msk [vmem:[%s2868 + $0x20] sm:$0xff] %vm2301, %v2856
  %2874 = vst.msk [vmem:[%s2868 + $0x28] sm:$0xff] %vm2301, %v2857
  %2875 = vst.msk [vmem:[%s2868 + $0x30] sm:$0xff] %vm2301, %v2858
  %2876 = vst.msk [vmem:[%s2868 + $0x38] sm:$0xff] %vm2301, %v2859
  %2877 = vst.msk [vmem:[%s2868 + $0x40] sm:$0xff] %vm2301, %v2860
  %2878 = vst.msk [vmem:[%s2868 + $0x48] sm:$0xff] %vm2301, %v2861
  %2879 = vst.msk [vmem:[%s2868 + $0x50] sm:$0xff] %vm2301, %v2862
  %2880 = vst.msk [vmem:[%s2868 + $0x58] sm:$0xff] %vm2301, %v2863
  %2881 = vst.msk [vmem:[%s2868 + $0x60] sm:$0xff] %vm2301, %v2864
  %2882 = vst.msk [vmem:[%s2868 + $0x68] sm:$0xff] %vm2301, %v2865
  %2883 = vst.msk [vmem:[%s2868 + $0x70] sm:$0xff] %vm2301, %v2866
  %2884 = vst.msk [vmem:[%s2868 + $0x78] sm:$0xff] %vm2301, %v2867
  // Predicated region
  $region38: #{tpu_custom_call.1} parent=0 // pred_check
    _
  $region39: #{tpu_custom_call.1} parent=0 // pred_check_branch
    %2886 = sbr.rel (0) target = $region41
  $region40: #{tpu_custom_call.1} parent=0 // pred_region
    _
  $region41: #{tpu_custom_call.1} parent=0 // pred_fallthru
    _
  // Predicated region
  $region42: #{tpu_custom_call.1} parent=0 // pred_check
    _
  $region43: #{tpu_custom_call.1} parent=0 // pred_check_branch
    %2888 = sbr.rel (0) target = $region45
  $region44: #{tpu_custom_call.1} parent=0 // pred_region
    _
  $region45: #{tpu_custom_call.1} parent=0 // pred_fallthru
    _

</llo_original>
